<compile_context>
chip_gen: v6e
topology: v6e:2x2x1
jax: 0.10.0
libtpu: 0.0.40
codegen_flags: <defaults>
</compile_context>

<pallas_src>
import functools

import jax
import jax.numpy as jnp
from jax import lax
from jax.experimental import pallas as pl
from jax.experimental.pallas import tpu as pltpu

EPS = 1e-5
LANE = 128


def _round_up(x, m):
    return (x + m - 1) // m * m


def _bottleneck_kernel(has_ds, *refs):
    """Fused bottleneck block.  All channel dims are already padded to 128."""
    if has_ds:
        (x_ref, w1_ref, cb1_ref, g1_ref, b1_ref,
         w2_ref, cb2_ref, g2_ref, b2_ref,
         w3_ref, cb3_ref, g3_ref, b3_ref,
         wds_ref, cbds_ref,
         out_ref, pad_ref) = refs
    else:
        (x_ref, w1_ref, cb1_ref, g1_ref, b1_ref,
         w2_ref, cb2_ref, g2_ref, b2_ref,
         w3_ref, cb3_ref, g3_ref, b3_ref,
         out_ref, pad_ref) = refs
        wds_ref = cbds_ref = None

    N, H, W, Cin_p = x_ref.shape
    Cmid_p = w1_ref.shape[1]
    Cout_p = w3_ref.shape[1]
    M = N * H * W
    inv_m = 1.0 / M

    def bn_train(y, g, b):
        # one-pass batch statistics: sum and sum-of-squares (biased variance)
        s = jnp.sum(y, axis=0, keepdims=True)
        ss = jnp.sum(y * y, axis=0, keepdims=True)
        mean = s * inv_m
        var = ss * inv_m - mean * mean
        return (y - mean) * lax.rsqrt(var + EPS) * g + b

    # ---- conv1 (1x1) + BN1 + ReLU --------------------------------------
    x_f32 = x_ref[...].reshape(M, Cin_p)
    x_bf = x_f32.astype(jnp.bfloat16)                       # MXU operand
    y = jnp.dot(x_bf, w1_ref[...],
                preferred_element_type=jnp.float32) + cb1_ref[...]
    y = jnp.maximum(bn_train(y, g1_ref[...], b1_ref[...]), 0.0)

    # ---- spatial re-pad of the intermediate (border strips only) -------
    pad_ref[:, 1:H + 1, 1:W + 1, :] = y.reshape(N, H, W, Cmid_p)
    zrow = jnp.zeros((N, 1, W + 2, Cmid_p), jnp.float32)
    pad_ref[:, 0:1, :, :] = zrow
    pad_ref[:, H + 1:H + 2, :, :] = zrow
    zcol = jnp.zeros((N, H + 2, 1, Cmid_p), jnp.float32)
    pad_ref[:, :, 0:1, :] = zcol
    pad_ref[:, :, W + 1:W + 2, :] = zcol

    # ---- conv2 (3x3, pad=1) as a single im2col matmul (K = 9*Cmid_p) ---
    xp = pad_ref[...]
    taps = [xp[:, dy:dy + H, dx:dx + W, :].reshape(M, Cmid_p)
            for dy in range(3) for dx in range(3)]
    patches = jnp.concatenate(taps, axis=-1).astype(jnp.bfloat16)
    z = jnp.dot(patches, w2_ref[...],
                preferred_element_type=jnp.float32) + cb2_ref[...]
    z = jnp.maximum(bn_train(z, g2_ref[...], b2_ref[...]), 0.0)

    # ---- conv3 (1x1, x4 expansion) + BN3 --------------------------------
    u = jnp.dot(z.astype(jnp.bfloat16), w3_ref[...],
                preferred_element_type=jnp.float32) + cb3_ref[...]
    u = bn_train(u, g3_ref[...], b3_ref[...])

    # ---- skip path (read from the already-resident input) --------------
    if has_ds:
        skip = jnp.dot(x_bf, wds_ref[...],
                       preferred_element_type=jnp.float32) + cbds_ref[...]
    else:
        skip = x_f32                                          # identity add (f32)

    out_ref[...] = jnp.maximum(u + skip, 0.0).reshape(N, H, W, Cout_p)


def bottleneck_forward(x_nchw, params):
    """Runs the fused bottleneck block.  x_nchw: (N, Cin, H, W) f32."""
    N, Cin, H, W = x_nchw.shape
    Cmid = params["w1"].shape[1]
    Cout = params["w3"].shape[1]
    has_ds = "wds" in params
    if not has_ds:
        assert Cin == Cout, "identity skip requires in_channels == out_channels*4"

    Cin_p = _round_up(Cin, LANE)
    Cmid_p = _round_up(Cmid, LANE)
    Cout_p = _round_up(Cout, LANE)

    # NHWC, channels zero-padded to a lane multiple (lane-dense everywhere).
    x = jnp.transpose(x_nchw, (0, 2, 3, 1)).astype(jnp.float32)
    x = jnp.pad(x, ((0, 0), (0, 0), (0, 0), (0, Cin_p - Cin)))

    def pad_mat(w, r, c):                    # bf16 MXU weight, zero-padded
        out = jnp.zeros((r, c), jnp.bfloat16)
        return out.at[:w.shape[0], :w.shape[1]].set(w.astype(jnp.bfloat16))

    def pad_row(v, c, fill=0.0):             # f32 per-channel vector
        out = jnp.full((1, c), fill, jnp.float32)
        return out.at[0, :v.shape[0]].set(v.astype(jnp.float32))

    w1 = pad_mat(params["w1"], Cin_p, Cmid_p)
    w2 = jnp.zeros((3, 3, Cmid_p, Cmid_p), jnp.bfloat16)
    w2 = w2.at[:, :, :Cmid, :Cmid].set(params["w2"].astype(jnp.bfloat16))
    w2 = w2.reshape(9 * Cmid_p, Cmid_p)      # im2col layout: (dy, dx, cin) on K
    w3 = pad_mat(params["w3"], Cmid_p, Cout_p)

    cb1 = pad_row(params["cb1"], Cmid_p)
    g1 = pad_row(params["g1"], Cmid_p, 1.0)
    b1 = pad_row(params["b1"], Cmid_p)
    cb2 = pad_row(params["cb2"], Cmid_p)
    g2 = pad_row(params["g2"], Cmid_p, 1.0)
    b2 = pad_row(params["b2"], Cmid_p)
    cb3 = pad_row(params["cb3"], Cout_p)
    g3 = pad_row(params["g3"], Cout_p, 1.0)
    b3 = pad_row(params["b3"], Cout_p)

    inputs = [x, w1, cb1, g1, b1, w2, cb2, g2, b2, w3, cb3, g3, b3]
    if has_ds:
        inputs += [pad_mat(params["wds"], Cin_p, Cout_p),
                   pad_row(params["cbds"], Cout_p)]

    def full_spec(a):
        return pl.BlockSpec(a.shape, lambda i, n=a.ndim: (0,) * n)

    M = N * H * W
    flops = 2 * M * (Cin_p * Cmid_p + 9 * Cmid_p * Cmid_p + Cmid_p * Cout_p
                     + (Cin_p * Cout_p if has_ds else 0))
    bytes_accessed = int(sum(a.size * a.dtype.itemsize for a in inputs)
                         + M * Cout_p * 4)

    out = pl.pallas_call(
        functools.partial(_bottleneck_kernel, has_ds),
        out_shape=jax.ShapeDtypeStruct((N, H, W, Cout_p), jnp.float32),
        grid=(1,),
        in_specs=[full_spec(a) for a in inputs],
        out_specs=pl.BlockSpec((N, H, W, Cout_p), lambda i: (0, 0, 0, 0)),
        scratch_shapes=[pltpu.VMEM((N, H + 2, W + 2, Cmid_p), jnp.float32)],
        compiler_params=pltpu.CompilerParams(
            dimension_semantics=("arbitrary",),
            vmem_limit_bytes=64 * 1024 * 1024),
        cost_estimate=pl.CostEstimate(flops=flops,
                                      transcendentals=2 * Cmid_p + Cout_p,
                                      bytes_accessed=bytes_accessed),
    )(*inputs)

    # drop channel padding, back to NCHW
    return jnp.transpose(out[:, :, :, :Cout], (0, 3, 1, 2))


def reference_forward(x_nchw, params):
    """Pure-JAX reference with the same mixed precision (bf16 conv operands,
    f32 accumulation, f32 training-mode BN), for correctness checking."""
    x = jnp.transpose(x_nchw, (0, 2, 3, 1)).astype(jnp.float32)
    dn = ("NHWC", "HWIO", "NHWC")

    def conv(h, w_hwio, b):
        return lax.conv_general_dilated(
            h.astype(jnp.bfloat16), w_hwio.astype(jnp.bfloat16), (1, 1), "SAME",
            dimension_numbers=dn,
            preferred_element_type=jnp.float32) + b.reshape(1, 1, 1, -1)

    def bn(y, g, be):
        m = y.mean(axis=(0, 1, 2))
        v = ((y - m) ** 2).mean(axis=(0, 1, 2))
        return (y - m) * lax.rsqrt(v + EPS) * g.reshape(-1) + be.reshape(-1)

    y = jnp.maximum(bn(conv(x, params["w1"][None, None], params["cb1"]),
                       params["g1"], params["b1"]), 0.0)
    z = jnp.maximum(bn(conv(y, params["w2"], params["cb2"]),
                       params["g2"], params["b2"]), 0.0)
    u = bn(conv(z, params["w3"][None, None], params["cb3"]),
           params["g3"], params["b3"])
    skip = (conv(x, params["wds"][None, None], params["cbds"])
            if "wds" in params else x)
    return jnp.transpose(jnp.maximum(u + skip, 0.0), (0, 3, 1, 2))


def init_params(key, cin, cmid, with_downsample=False):
    cout = 4 * cmid
    ks = jax.random.split(key, 14)
    mk = lambda k, shape, s=0.1: (s * jax.random.normal(k, shape)).astype(jnp.float32)
    p = {
        "w1": mk(ks[0], (cin, cmid)), "cb1": mk(ks[1], (cmid,)),
        "g1": 1.0 + mk(ks[2], (cmid,)), "b1": mk(ks[3], (cmid,), 0.05),
        "w2": mk(ks[4], (3, 3, cmid, cmid)), "cb2": mk(ks[5], (cmid,)),
        "g2": 1.0 + mk(ks[6], (cmid,)), "b2": mk(ks[7], (cmid,), 0.05),
        "w3": mk(ks[8], (cmid, cout)), "cb3": mk(ks[9], (cout,)),
        "g3": 1.0 + mk(ks[10], (cout,)), "b3": mk(ks[11], (cout,), 0.05),
    }
    if with_downsample:
        p["wds"] = mk(ks[12], (cin, cout))
        p["cbds"] = mk(ks[13], (cout,))
    return p


if __name__ == "__main__":
    key = jax.random.PRNGKey(0)
    k1, k2, k3, k4 = jax.random.split(key, 4)

    # Tolerance: kernel and reference both use bf16 MXU operands with f32
    # accumulation, but accumulate in different orders; rare single-ulp bf16
    # re-rounds of intermediates keep the worst-case gap at the few-1e-3 level.
    ATOL = RTOL = 1e-2

    # --- Case 1: identity skip (in_channels == out_channels*4, downsample=None)
    N, Cmid, H, W = 2, 4, 16, 16
    Cin = 4 * Cmid
    x1 = jax.random.normal(k1, (N, Cin, H, W), dtype=jnp.float32)
    p1 = init_params(k2, Cin, Cmid, with_downsample=False)
    out1 = jax.block_until_ready(bottleneck_forward(x1, p1))
    ref1 = jax.block_until_ready(reference_forward(x1, p1))
    assert out1.shape == (N, 4 * Cmid, H, W)
    assert jnp.allclose(out1, ref1, atol=ATOL, rtol=RTOL), \
        f"identity-skip mismatch: max abs err {jnp.max(jnp.abs(out1 - ref1))}"

    # --- Case 2: channel-expanding skip via 1x1 downsample conv
    Cin2 = 8
    x2 = jax.random.normal(k3, (N, Cin2, H, W), dtype=jnp.float32)
    p2 = init_params(k4, Cin2, Cmid, with_downsample=True)
    out2 = jax.block_until_ready(bottleneck_forward(x2, p2))
    ref2 = jax.block_until_ready(reference_forward(x2, p2))
    assert out2.shape == (N, 4 * Cmid, H, W)
    assert jnp.allclose(out2, ref2, atol=ATOL, rtol=RTOL), \
        f"downsample-skip mismatch: max abs err {jnp.max(jnp.abs(out2 - ref2))}"

    print("KERNEL_OK")
</pallas_src>

<mosaic_0001>
module attributes {stable_mosaic.version = 11 : i64} {
  func.func @_bottleneck_kernel(%arg0: i32, %arg1: memref<2x16x16x128xf32, #tpu.memory_space<vmem>>, %arg2: memref<128x128xbf16, #tpu.memory_space<vmem>>, %arg3: memref<1x128xf32, #tpu.memory_space<vmem>>, %arg4: memref<1x128xf32, #tpu.memory_space<vmem>>, %arg5: memref<1x128xf32, #tpu.memory_space<vmem>>, %arg6: memref<1152x128xbf16, #tpu.memory_space<vmem>>, %arg7: memref<1x128xf32, #tpu.memory_space<vmem>>, %arg8: memref<1x128xf32, #tpu.memory_space<vmem>>, %arg9: memref<1x128xf32, #tpu.memory_space<vmem>>, %arg10: memref<128x128xbf16, #tpu.memory_space<vmem>>, %arg11: memref<1x128xf32, #tpu.memory_space<vmem>>, %arg12: memref<1x128xf32, #tpu.memory_space<vmem>>, %arg13: memref<1x128xf32, #tpu.memory_space<vmem>>, %arg14: memref<2x16x16x128xf32, #tpu.memory_space<vmem>>, %arg15: memref<2x18x18x128xf32, #tpu.memory_space<vmem>>) attributes {dimension_semantics = [#tpu.dimension_semantics<arbitrary>], iteration_bounds = array<i64: 1>, scalar_prefetch = 0 : i64, scratch_operands = 1 : i64, tpu.core_type = #tpu.core_type<tc>, window_params = [{pipeline_mode = #tpu.pipeline_mode<synchronous>, transform_indices = @transform_0, window_bounds = array<i64: 2, 16, 16, 128>}, {pipeline_mode = #tpu.pipeline_mode<synchronous>, transform_indices = @transform_1, window_bounds = array<i64: 128, 128>}, {pipeline_mode = #tpu.pipeline_mode<synchronous>, transform_indices = @transform_2, window_bounds = array<i64: 1, 128>}, {pipeline_mode = #tpu.pipeline_mode<synchronous>, transform_indices = @transform_3, window_bounds = array<i64: 1, 128>}, {pipeline_mode = #tpu.pipeline_mode<synchronous>, transform_indices = @transform_4, window_bounds = array<i64: 1, 128>}, {pipeline_mode = #tpu.pipeline_mode<synchronous>, transform_indices = @transform_5, window_bounds = array<i64: 1152, 128>}, {pipeline_mode = #tpu.pipeline_mode<synchronous>, transform_indices = @transform_6, window_bounds = array<i64: 1, 128>}, {pipeline_mode = #tpu.pipeline_mode<synchronous>, transform_indices = @transform_7, window_bounds = array<i64: 1, 128>}, {pipeline_mode = #tpu.pipeline_mode<synchronous>, transform_indices = @transform_8, window_bounds = array<i64: 1, 128>}, {pipeline_mode = #tpu.pipeline_mode<synchronous>, transform_indices = @transform_9, window_bounds = array<i64: 128, 128>}, {pipeline_mode = #tpu.pipeline_mode<synchronous>, transform_indices = @transform_10, window_bounds = array<i64: 1, 128>}, {pipeline_mode = #tpu.pipeline_mode<synchronous>, transform_indices = @transform_11, window_bounds = array<i64: 1, 128>}, {pipeline_mode = #tpu.pipeline_mode<synchronous>, transform_indices = @transform_12, window_bounds = array<i64: 1, 128>}, {pipeline_mode = #tpu.pipeline_mode<synchronous>, transform_indices = @transform_13, window_bounds = array<i64: 2, 16, 16, 128>}]} {
    %c0 = arith.constant 0 : index
    %c0_0 = arith.constant 0 : index
    %c0_1 = arith.constant 0 : index
    %c0_2 = arith.constant 0 : index
    %0 = vector.load %arg1[%c0, %c0_0, %c0_1, %c0_2] : memref<2x16x16x128xf32, #tpu.memory_space<vmem>>, vector<2x16x16x128xf32>
    %1 = vector.shape_cast %0 : vector<2x16x16x128xf32> to vector<512x128xf32>
    %2 = arith.truncf %1 : vector<512x128xf32> to vector<512x128xbf16>
    %c0_3 = arith.constant 0 : index
    %c0_4 = arith.constant 0 : index
    %3 = vector.load %arg2[%c0_3, %c0_4] : memref<128x128xbf16, #tpu.memory_space<vmem>>, vector<128x128xbf16>
    %cst = arith.constant dense<0.000000e+00> : vector<512x128xf32>
    %4 = tpu.matmul %2, %3, %cst {dimension_numbers = #tpu.dot_dimension_numbers<[1], [0], [0], [1], [0, 0, 1, 1], [], []>} : vector<512x128xbf16>, vector<128x128xbf16>, vector<512x128xf32> -> vector<512x128xf32>
    %c0_5 = arith.constant 0 : index
    %c0_6 = arith.constant 0 : index
    %5 = vector.load %arg3[%c0_5, %c0_6] : memref<1x128xf32, #tpu.memory_space<vmem>>, vector<1x128xf32>
    %6 = vector.broadcast %5 : vector<1x128xf32> to vector<512x128xf32>
    %7 = arith.addf %4, %6 : vector<512x128xf32>
    %c0_7 = arith.constant 0 : index
    %c0_8 = arith.constant 0 : index
    %8 = vector.load %arg4[%c0_7, %c0_8] : memref<1x128xf32, #tpu.memory_space<vmem>>, vector<1x128xf32>
    %c0_9 = arith.constant 0 : index
    %c0_10 = arith.constant 0 : index
    %9 = vector.load %arg5[%c0_9, %c0_10] : memref<1x128xf32, #tpu.memory_space<vmem>>, vector<1x128xf32>
    %cst_11 = arith.constant dense<0.000000e+00> : vector<128xf32>
    %10 = vector.multi_reduction <add>, %7, %cst_11 [0] : vector<512x128xf32> to vector<128xf32>
    %11 = vector.shape_cast %10 : vector<128xf32> to vector<1x128xf32>
    %12 = arith.mulf %7, %7 : vector<512x128xf32>
    %cst_12 = arith.constant dense<0.000000e+00> : vector<128xf32>
    %13 = vector.multi_reduction <add>, %12, %cst_12 [0] : vector<512x128xf32> to vector<128xf32>
    %14 = vector.shape_cast %13 : vector<128xf32> to vector<1x128xf32>
    %cst_13 = arith.constant 0.001953125 : f32
    %15 = vector.broadcast %cst_13 : f32 to vector<1x128xf32>
    %16 = arith.mulf %11, %15 : vector<1x128xf32>
    %cst_14 = arith.constant 0.001953125 : f32
    %17 = vector.broadcast %cst_14 : f32 to vector<1x128xf32>
    %18 = arith.mulf %14, %17 : vector<1x128xf32>
    %19 = arith.mulf %16, %16 : vector<1x128xf32>
    %20 = arith.subf %18, %19 : vector<1x128xf32>
    %21 = vector.broadcast %16 : vector<1x128xf32> to vector<512x128xf32>
    %22 = arith.subf %7, %21 : vector<512x128xf32>
    %cst_15 = arith.constant 9.99999974E-6 : f32
    %23 = vector.broadcast %cst_15 : f32 to vector<1x128xf32>
    %24 = arith.addf %20, %23 : vector<1x128xf32>
    %25 = math.rsqrt %24 : vector<1x128xf32>
    %26 = vector.broadcast %25 : vector<1x128xf32> to vector<512x128xf32>
    %27 = arith.mulf %22, %26 : vector<512x128xf32>
    %28 = vector.broadcast %8 : vector<1x128xf32> to vector<512x128xf32>
    %29 = arith.mulf %27, %28 : vector<512x128xf32>
    %30 = vector.broadcast %9 : vector<1x128xf32> to vector<512x128xf32>
    %31 = arith.addf %29, %30 : vector<512x128xf32>
    %cst_16 = arith.constant 0.000000e+00 : f32
    %32 = vector.broadcast %cst_16 : f32 to vector<512x128xf32>
    %33 = arith.maximumf %31, %32 : vector<512x128xf32>
    %34 = vector.shape_cast %33 : vector<512x128xf32> to vector<2x16x16x128xf32>
    %c0_17 = arith.constant 0 : index
    %c1 = arith.constant 1 : index
    %c1_18 = arith.constant 1 : index
    %c0_19 = arith.constant 0 : index
    %35 = vector.load %arg15[%c0_17, %c1, %c1_18, %c0_19] : memref<2x18x18x128xf32, #tpu.memory_space<vmem>>, vector<2x16x16x128xf32>
    tpu.vector_store %arg15[%c0_17, %c1, %c1_18, %c0_19], %34 {strides = array<i32>} : memref<2x18x18x128xf32, #tpu.memory_space<vmem>>, vector<2x16x16x128xf32>,
    %cst_20 = arith.constant 0.000000e+00 : f32
    %36 = vector.broadcast %cst_20 : f32 to vector<2x1x18x128xf32>
    %c0_21 = arith.constant 0 : index
    %c0_22 = arith.constant 0 : index
    %c0_23 = arith.constant 0 : index
    %c0_24 = arith.constant 0 : index
    %37 = vector.load %arg15[%c0_21, %c0_22, %c0_23, %c0_24] : memref<2x18x18x128xf32, #tpu.memory_space<vmem>>, vector<2x1x18x128xf32>
    tpu.vector_store %arg15[%c0_21, %c0_22, %c0_23, %c0_24], %36 {strides = array<i32>} : memref<2x18x18x128xf32, #tpu.memory_space<vmem>>, vector<2x1x18x128xf32>,
    %c0_25 = arith.constant 0 : index
    %c17 = arith.constant 17 : index
    %c0_26 = arith.constant 0 : index
    %c0_27 = arith.constant 0 : index
    %38 = vector.load %arg15[%c0_25, %c17, %c0_26, %c0_27] : memref<2x18x18x128xf32, #tpu.memory_space<vmem>>, vector<2x1x18x128xf32>
    tpu.vector_store %arg15[%c0_25, %c17, %c0_26, %c0_27], %36 {strides = array<i32>} : memref<2x18x18x128xf32, #tpu.memory_space<vmem>>, vector<2x1x18x128xf32>,
    %cst_28 = arith.constant 0.000000e+00 : f32
    %39 = vector.broadcast %cst_28 : f32 to vector<2x18x1x128xf32>
    %c0_29 = arith.constant 0 : index
    %c0_30 = arith.constant 0 : index
    %c0_31 = arith.constant 0 : index
    %c0_32 = arith.constant 0 : index
    %40 = vector.load %arg15[%c0_29, %c0_30, %c0_31, %c0_32] : memref<2x18x18x128xf32, #tpu.memory_space<vmem>>, vector<2x18x1x128xf32>
    tpu.vector_store %arg15[%c0_29, %c0_30, %c0_31, %c0_32], %39 {strides = array<i32>} : memref<2x18x18x128xf32, #tpu.memory_space<vmem>>, vector<2x18x1x128xf32>,
    %c0_33 = arith.constant 0 : index
    %c0_34 = arith.constant 0 : index
    %c17_35 = arith.constant 17 : index
    %c0_36 = arith.constant 0 : index
    %41 = vector.load %arg15[%c0_33, %c0_34, %c17_35, %c0_36] : memref<2x18x18x128xf32, #tpu.memory_space<vmem>>, vector<2x18x1x128xf32>
    tpu.vector_store %arg15[%c0_33, %c0_34, %c17_35, %c0_36], %39 {strides = array<i32>} : memref<2x18x18x128xf32, #tpu.memory_space<vmem>>, vector<2x18x1x128xf32>,
    %c0_37 = arith.constant 0 : index
    %c0_38 = arith.constant 0 : index
    %c0_39 = arith.constant 0 : index
    %c0_40 = arith.constant 0 : index
    %42 = vector.load %arg15[%c0_37, %c0_38, %c0_39, %c0_40] : memref<2x18x18x128xf32, #tpu.memory_space<vmem>>, vector<2x18x18x128xf32>
    %43 = vector.extract_strided_slice %42 {offsets = [0, 0, 0, 0], sizes = [2, 16, 16, 128], strides = [1, 1, 1, 1]} : vector<2x18x18x128xf32> to vector<2x16x16x128xf32>
    %44 = vector.shape_cast %43 : vector<2x16x16x128xf32> to vector<512x128xf32>
    %45 = vector.extract_strided_slice %42 {offsets = [0, 0, 1, 0], sizes = [2, 16, 16, 128], strides = [1, 1, 1, 1]} : vector<2x18x18x128xf32> to vector<2x16x16x128xf32>
    %46 = vector.shape_cast %45 : vector<2x16x16x128xf32> to vector<512x128xf32>
    %47 = vector.extract_strided_slice %42 {offsets = [0, 0, 2, 0], sizes = [2, 16, 16, 128], strides = [1, 1, 1, 1]} : vector<2x18x18x128xf32> to vector<2x16x16x128xf32>
    %48 = vector.shape_cast %47 : vector<2x16x16x128xf32> to vector<512x128xf32>
    %49 = vector.extract_strided_slice %42 {offsets = [0, 1, 0, 0], sizes = [2, 16, 16, 128], strides = [1, 1, 1, 1]} : vector<2x18x18x128xf32> to vector<2x16x16x128xf32>
    %50 = vector.shape_cast %49 : vector<2x16x16x128xf32> to vector<512x128xf32>
    %51 = vector.extract_strided_slice %42 {offsets = [0, 1, 1, 0], sizes = [2, 16, 16, 128], strides = [1, 1, 1, 1]} : vector<2x18x18x128xf32> to vector<2x16x16x128xf32>
    %52 = vector.shape_cast %51 : vector<2x16x16x128xf32> to vector<512x128xf32>
    %53 = vector.extract_strided_slice %42 {offsets = [0, 1, 2, 0], sizes = [2, 16, 16, 128], strides = [1, 1, 1, 1]} : vector<2x18x18x128xf32> to vector<2x16x16x128xf32>
    %54 = vector.shape_cast %53 : vector<2x16x16x128xf32> to vector<512x128xf32>
    %55 = vector.extract_strided_slice %42 {offsets = [0, 2, 0, 0], sizes = [2, 16, 16, 128], strides = [1, 1, 1, 1]} : vector<2x18x18x128xf32> to vector<2x16x16x128xf32>
    %56 = vector.shape_cast %55 : vector<2x16x16x128xf32> to vector<512x128xf32>
    %57 = vector.extract_strided_slice %42 {offsets = [0, 2, 1, 0], sizes = [2, 16, 16, 128], strides = [1, 1, 1, 1]} : vector<2x18x18x128xf32> to vector<2x16x16x128xf32>
    %58 = vector.shape_cast %57 : vector<2x16x16x128xf32> to vector<512x128xf32>
    %59 = vector.extract_strided_slice %42 {offsets = [0, 2, 2, 0], sizes = [2, 16, 16, 128], strides = [1, 1, 1, 1]} : vector<2x18x18x128xf32> to vector<2x16x16x128xf32>
    %60 = vector.shape_cast %59 : vector<2x16x16x128xf32> to vector<512x128xf32>
    %61 = tpu.concatenate %44, %46, %48, %50, %52, %54, %56, %58, %60 in 1 : vector<512x128xf32>, vector<512x128xf32>, vector<512x128xf32>, vector<512x128xf32>, vector<512x128xf32>, vector<512x128xf32>, vector<512x128xf32>, vector<512x128xf32>, vector<512x128xf32> -> vector<512x1152xf32>
    %62 = arith.truncf %61 : vector<512x1152xf32> to vector<512x1152xbf16>
    %c0_41 = arith.constant 0 : index
    %c0_42 = arith.constant 0 : index
    %63 = vector.load %arg6[%c0_41, %c0_42] : memref<1152x128xbf16, #tpu.memory_space<vmem>>, vector<1152x128xbf16>
    %cst_43 = arith.constant dense<0.000000e+00> : vector<512x128xf32>
    %64 = tpu.matmul %62, %63, %cst_43 {dimension_numbers = #tpu.dot_dimension_numbers<[1], [0], [0], [1], [0, 0, 1, 1], [], []>} : vector<512x1152xbf16>, vector<1152x128xbf16>, vector<512x128xf32> -> vector<512x128xf32>
    %c0_44 = arith.constant 0 : index
    %c0_45 = arith.constant 0 : index
    %65 = vector.load %arg7[%c0_44, %c0_45] : memref<1x128xf32, #tpu.memory_space<vmem>>, vector<1x128xf32>
    %66 = vector.broadcast %65 : vector<1x128xf32> to vector<512x128xf32>
    %67 = arith.addf %64, %66 : vector<512x128xf32>
    %c0_46 = arith.constant 0 : index
    %c0_47 = arith.constant 0 : index
    %68 = vector.load %arg8[%c0_46, %c0_47] : memref<1x128xf32, #tpu.memory_space<vmem>>, vector<1x128xf32>
    %c0_48 = arith.constant 0 : index
    %c0_49 = arith.constant 0 : index
    %69 = vector.load %arg9[%c0_48, %c0_49] : memref<1x128xf32, #tpu.memory_space<vmem>>, vector<1x128xf32>
    %cst_50 = arith.constant dense<0.000000e+00> : vector<128xf32>
    %70 = vector.multi_reduction <add>, %67, %cst_50 [0] : vector<512x128xf32> to vector<128xf32>
    %71 = vector.shape_cast %70 : vector<128xf32> to vector<1x128xf32>
    %72 = arith.mulf %67, %67 : vector<512x128xf32>
    %cst_51 = arith.constant dense<0.000000e+00> : vector<128xf32>
    %73 = vector.multi_reduction <add>, %72, %cst_51 [0] : vector<512x128xf32> to vector<128xf32>
    %74 = vector.shape_cast %73 : vector<128xf32> to vector<1x128xf32>
    %cst_52 = arith.constant 0.001953125 : f32
    %75 = vector.broadcast %cst_52 : f32 to vector<1x128xf32>
    %76 = arith.mulf %71, %75 : vector<1x128xf32>
    %cst_53 = arith.constant 0.001953125 : f32
    %77 = vector.broadcast %cst_53 : f32 to vector<1x128xf32>
    %78 = arith.mulf %74, %77 : vector<1x128xf32>
    %79 = arith.mulf %76, %76 : vector<1x128xf32>
    %80 = arith.subf %78, %79 : vector<1x128xf32>
    %81 = vector.broadcast %76 : vector<1x128xf32> to vector<512x128xf32>
    %82 = arith.subf %67, %81 : vector<512x128xf32>
    %cst_54 = arith.constant 9.99999974E-6 : f32
    %83 = vector.broadcast %cst_54 : f32 to vector<1x128xf32>
    %84 = arith.addf %80, %83 : vector<1x128xf32>
    %85 = math.rsqrt %84 : vector<1x128xf32>
    %86 = vector.broadcast %85 : vector<1x128xf32> to vector<512x128xf32>
    %87 = arith.mulf %82, %86 : vector<512x128xf32>
    %88 = vector.broadcast %68 : vector<1x128xf32> to vector<512x128xf32>
    %89 = arith.mulf %87, %88 : vector<512x128xf32>
    %90 = vector.broadcast %69 : vector<1x128xf32> to vector<512x128xf32>
    %91 = arith.addf %89, %90 : vector<512x128xf32>
    %cst_55 = arith.constant 0.000000e+00 : f32
    %92 = vector.broadcast %cst_55 : f32 to vector<512x128xf32>
    %93 = arith.maximumf %91, %92 : vector<512x128xf32>
    %94 = arith.truncf %93 : vector<512x128xf32> to vector<512x128xbf16>
    %c0_56 = arith.constant 0 : index
    %c0_57 = arith.constant 0 : index
    %95 = vector.load %arg10[%c0_56, %c0_57] : memref<128x128xbf16, #tpu.memory_space<vmem>>, vector<128x128xbf16>
    %cst_58 = arith.constant dense<0.000000e+00> : vector<512x128xf32>
    %96 = tpu.matmul %94, %95, %cst_58 {dimension_numbers = #tpu.dot_dimension_numbers<[1], [0], [0], [1], [0, 0, 1, 1], [], []>} : vector<512x128xbf16>, vector<128x128xbf16>, vector<512x128xf32> -> vector<512x128xf32>
    %c0_59 = arith.constant 0 : index
    %c0_60 = arith.constant 0 : index
    %97 = vector.load %arg11[%c0_59, %c0_60] : memref<1x128xf32, #tpu.memory_space<vmem>>, vector<1x128xf32>
    %98 = vector.broadcast %97 : vector<1x128xf32> to vector<512x128xf32>
    %99 = arith.addf %96, %98 : vector<512x128xf32>
    %c0_61 = arith.constant 0 : index
    %c0_62 = arith.constant 0 : index
    %100 = vector.load %arg12[%c0_61, %c0_62] : memref<1x128xf32, #tpu.memory_space<vmem>>, vector<1x128xf32>
    %c0_63 = arith.constant 0 : index
    %c0_64 = arith.constant 0 : index
    %101 = vector.load %arg13[%c0_63, %c0_64] : memref<1x128xf32, #tpu.memory_space<vmem>>, vector<1x128xf32>
    %cst_65 = arith.constant dense<0.000000e+00> : vector<128xf32>
    %102 = vector.multi_reduction <add>, %99, %cst_65 [0] : vector<512x128xf32> to vector<128xf32>
    %103 = vector.shape_cast %102 : vector<128xf32> to vector<1x128xf32>
    %104 = arith.mulf %99, %99 : vector<512x128xf32>
    %cst_66 = arith.constant dense<0.000000e+00> : vector<128xf32>
    %105 = vector.multi_reduction <add>, %104, %cst_66 [0] : vector<512x128xf32> to vector<128xf32>
    %106 = vector.shape_cast %105 : vector<128xf32> to vector<1x128xf32>
    %cst_67 = arith.constant 0.001953125 : f32
    %107 = vector.broadcast %cst_67 : f32 to vector<1x128xf32>
    %108 = arith.mulf %103, %107 : vector<1x128xf32>
    %cst_68 = arith.constant 0.001953125 : f32
    %109 = vector.broadcast %cst_68 : f32 to vector<1x128xf32>
    %110 = arith.mulf %106, %109 : vector<1x128xf32>
    %111 = arith.mulf %108, %108 : vector<1x128xf32>
    %112 = arith.subf %110, %111 : vector<1x128xf32>
    %113 = vector.broadcast %108 : vector<1x128xf32> to vector<512x128xf32>
    %114 = arith.subf %99, %113 : vector<512x128xf32>
    %cst_69 = arith.constant 9.99999974E-6 : f32
    %115 = vector.broadcast %cst_69 : f32 to vector<1x128xf32>
    %116 = arith.addf %112, %115 : vector<1x128xf32>
    %117 = math.rsqrt %116 : vector<1x128xf32>
    %118 = vector.broadcast %117 : vector<1x128xf32> to vector<512x128xf32>
    %119 = arith.mulf %114, %118 : vector<512x128xf32>
    %120 = vector.broadcast %100 : vector<1x128xf32> to vector<512x128xf32>
    %121 = arith.mulf %119, %120 : vector<512x128xf32>
    %122 = vector.broadcast %101 : vector<1x128xf32> to vector<512x128xf32>
    %123 = arith.addf %121, %122 : vector<512x128xf32>
    %124 = arith.addf %123, %1 : vector<512x128xf32>
    %cst_70 = arith.constant 0.000000e+00 : f32
    %125 = vector.broadcast %cst_70 : f32 to vector<512x128xf32>
    %126 = arith.maximumf %124, %125 : vector<512x128xf32>
    %127 = vector.shape_cast %126 : vector<512x128xf32> to vector<2x16x16x128xf32>
    %c0_71 = arith.constant 0 : index
    %c0_72 = arith.constant 0 : index
    %c0_73 = arith.constant 0 : index
    %c0_74 = arith.constant 0 : index
    %128 = vector.load %arg14[%c0_71, %c0_72, %c0_73, %c0_74] : memref<2x16x16x128xf32, #tpu.memory_space<vmem>>, vector<2x16x16x128xf32>
    tpu.vector_store %arg14[%c0_71, %c0_72, %c0_73, %c0_74], %127 {strides = array<i32>} : memref<2x16x16x128xf32, #tpu.memory_space<vmem>>, vector<2x16x16x128xf32>,
    return
  }
  func.func @transform_0(%arg0: i32) -> (i32, i32, i32, i32) {
    %c0_i32 = arith.constant 0 : i32
    %c0_i32_0 = arith.constant 0 : i32
    %c0_i32_1 = arith.constant 0 : i32
    %c0_i32_2 = arith.constant 0 : i32
    %c0_i32_3 = arith.constant 0 : i32
    return %c0_i32, %c0_i32_0, %c0_i32_1, %c0_i32_2 : i32, i32, i32, i32
  }
  func.func @transform_1(%arg0: i32) -> (i32, i32) {
    %c0_i32 = arith.constant 0 : i32
    %c0_i32_0 = arith.constant 0 : i32
    %c0_i32_1 = arith.constant 0 : i32
    return %c0_i32, %c0_i32_0 : i32, i32
  }
  func.func @transform_2(%arg0: i32) -> (i32, i32) {
    %c0_i32 = arith.constant 0 : i32
    %c0_i32_0 = arith.constant 0 : i32
    %c0_i32_1 = arith.constant 0 : i32
    return %c0_i32, %c0_i32_0 : i32, i32
  }
  func.func @transform_3(%arg0: i32) -> (i32, i32) {
    %c0_i32 = arith.constant 0 : i32
    %c0_i32_0 = arith.constant 0 : i32
    %c0_i32_1 = arith.constant 0 : i32
    return %c0_i32, %c0_i32_0 : i32, i32
  }
  func.func @transform_4(%arg0: i32) -> (i32, i32) {
    %c0_i32 = arith.constant 0 : i32
    %c0_i32_0 = arith.constant 0 : i32
    %c0_i32_1 = arith.constant 0 : i32
    return %c0_i32, %c0_i32_0 : i32, i32
  }
  func.func @transform_5(%arg0: i32) -> (i32, i32) {
    %c0_i32 = arith.constant 0 : i32
    %c0_i32_0 = arith.constant 0 : i32
    %c0_i32_1 = arith.constant 0 : i32
    return %c0_i32, %c0_i32_0 : i32, i32
  }
  func.func @transform_6(%arg0: i32) -> (i32, i32) {
    %c0_i32 = arith.constant 0 : i32
    %c0_i32_0 = arith.constant 0 : i32
    %c0_i32_1 = arith.constant 0 : i32
    return %c0_i32, %c0_i32_0 : i32, i32
  }
  func.func @transform_7(%arg0: i32) -> (i32, i32) {
    %c0_i32 = arith.constant 0 : i32
    %c0_i32_0 = arith.constant 0 : i32
    %c0_i32_1 = arith.constant 0 : i32
    return %c0_i32, %c0_i32_0 : i32, i32
  }
  func.func @transform_8(%arg0: i32) -> (i32, i32) {
    %c0_i32 = arith.constant 0 : i32
    %c0_i32_0 = arith.constant 0 : i32
    %c0_i32_1 = arith.constant 0 : i32
    return %c0_i32, %c0_i32_0 : i32, i32
  }
  func.func @transform_9(%arg0: i32) -> (i32, i32) {
    %c0_i32 = arith.constant 0 : i32
    %c0_i32_0 = arith.constant 0 : i32
    %c0_i32_1 = arith.constant 0 : i32
    return %c0_i32, %c0_i32_0 : i32, i32
  }
  func.func @transform_10(%arg0: i32) -> (i32, i32) {
    %c0_i32 = arith.constant 0 : i32
    %c0_i32_0 = arith.constant 0 : i32
    %c0_i32_1 = arith.constant 0 : i32
    return %c0_i32, %c0_i32_0 : i32, i32
  }
  func.func @transform_11(%arg0: i32) -> (i32, i32) {
    %c0_i32 = arith.constant 0 : i32
    %c0_i32_0 = arith.constant 0 : i32
    %c0_i32_1 = arith.constant 0 : i32
    return %c0_i32, %c0_i32_0 : i32, i32
  }
  func.func @transform_12(%arg0: i32) -> (i32, i32) {
    %c0_i32 = arith.constant 0 : i32
    %c0_i32_0 = arith.constant 0 : i32
    %c0_i32_1 = arith.constant 0 : i32
    return %c0_i32, %c0_i32_0 : i32, i32
  }
  func.func @transform_13(%arg0: i32) -> (i32, i32, i32, i32) {
    %c0_i32 = arith.constant 0 : i32
    %c0_i32_0 = arith.constant 0 : i32
    %c0_i32_1 = arith.constant 0 : i32
    %c0_i32_2 = arith.constant 0 : i32
    %c0_i32_3 = arith.constant 0 : i32
    return %c0_i32, %c0_i32_0, %c0_i32_1, %c0_i32_2 : i32, i32, i32, i32
  }
}

</mosaic_0001>

<llo_original>
// kernel: tpu_custom_call.1
$region0: #{tpu_custom_call.1}
  #allocation0 [shape = 'u32[]', space=smem, size = 0x4, offset = 0x4, fixed_abs, tag = 'smem constant byte address 0x4 - core index']
  #allocation1 [shape = 'u32[144,128]{1,0:T(1,128)}', space=vmem, size = 0x12000, scoped, tag = 'internal scratch']
  #allocation2 [shape = 'f32[2,18,18,128]{3,2,1,0:T(8,128)}', space=vmem, size = 0x6c000, scoped, tag = 'scratch operand']
  %s0 = inlined_call_operand.hbm [shape: f32[2,16,16,128], index: 0, kind: input, shape index: {}]
  %s1 = inlined_call_operand.hbm [shape: bf16[128,128], index: 1, kind: input, shape index: {}]
  %s2 = inlined_call_operand.vmem [shape: f32[1,128], index: 2, kind: input, shape index: {}]
  %s3 = inlined_call_operand.vmem [shape: f32[1,128], index: 3, kind: input, shape index: {}]
  %s4 = inlined_call_operand.vmem [shape: f32[1,128], index: 4, kind: input, shape index: {}]
  %s5 = inlined_call_operand.hbm [shape: bf16[1152,128], index: 5, kind: input, shape index: {}]
  %s6 = inlined_call_operand.vmem [shape: f32[1,128], index: 6, kind: input, shape index: {}]
  %s7 = inlined_call_operand.vmem [shape: f32[1,128], index: 7, kind: input, shape index: {}]
  %s8 = inlined_call_operand.vmem [shape: f32[1,128], index: 8, kind: input, shape index: {}]
  %s9 = inlined_call_operand.hbm [shape: bf16[128,128], index: 9, kind: input, shape index: {}]
  %s10 = inlined_call_operand.vmem [shape: f32[1,128], index: 10, kind: input, shape index: {}]
  %s11 = inlined_call_operand.vmem [shape: f32[1,128], index: 11, kind: input, shape index: {}]
  %s12 = inlined_call_operand.vmem [shape: f32[1,128], index: 12, kind: input, shape index: {}]
  %s13 = inlined_call_operand.hbm [shape: f32[2,16,16,128], index: 13, kind: output, shape index: {}]
  %s14 = sld [smem:[#allocation0]]
  $region78: #{tpu_custom_call.1} parent=0
    _
  %s16 = ssub.s32 1, %s14
  %s17 = scalar_select 0, %s16, %s14
  $region1: #{tpu_custom_call.1} parent=0
    #allocation3 [shape = 'u8[262144]{0}', space=vmem, size = 0x40000, scoped, tag = 'input window, operand 0, single buffered']
    #allocation4 [shape = 's32[1]{0}', space=sflag, size = 0x4, scoped, tag = 'scoped memory for tpu_custom_call.1']
    #allocation5 [shape = 's32[1]{0}', space=sflag, size = 0x4, scoped, tag = 'scoped memory for tpu_custom_call.1']
    #allocation6 [shape = 'u8[32768]{0}', space=vmem, size = 0x8000, scoped, tag = 'input window, operand 1, single buffered']
    #allocation7 [shape = 's32[1]{0}', space=sflag, size = 0x4, scoped, tag = 'scoped memory for tpu_custom_call.1']
    #allocation8 [shape = 'u8[294912]{0}', space=vmem, size = 0x48000, scoped, tag = 'input window, operand 5, single buffered']
    #allocation9 [shape = 'u8[32768]{0}', space=vmem, size = 0x8000, scoped, tag = 'input window, operand 9, single buffered']
    #allocation10 [shape = 's32[1]{0}', space=sflag, size = 0x4, scoped, tag = 'scoped memory for tpu_custom_call.1']
    #allocation11 [shape = 'u8[262144]{0}', space=vmem, size = 0x40000, scoped, tag = 'output window, operand 0, single buffered']
    %18 = vsyncpa [#allocation4], 0
    %19 = vsyncpa [#allocation7], 0
    %20 = vsyncpa [#allocation10], 0
    %21 = vsyncpa [#allocation5], 0
    // Predicated region
    $region2: #{tpu_custom_call.1} parent=1 // pred_check
      _
    $region3: #{tpu_custom_call.1} parent=1 // pred_check_branch
      %23 = sbr.rel (0) target = $region5
    $region4: #{tpu_custom_call.1} parent=1 // pred_region
      %s25 = ssub.s32 8192, 8192
      %26 = vsyncadd [#allocation4], %s25
      %s27 = sshll.u32 [#allocation3], 4
      %s28 = int_to_ptr.vmem [resolvable:$true] %s27
      %33 = dma.hbm_to_vmem [thread:$0]  %s0, 8192, %s28, [#allocation4], 128, 128, 8
    $region5: #{tpu_custom_call.1} parent=1 // pred_fallthru
      _
    // Predicated region
    $region6: #{tpu_custom_call.1} parent=1 // pred_check
      _
    $region7: #{tpu_custom_call.1} parent=1 // pred_check_branch
      %35 = sbr.rel (0) target = $region9
    $region8: #{tpu_custom_call.1} parent=1 // pred_region
      %s37 = ssub.s32 1024, 1024
      %38 = vsyncadd [#allocation7], %s37
      %s39 = sshll.u32 [#allocation6], 4
      %s40 = int_to_ptr.vmem [resolvable:$true] %s39
      %45 = dma.hbm_to_vmem [thread:$0]  %s1, 1024, %s40, [#allocation7], 64, 64, 4
    $region9: #{tpu_custom_call.1} parent=1 // pred_fallthru
      _
    // Predicated region
    $region10: #{tpu_custom_call.1} parent=1 // pred_check
      _
    $region11: #{tpu_custom_call.1} parent=1 // pred_check_branch
      %47 = sbr.rel (0) target = $region13
    $region12: #{tpu_custom_call.1} parent=1 // pred_region
      _
    $region13: #{tpu_custom_call.1} parent=1 // pred_fallthru
      _
    // Predicated region
    $region14: #{tpu_custom_call.1} parent=1 // pred_check
      _
    $region15: #{tpu_custom_call.1} parent=1 // pred_check_branch
      %49 = sbr.rel (0) target = $region17
    $region16: #{tpu_custom_call.1} parent=1 // pred_region
      _
    $region17: #{tpu_custom_call.1} parent=1 // pred_fallthru
      _
    // Predicated region
    $region18: #{tpu_custom_call.1} parent=1 // pred_check
      _
    $region19: #{tpu_custom_call.1} parent=1 // pred_check_branch
      %51 = sbr.rel (0) target = $region21
    $region20: #{tpu_custom_call.1} parent=1 // pred_region
      _
    $region21: #{tpu_custom_call.1} parent=1 // pred_fallthru
      _
    // Predicated region
    $region22: #{tpu_custom_call.1} parent=1 // pred_check
      _
    $region23: #{tpu_custom_call.1} parent=1 // pred_check_branch
      %53 = sbr.rel (0) target = $region25
    $region24: #{tpu_custom_call.1} parent=1 // pred_region
      %s55 = ssub.s32 9216, 9216
      %56 = vsyncadd [#allocation7], %s55
      %s57 = sshll.u32 [#allocation8], 4
      %s58 = int_to_ptr.vmem [resolvable:$true] %s57
      %63 = dma.hbm_to_vmem [thread:$0]  %s5, 9216, %s58, [#allocation7], 64, 64, 4
    $region25: #{tpu_custom_call.1} parent=1 // pred_fallthru
      _
    // Predicated region
    $region26: #{tpu_custom_call.1} parent=1 // pred_check
      _
    $region27: #{tpu_custom_call.1} parent=1 // pred_check_branch
      %65 = sbr.rel (0) target = $region29
    $region28: #{tpu_custom_call.1} parent=1 // pred_region
      _
    $region29: #{tpu_custom_call.1} parent=1 // pred_fallthru
      _
    // Predicated region
    $region30: #{tpu_custom_call.1} parent=1 // pred_check
      _
    $region31: #{tpu_custom_call.1} parent=1 // pred_check_branch
      %67 = sbr.rel (0) target = $region33
    $region32: #{tpu_custom_call.1} parent=1 // pred_region
      _
    $region33: #{tpu_custom_call.1} parent=1 // pred_fallthru
      _
    // Predicated region
    $region34: #{tpu_custom_call.1} parent=1 // pred_check
      _
    $region35: #{tpu_custom_call.1} parent=1 // pred_check_branch
      %69 = sbr.rel (0) target = $region37
    $region36: #{tpu_custom_call.1} parent=1 // pred_region
      _
    $region37: #{tpu_custom_call.1} parent=1 // pred_fallthru
      _
    // Predicated region
    $region38: #{tpu_custom_call.1} parent=1 // pred_check
      _
    $region39: #{tpu_custom_call.1} parent=1 // pred_check_branch
      %71 = sbr.rel (0) target = $region41
    $region40: #{tpu_custom_call.1} parent=1 // pred_region
      %s73 = ssub.s32 1024, 1024
      %74 = vsyncadd [#allocation10], %s73
      %s75 = sshll.u32 [#allocation9], 4
      %s76 = int_to_ptr.vmem [resolvable:$true] %s75
      %81 = dma.hbm_to_vmem [thread:$0]  %s9, 1024, %s76, [#allocation10], 64, 64, 4
    $region41: #{tpu_custom_call.1} parent=1 // pred_fallthru
      _
    // Predicated region
    $region42: #{tpu_custom_call.1} parent=1 // pred_check
      _
    $region43: #{tpu_custom_call.1} parent=1 // pred_check_branch
      %83 = sbr.rel (0) target = $region45
    $region44: #{tpu_custom_call.1} parent=1 // pred_region
      _
    $region45: #{tpu_custom_call.1} parent=1 // pred_fallthru
      _
    // Predicated region
    $region46: #{tpu_custom_call.1} parent=1 // pred_check
      _
    $region47: #{tpu_custom_call.1} parent=1 // pred_check_branch
      %85 = sbr.rel (0) target = $region49
    $region48: #{tpu_custom_call.1} parent=1 // pred_region
      _
    $region49: #{tpu_custom_call.1} parent=1 // pred_fallthru
      _
    // Predicated region
    $region50: #{tpu_custom_call.1} parent=1 // pred_check
      _
    $region51: #{tpu_custom_call.1} parent=1 // pred_check_branch
      %87 = sbr.rel (0) target = $region53
    $region52: #{tpu_custom_call.1} parent=1 // pred_region
      _
    $region53: #{tpu_custom_call.1} parent=1 // pred_fallthru
      _
    // Predicated region
    $region54: #{tpu_custom_call.1} parent=1 // pred_check
      _
    $region55: #{tpu_custom_call.1} parent=1 // pred_check_branch
      %89 = sbr.rel (0) target = $region57
    $region56: #{tpu_custom_call.1} parent=1 // pred_region
      %90 = dma.done [#allocation4], 8192
    $region57: #{tpu_custom_call.1} parent=1 // pred_fallthru
      _
    // Predicated region
    $region58: #{tpu_custom_call.1} parent=1 // pred_check
      _
    $region59: #{tpu_custom_call.1} parent=1 // pred_check_branch
      %92 = sbr.rel (0) target = $region61
    $region60: #{tpu_custom_call.1} parent=1 // pred_region
      %93 = dma.done [#allocation7], 1024
    $region61: #{tpu_custom_call.1} parent=1 // pred_fallthru
      _
    // Predicated region
    $region62: #{tpu_custom_call.1} parent=1 // pred_check
      _
    $region63: #{tpu_custom_call.1} parent=1 // pred_check_branch
      %95 = sbr.rel (0) target = $region65
    $region64: #{tpu_custom_call.1} parent=1 // pred_region
      %96 = dma.done [#allocation7], 9216
    $region65: #{tpu_custom_call.1} parent=1 // pred_fallthru
      _
    // Predicated region
    $region66: #{tpu_custom_call.1} parent=1 // pred_check
      _
    $region67: #{tpu_custom_call.1} parent=1 // pred_check_branch
      %98 = sbr.rel (0) target = $region69
    $region68: #{tpu_custom_call.1} parent=1 // pred_region
      %99 = dma.done [#allocation10], 1024
    $region69: #{tpu_custom_call.1} parent=1 // pred_fallthru
      _
    %v101 = vld [vmem:[#allocation3] sm:$0xff]
    %v102 = vld [vmem:[#allocation3 + $0x8] sm:$0xff]
    %v103 = vld [vmem:[#allocation3 + $0x10] sm:$0xff]
    %v104 = vld [vmem:[#allocation3 + $0x18] sm:$0xff]
    %v105 = vld [vmem:[#allocation3 + $0x20] sm:$0xff]
    %v106 = vld [vmem:[#allocation3 + $0x28] sm:$0xff]
    %v107 = vld [vmem:[#allocation3 + $0x30] sm:$0xff]
    %v108 = vld [vmem:[#allocation3 + $0x38] sm:$0xff]
    %v109 = vld [vmem:[#allocation3 + $0x40] sm:$0xff]
    %v110 = vld [vmem:[#allocation3 + $0x48] sm:$0xff]
    %v111 = vld [vmem:[#allocation3 + $0x50] sm:$0xff]
    %v112 = vld [vmem:[#allocation3 + $0x58] sm:$0xff]
    %v113 = vld [vmem:[#allocation3 + $0x60] sm:$0xff]
    %v114 = vld [vmem:[#allocation3 + $0x68] sm:$0xff]
    %v115 = vld [vmem:[#allocation3 + $0x70] sm:$0xff]
    %v116 = vld [vmem:[#allocation3 + $0x78] sm:$0xff]
    %v117 = vld [vmem:[#allocation3 + $0x80] sm:$0xff]
    %v118 = vld [vmem:[#allocation3 + $0x88] sm:$0xff]
    %v119 = vld [vmem:[#allocation3 + $0x90] sm:$0xff]
    %v120 = vld [vmem:[#allocation3 + $0x98] sm:$0xff]
    %v121 = vld [vmem:[#allocation3 + $0xa0] sm:$0xff]
    %v122 = vld [vmem:[#allocation3 + $0xa8] sm:$0xff]
    %v123 = vld [vmem:[#allocation3 + $0xb0] sm:$0xff]
    %v124 = vld [vmem:[#allocation3 + $0xb8] sm:$0xff]
    %v125 = vld [vmem:[#allocation3 + $0xc0] sm:$0xff]
    %v126 = vld [vmem:[#allocation3 + $0xc8] sm:$0xff]
    %v127 = vld [vmem:[#allocation3 + $0xd0] sm:$0xff]
    %v128 = vld [vmem:[#allocation3 + $0xd8] sm:$0xff]
    %v129 = vld [vmem:[#allocation3 + $0xe0] sm:$0xff]
    %v130 = vld [vmem:[#allocation3 + $0xe8] sm:$0xff]
    %v131 = vld [vmem:[#allocation3 + $0xf0] sm:$0xff]
    %v132 = vld [vmem:[#allocation3 + $0xf8] sm:$0xff]
    %v133 = vld [vmem:[#allocation3 + $0x100] sm:$0xff]
    %v134 = vld [vmem:[#allocation3 + $0x108] sm:$0xff]
    %v135 = vld [vmem:[#allocation3 + $0x110] sm:$0xff]
    %v136 = vld [vmem:[#allocation3 + $0x118] sm:$0xff]
    %v137 = vld [vmem:[#allocation3 + $0x120] sm:$0xff]
    %v138 = vld [vmem:[#allocation3 + $0x128] sm:$0xff]
    %v139 = vld [vmem:[#allocation3 + $0x130] sm:$0xff]
    %v140 = vld [vmem:[#allocation3 + $0x138] sm:$0xff]
    %v141 = vld [vmem:[#allocation3 + $0x140] sm:$0xff]
    %v142 = vld [vmem:[#allocation3 + $0x148] sm:$0xff]
    %v143 = vld [vmem:[#allocation3 + $0x150] sm:$0xff]
    %v144 = vld [vmem:[#allocation3 + $0x158] sm:$0xff]
    %v145 = vld [vmem:[#allocation3 + $0x160] sm:$0xff]
    %v146 = vld [vmem:[#allocation3 + $0x168] sm:$0xff]
    %v147 = vld [vmem:[#allocation3 + $0x170] sm:$0xff]
    %v148 = vld [vmem:[#allocation3 + $0x178] sm:$0xff]
    %v149 = vld [vmem:[#allocation3 + $0x180] sm:$0xff]
    %v150 = vld [vmem:[#allocation3 + $0x188] sm:$0xff]
    %v151 = vld [vmem:[#allocation3 + $0x190] sm:$0xff]
    %v152 = vld [vmem:[#allocation3 + $0x198] sm:$0xff]
    %v153 = vld [vmem:[#allocation3 + $0x1a0] sm:$0xff]
    %v154 = vld [vmem:[#allocation3 + $0x1a8] sm:$0xff]
    %v155 = vld [vmem:[#allocation3 + $0x1b0] sm:$0xff]
    %v156 = vld [vmem:[#allocation3 + $0x1b8] sm:$0xff]
    %v157 = vld [vmem:[#allocation3 + $0x1c0] sm:$0xff]
    %v158 = vld [vmem:[#allocation3 + $0x1c8] sm:$0xff]
    %v159 = vld [vmem:[#allocation3 + $0x1d0] sm:$0xff]
    %v160 = vld [vmem:[#allocation3 + $0x1d8] sm:$0xff]
    %v161 = vld [vmem:[#allocation3 + $0x1e0] sm:$0xff]
    %v162 = vld [vmem:[#allocation3 + $0x1e8] sm:$0xff]
    %v163 = vld [vmem:[#allocation3 + $0x1f0] sm:$0xff]
    %v164 = vld [vmem:[#allocation3 + $0x1f8] sm:$0xff]
    %v165 = vpack.c.bf16 %v102, %v101
    %v166 = vpack.c.bf16 %v104, %v103
    %v167 = vpack.c.bf16 %v106, %v105
    %v168 = vpack.c.bf16 %v108, %v107
    %v169 = vpack.c.bf16 %v110, %v109
    %v170 = vpack.c.bf16 %v112, %v111
    %v171 = vpack.c.bf16 %v114, %v113
    %v172 = vpack.c.bf16 %v116, %v115
    %v173 = vpack.c.bf16 %v118, %v117
    %v174 = vpack.c.bf16 %v120, %v119
    %v175 = vpack.c.bf16 %v122, %v121
    %v176 = vpack.c.bf16 %v124, %v123
    %v177 = vpack.c.bf16 %v126, %v125
    %v178 = vpack.c.bf16 %v128, %v127
    %v179 = vpack.c.bf16 %v130, %v129
    %v180 = vpack.c.bf16 %v132, %v131
    %v181 = vpack.c.bf16 %v134, %v133
    %v182 = vpack.c.bf16 %v136, %v135
    %v183 = vpack.c.bf16 %v138, %v137
    %v184 = vpack.c.bf16 %v140, %v139
    %v185 = vpack.c.bf16 %v142, %v141
    %v186 = vpack.c.bf16 %v144, %v143
    %v187 = vpack.c.bf16 %v146, %v145
    %v188 = vpack.c.bf16 %v148, %v147
    %v189 = vpack.c.bf16 %v150, %v149
    %v190 = vpack.c.bf16 %v152, %v151
    %v191 = vpack.c.bf16 %v154, %v153
    %v192 = vpack.c.bf16 %v156, %v155
    %v193 = vpack.c.bf16 %v158, %v157
    %v194 = vpack.c.bf16 %v160, %v159
    %v195 = vpack.c.bf16 %v162, %v161
    %v196 = vpack.c.bf16 %v164, %v163
    %v197 = vld [vmem:[#allocation6] sm:$0xf]
    %v198 = vld [vmem:[#allocation6 + $0x4] sm:$0xf]
    %v199 = vld [vmem:[#allocation6 + $0x8] sm:$0xf]
    %v200 = vld [vmem:[#allocation6 + $0xc] sm:$0xf]
    %v201 = vld [vmem:[#allocation6 + $0x10] sm:$0xf]
    %v202 = vld [vmem:[#allocation6 + $0x14] sm:$0xf]
    %v203 = vld [vmem:[#allocation6 + $0x18] sm:$0xf]
    %v204 = vld [vmem:[#allocation6 + $0x1c] sm:$0xf]
    %v205 = vld [vmem:[#allocation6 + $0x20] sm:$0xf]
    %v206 = vld [vmem:[#allocation6 + $0x24] sm:$0xf]
    %v207 = vld [vmem:[#allocation6 + $0x28] sm:$0xf]
    %v208 = vld [vmem:[#allocation6 + $0x2c] sm:$0xf]
    %v209 = vld [vmem:[#allocation6 + $0x30] sm:$0xf]
    %v210 = vld [vmem:[#allocation6 + $0x34] sm:$0xf]
    %v211 = vld [vmem:[#allocation6 + $0x38] sm:$0xf]
    %v212 = vld [vmem:[#allocation6 + $0x3c] sm:$0xf]
    %v213 = vld [vmem:[%s2] sm:$0x1]
    %v215 = vlaneseq
    %v216 = vshrl.u32 %v215, 7
    %v217 = vsub.s32 0, %v216
    %v218 = vrot.slane %v213, %v217
    %v236 = vunpack.c.l.b16 %v197
    %v237 = vunpack.c.l.b16 %v198
    %v238 = vunpack.c.l.b16 %v199
    %v239 = vunpack.c.l.b16 %v200
    %v240 = vunpack.c.l.b16 %v201
    %v241 = vunpack.c.l.b16 %v202
    %v242 = vunpack.c.l.b16 %v203
    %v243 = vunpack.c.l.b16 %v204
    %v244 = vunpack.c.l.b16 %v205
    %v245 = vunpack.c.l.b16 %v206
    %v246 = vunpack.c.l.b16 %v207
    %v247 = vunpack.c.l.b16 %v208
    %v248 = vunpack.c.l.b16 %v209
    %v249 = vunpack.c.l.b16 %v210
    %v250 = vunpack.c.l.b16 %v211
    %v251 = vunpack.c.l.b16 %v212
    %v252 = vpack.c.b16 %v237, %v236
    %v253 = vpack.c.b16 %v239, %v238
    %v254 = vpack.c.b16 %v241, %v240
    %v255 = vpack.c.b16 %v243, %v242
    %v256 = vpack.c.b16 %v245, %v244
    %v257 = vpack.c.b16 %v247, %v246
    %v258 = vpack.c.b16 %v249, %v248
    %v259 = vpack.c.b16 %v251, %v250
    %268 = vmatprep.subr.bf16.mxu0 0
    %269 = vmatpush1.bf16.msra.mxu0 %v259
    %270 = vmatprep.subr.bf16.mxu0 0
    %271 = vmatpush1.bf16.msra.mxu0 %v258
    %272 = vmatprep.subr.bf16.mxu0 0
    %273 = vmatpush1.bf16.msra.mxu0 %v257
    %274 = vmatprep.subr.bf16.mxu0 0
    %275 = vmatpush1.bf16.msra.mxu0 %v256
    %276 = vmatprep.subr.bf16.mxu0 0
    %277 = vmatpush1.bf16.msra.mxu0 %v255
    %278 = vmatprep.subr.bf16.mxu0 0
    %279 = vmatpush1.bf16.msra.mxu0 %v254
    %280 = vmatprep.subr.bf16.mxu0 0
    %281 = vmatpush1.bf16.msra.mxu0 %v253
    %282 = vmatprep.subr.bf16.mxu0 0
    %283 = vmatpush1.bf16.msra.mxu0 %v252
    %284 = vmatprep.subr.bf16.mxu0 0
    %285 = vmatpush2.bf16.msra.mxu0 0
    %286 = vmatprep.subr.bf16.mxu0 0
    %287 = vmatpush2.bf16.msra.mxu0 0
    %288 = vmatprep.subr.bf16.mxu0 0
    %289 = vmatpush2.bf16.msra.mxu0 0
    %290 = vmatprep.subr.bf16.mxu0 0
    %291 = vmatpush2.bf16.msra.mxu0 0
    %292 = vmatprep.subr.bf16.mxu0 0
    %293 = vmatpush2.bf16.msra.mxu0 0
    %294 = vmatprep.subr.bf16.mxu0 0
    %295 = vmatpush2.bf16.msra.mxu0 0
    %296 = vmatprep.subr.bf16.mxu0 0
    %297 = vmatpush2.bf16.msra.mxu0 0
    %298 = vmatprep.subr.bf16.mxu0 0
    %299 = vmatpush2.bf16.msra.mxu0 0
    %300 = vmatprep.mubr.bf16.mxu0 0
    %301 = vmatmul.mubr.bf16.gmra.mxu0 %v165
    %v302 = vpop.f32.mrf.mxu0
    %v303 = vadd.f32 %v218, %v302
    %v304 = vpop.f32.mrf.mxu0
    %v305 = vpop.f32.mrf.mxu0
    %v306 = vadd.f32 %v218, %v305
    %v307 = vpop.f32.mrf.mxu0
    %308 = vmatprep.mubr.bf16.mxu0 0
    %309 = vmatmul.mubr.bf16.gmra.mxu0 %v166
    %v310 = vpop.f32.mrf.mxu0
    %v311 = vadd.f32 %v218, %v310
    %v312 = vpop.f32.mrf.mxu0
    %v313 = vpop.f32.mrf.mxu0
    %v314 = vadd.f32 %v218, %v313
    %v315 = vpop.f32.mrf.mxu0
    %316 = vmatprep.mubr.bf16.mxu0 0
    %317 = vmatmul.mubr.bf16.gmra.mxu0 %v167
    %v318 = vpop.f32.mrf.mxu0
    %v319 = vadd.f32 %v218, %v318
    %v320 = vpop.f32.mrf.mxu0
    %v321 = vpop.f32.mrf.mxu0
    %v322 = vadd.f32 %v218, %v321
    %v323 = vpop.f32.mrf.mxu0
    %324 = vmatprep.mubr.bf16.mxu0 0
    %325 = vmatmul.mubr.bf16.gmra.mxu0 %v168
    %v326 = vpop.f32.mrf.mxu0
    %v327 = vadd.f32 %v218, %v326
    %v328 = vpop.f32.mrf.mxu0
    %v329 = vpop.f32.mrf.mxu0
    %v330 = vadd.f32 %v218, %v329
    %v331 = vpop.f32.mrf.mxu0
    %332 = vmatprep.mubr.bf16.mxu0 0
    %333 = vmatmul.mubr.bf16.gmra.mxu0 %v169
    %v334 = vpop.f32.mrf.mxu0
    %v335 = vadd.f32 %v218, %v334
    %v336 = vpop.f32.mrf.mxu0
    %v337 = vpop.f32.mrf.mxu0
    %v338 = vadd.f32 %v218, %v337
    %v339 = vpop.f32.mrf.mxu0
    %340 = vmatprep.mubr.bf16.mxu0 0
    %341 = vmatmul.mubr.bf16.gmra.mxu0 %v170
    %v342 = vpop.f32.mrf.mxu0
    %v343 = vadd.f32 %v218, %v342
    %v344 = vpop.f32.mrf.mxu0
    %v345 = vpop.f32.mrf.mxu0
    %v346 = vadd.f32 %v218, %v345
    %v347 = vpop.f32.mrf.mxu0
    %348 = vmatprep.mubr.bf16.mxu0 0
    %349 = vmatmul.mubr.bf16.gmra.mxu0 %v171
    %v350 = vpop.f32.mrf.mxu0
    %v351 = vadd.f32 %v218, %v350
    %v352 = vpop.f32.mrf.mxu0
    %v353 = vpop.f32.mrf.mxu0
    %v354 = vadd.f32 %v218, %v353
    %v355 = vpop.f32.mrf.mxu0
    %356 = vmatprep.mubr.bf16.mxu0 0
    %357 = vmatmul.mubr.bf16.gmra.mxu0 %v172
    %v358 = vpop.f32.mrf.mxu0
    %v359 = vadd.f32 %v218, %v358
    %v360 = vpop.f32.mrf.mxu0
    %v361 = vpop.f32.mrf.mxu0
    %v362 = vadd.f32 %v218, %v361
    %v363 = vpop.f32.mrf.mxu0
    %364 = vmatprep.mubr.bf16.mxu0 0
    %365 = vmatmul.mubr.bf16.gmra.mxu0 %v173
    %v366 = vpop.f32.mrf.mxu0
    %v367 = vadd.f32 %v218, %v366
    %v368 = vpop.f32.mrf.mxu0
    %v369 = vpop.f32.mrf.mxu0
    %v370 = vadd.f32 %v218, %v369
    %v371 = vpop.f32.mrf.mxu0
    %372 = vmatprep.mubr.bf16.mxu0 0
    %373 = vmatmul.mubr.bf16.gmra.mxu0 %v174
    %v374 = vpop.f32.mrf.mxu0
    %v375 = vadd.f32 %v218, %v374
    %v376 = vpop.f32.mrf.mxu0
    %v377 = vpop.f32.mrf.mxu0
    %v378 = vadd.f32 %v218, %v377
    %v379 = vpop.f32.mrf.mxu0
    %380 = vmatprep.mubr.bf16.mxu0 0
    %381 = vmatmul.mubr.bf16.gmra.mxu0 %v175
    %v382 = vpop.f32.mrf.mxu0
    %v383 = vadd.f32 %v218, %v382
    %v384 = vpop.f32.mrf.mxu0
    %v385 = vpop.f32.mrf.mxu0
    %v386 = vadd.f32 %v218, %v385
    %v387 = vpop.f32.mrf.mxu0
    %388 = vmatprep.mubr.bf16.mxu0 0
    %389 = vmatmul.mubr.bf16.gmra.mxu0 %v176
    %v390 = vpop.f32.mrf.mxu0
    %v391 = vadd.f32 %v218, %v390
    %v392 = vpop.f32.mrf.mxu0
    %v393 = vpop.f32.mrf.mxu0
    %v394 = vadd.f32 %v218, %v393
    %v395 = vpop.f32.mrf.mxu0
    %396 = vmatprep.mubr.bf16.mxu0 0
    %397 = vmatmul.mubr.bf16.gmra.mxu0 %v177
    %v398 = vpop.f32.mrf.mxu0
    %v399 = vadd.f32 %v218, %v398
    %v400 = vpop.f32.mrf.mxu0
    %v401 = vpop.f32.mrf.mxu0
    %v402 = vadd.f32 %v218, %v401
    %v403 = vpop.f32.mrf.mxu0
    %404 = vmatprep.mubr.bf16.mxu0 0
    %405 = vmatmul.mubr.bf16.gmra.mxu0 %v178
    %v406 = vpop.f32.mrf.mxu0
    %v407 = vadd.f32 %v218, %v406
    %v408 = vpop.f32.mrf.mxu0
    %v409 = vpop.f32.mrf.mxu0
    %v410 = vadd.f32 %v218, %v409
    %v411 = vpop.f32.mrf.mxu0
    %412 = vmatprep.mubr.bf16.mxu0 0
    %413 = vmatmul.mubr.bf16.gmra.mxu0 %v179
    %v414 = vpop.f32.mrf.mxu0
    %v415 = vadd.f32 %v218, %v414
    %v416 = vpop.f32.mrf.mxu0
    %v417 = vpop.f32.mrf.mxu0
    %v418 = vadd.f32 %v218, %v417
    %v419 = vpop.f32.mrf.mxu0
    %420 = vmatprep.mubr.bf16.mxu0 0
    %421 = vmatmul.mubr.bf16.gmra.mxu0 %v180
    %v422 = vpop.f32.mrf.mxu0
    %v423 = vadd.f32 %v218, %v422
    %v424 = vpop.f32.mrf.mxu0
    %v425 = vpop.f32.mrf.mxu0
    %v426 = vadd.f32 %v218, %v425
    %v427 = vpop.f32.mrf.mxu0
    %428 = vmatprep.mubr.bf16.mxu0 0
    %429 = vmatmul.mubr.bf16.gmra.mxu0 %v181
    %v430 = vpop.f32.mrf.mxu0
    %v431 = vadd.f32 %v218, %v430
    %v432 = vpop.f32.mrf.mxu0
    %v433 = vpop.f32.mrf.mxu0
    %v434 = vadd.f32 %v218, %v433
    %v435 = vpop.f32.mrf.mxu0
    %436 = vmatprep.mubr.bf16.mxu0 0
    %437 = vmatmul.mubr.bf16.gmra.mxu0 %v182
    %v438 = vpop.f32.mrf.mxu0
    %v439 = vadd.f32 %v218, %v438
    %v440 = vpop.f32.mrf.mxu0
    %v441 = vpop.f32.mrf.mxu0
    %v442 = vadd.f32 %v218, %v441
    %v443 = vpop.f32.mrf.mxu0
    %444 = vmatprep.mubr.bf16.mxu0 0
    %445 = vmatmul.mubr.bf16.gmra.mxu0 %v183
    %v446 = vpop.f32.mrf.mxu0
    %v447 = vadd.f32 %v218, %v446
    %v448 = vpop.f32.mrf.mxu0
    %v449 = vpop.f32.mrf.mxu0
    %v450 = vadd.f32 %v218, %v449
    %v451 = vpop.f32.mrf.mxu0
    %452 = vmatprep.mubr.bf16.mxu0 0
    %453 = vmatmul.mubr.bf16.gmra.mxu0 %v184
    %v454 = vpop.f32.mrf.mxu0
    %v455 = vadd.f32 %v218, %v454
    %v456 = vpop.f32.mrf.mxu0
    %v457 = vpop.f32.mrf.mxu0
    %v458 = vadd.f32 %v218, %v457
    %v459 = vpop.f32.mrf.mxu0
    %460 = vmatprep.mubr.bf16.mxu0 0
    %461 = vmatmul.mubr.bf16.gmra.mxu0 %v185
    %v462 = vpop.f32.mrf.mxu0
    %v463 = vadd.f32 %v218, %v462
    %v464 = vpop.f32.mrf.mxu0
    %v465 = vpop.f32.mrf.mxu0
    %v466 = vadd.f32 %v218, %v465
    %v467 = vpop.f32.mrf.mxu0
    %468 = vmatprep.mubr.bf16.mxu0 0
    %469 = vmatmul.mubr.bf16.gmra.mxu0 %v186
    %v470 = vpop.f32.mrf.mxu0
    %v471 = vadd.f32 %v218, %v470
    %v472 = vpop.f32.mrf.mxu0
    %v473 = vpop.f32.mrf.mxu0
    %v474 = vadd.f32 %v218, %v473
    %v475 = vpop.f32.mrf.mxu0
    %476 = vmatprep.mubr.bf16.mxu0 0
    %477 = vmatmul.mubr.bf16.gmra.mxu0 %v187
    %v478 = vpop.f32.mrf.mxu0
    %v479 = vadd.f32 %v218, %v478
    %v480 = vpop.f32.mrf.mxu0
    %v481 = vpop.f32.mrf.mxu0
    %v482 = vadd.f32 %v218, %v481
    %v483 = vpop.f32.mrf.mxu0
    %484 = vmatprep.mubr.bf16.mxu0 0
    %485 = vmatmul.mubr.bf16.gmra.mxu0 %v188
    %v486 = vpop.f32.mrf.mxu0
    %v487 = vadd.f32 %v218, %v486
    %v488 = vpop.f32.mrf.mxu0
    %v489 = vpop.f32.mrf.mxu0
    %v490 = vadd.f32 %v218, %v489
    %v491 = vpop.f32.mrf.mxu0
    %492 = vmatprep.mubr.bf16.mxu0 0
    %493 = vmatmul.mubr.bf16.gmra.mxu0 %v189
    %v494 = vpop.f32.mrf.mxu0
    %v495 = vadd.f32 %v218, %v494
    %v496 = vpop.f32.mrf.mxu0
    %v497 = vpop.f32.mrf.mxu0
    %v498 = vadd.f32 %v218, %v497
    %v499 = vpop.f32.mrf.mxu0
    %500 = vmatprep.mubr.bf16.mxu0 0
    %501 = vmatmul.mubr.bf16.gmra.mxu0 %v190
    %v502 = vpop.f32.mrf.mxu0
    %v503 = vadd.f32 %v218, %v502
    %v504 = vpop.f32.mrf.mxu0
    %v505 = vpop.f32.mrf.mxu0
    %v506 = vadd.f32 %v218, %v505
    %v507 = vpop.f32.mrf.mxu0
    %508 = vmatprep.mubr.bf16.mxu0 0
    %509 = vmatmul.mubr.bf16.gmra.mxu0 %v191
    %v510 = vpop.f32.mrf.mxu0
    %v511 = vadd.f32 %v218, %v510
    %v512 = vpop.f32.mrf.mxu0
    %v513 = vpop.f32.mrf.mxu0
    %v514 = vadd.f32 %v218, %v513
    %v515 = vpop.f32.mrf.mxu0
    %516 = vmatprep.mubr.bf16.mxu0 0
    %517 = vmatmul.mubr.bf16.gmra.mxu0 %v192
    %v518 = vpop.f32.mrf.mxu0
    %v519 = vadd.f32 %v218, %v518
    %v520 = vpop.f32.mrf.mxu0
    %v521 = vpop.f32.mrf.mxu0
    %v522 = vadd.f32 %v218, %v521
    %v523 = vpop.f32.mrf.mxu0
    %524 = vmatprep.mubr.bf16.mxu0 0
    %525 = vmatmul.mubr.bf16.gmra.mxu0 %v193
    %v526 = vpop.f32.mrf.mxu0
    %v527 = vadd.f32 %v218, %v526
    %v528 = vpop.f32.mrf.mxu0
    %v529 = vpop.f32.mrf.mxu0
    %v530 = vadd.f32 %v218, %v529
    %v531 = vpop.f32.mrf.mxu0
    %532 = vmatprep.mubr.bf16.mxu0 0
    %533 = vmatmul.mubr.bf16.gmra.mxu0 %v194
    %v534 = vpop.f32.mrf.mxu0
    %v535 = vadd.f32 %v218, %v534
    %v536 = vpop.f32.mrf.mxu0
    %v537 = vpop.f32.mrf.mxu0
    %v538 = vadd.f32 %v218, %v537
    %v539 = vpop.f32.mrf.mxu0
    %540 = vmatprep.mubr.bf16.mxu0 0
    %541 = vmatmul.mubr.bf16.gmra.mxu0 %v195
    %v542 = vpop.f32.mrf.mxu0
    %v543 = vadd.f32 %v218, %v542
    %v544 = vpop.f32.mrf.mxu0
    %v545 = vpop.f32.mrf.mxu0
    %v546 = vadd.f32 %v218, %v545
    %v547 = vpop.f32.mrf.mxu0
    %548 = vmatprep.mubr.bf16.mxu0 0
    %549 = vmatmul.mubr.bf16.gmra.mxu0 %v196
    %v550 = vpop.f32.mrf.mxu0
    %v551 = vadd.f32 %v218, %v550
    %v552 = vpop.f32.mrf.mxu0
    %v553 = vpop.f32.mrf.mxu0
    %v554 = vadd.f32 %v218, %v553
    %v555 = vpop.f32.mrf.mxu0
    %556 = vdwg.mxu0
    %v557 = vld [vmem:[%s3] sm:$0x1]
    %v558 = vld [vmem:[%s4] sm:$0x1]
    %v559 = vadd.f32 %v303, %v306
    %v560 = vadd.f32 %v559, %v311
    %v561 = vadd.f32 %v560, %v314
    %v562 = vadd.f32 %v561, %v319
    %v563 = vadd.f32 %v562, %v322
    %v564 = vadd.f32 %v563, %v327
    %v565 = vadd.f32 %v564, %v330
    %v566 = vadd.f32 %v565, %v335
    %v567 = vadd.f32 %v566, %v338
    %v568 = vadd.f32 %v567, %v343
    %v569 = vadd.f32 %v568, %v346
    %v570 = vadd.f32 %v569, %v351
    %v571 = vadd.f32 %v570, %v354
    %v572 = vadd.f32 %v571, %v359
    %v573 = vadd.f32 %v572, %v362
    %v574 = vadd.f32 %v573, %v367
    %v575 = vadd.f32 %v574, %v370
    %v576 = vadd.f32 %v575, %v375
    %v577 = vadd.f32 %v576, %v378
    %v578 = vadd.f32 %v577, %v383
    %v579 = vadd.f32 %v578, %v386
    %v580 = vadd.f32 %v579, %v391
    %v581 = vadd.f32 %v580, %v394
    %v582 = vadd.f32 %v581, %v399
    %v583 = vadd.f32 %v582, %v402
    %v584 = vadd.f32 %v583, %v407
    %v585 = vadd.f32 %v584, %v410
    %v586 = vadd.f32 %v585, %v415
    %v587 = vadd.f32 %v586, %v418
    %v588 = vadd.f32 %v587, %v423
    %v589 = vadd.f32 %v588, %v426
    %v590 = vadd.f32 %v589, %v431
    %v591 = vadd.f32 %v590, %v434
    %v592 = vadd.f32 %v591, %v439
    %v593 = vadd.f32 %v592, %v442
    %v594 = vadd.f32 %v593, %v447
    %v595 = vadd.f32 %v594, %v450
    %v596 = vadd.f32 %v595, %v455
    %v597 = vadd.f32 %v596, %v458
    %v598 = vadd.f32 %v597, %v463
    %v599 = vadd.f32 %v598, %v466
    %v600 = vadd.f32 %v599, %v471
    %v601 = vadd.f32 %v600, %v474
    %v602 = vadd.f32 %v601, %v479
    %v603 = vadd.f32 %v602, %v482
    %v604 = vadd.f32 %v603, %v487
    %v605 = vadd.f32 %v604, %v490
    %v606 = vadd.f32 %v605, %v495
    %v607 = vadd.f32 %v606, %v498
    %v608 = vadd.f32 %v607, %v503
    %v609 = vadd.f32 %v608, %v506
    %v610 = vadd.f32 %v609, %v511
    %v611 = vadd.f32 %v610, %v514
    %v612 = vadd.f32 %v611, %v519
    %v613 = vadd.f32 %v612, %v522
    %v614 = vadd.f32 %v613, %v527
    %v615 = vadd.f32 %v614, %v530
    %v616 = vadd.f32 %v615, %v535
    %v617 = vadd.f32 %v616, %v538
    %v618 = vadd.f32 %v617, %v543
    %v619 = vadd.f32 %v618, %v546
    %v620 = vadd.f32 %v619, %v551
    %v621 = vadd.f32 %v620, %v554
    %v622 = vrot.slane %v621, 4
    %v623 = vadd.f32 %v621, %v622
    %v624 = vrot.slane %v623, 2
    %v625 = vadd.f32 %v623, %v624
    %v626 = vrot.slane %v625, 1
    %v627 = vadd.f32 %v625, %v626
    %v628 = vmul.f32 %v303, %v303
    %v629 = vmul.f32 %v306, %v306
    %v630 = vmul.f32 %v311, %v311
    %v631 = vmul.f32 %v314, %v314
    %v632 = vmul.f32 %v319, %v319
    %v633 = vmul.f32 %v322, %v322
    %v634 = vmul.f32 %v327, %v327
    %v635 = vmul.f32 %v330, %v330
    %v636 = vmul.f32 %v335, %v335
    %v637 = vmul.f32 %v338, %v338
    %v638 = vmul.f32 %v343, %v343
    %v639 = vmul.f32 %v346, %v346
    %v640 = vmul.f32 %v351, %v351
    %v641 = vmul.f32 %v354, %v354
    %v642 = vmul.f32 %v359, %v359
    %v643 = vmul.f32 %v362, %v362
    %v644 = vmul.f32 %v367, %v367
    %v645 = vmul.f32 %v370, %v370
    %v646 = vmul.f32 %v375, %v375
    %v647 = vmul.f32 %v378, %v378
    %v648 = vmul.f32 %v383, %v383
    %v649 = vmul.f32 %v386, %v386
    %v650 = vmul.f32 %v391, %v391
    %v651 = vmul.f32 %v394, %v394
    %v652 = vmul.f32 %v399, %v399
    %v653 = vmul.f32 %v402, %v402
    %v654 = vmul.f32 %v407, %v407
    %v655 = vmul.f32 %v410, %v410
    %v656 = vmul.f32 %v415, %v415
    %v657 = vmul.f32 %v418, %v418
    %v658 = vmul.f32 %v423, %v423
    %v659 = vmul.f32 %v426, %v426
    %v660 = vmul.f32 %v431, %v431
    %v661 = vmul.f32 %v434, %v434
    %v662 = vmul.f32 %v439, %v439
    %v663 = vmul.f32 %v442, %v442
    %v664 = vmul.f32 %v447, %v447
    %v665 = vmul.f32 %v450, %v450
    %v666 = vmul.f32 %v455, %v455
    %v667 = vmul.f32 %v458, %v458
    %v668 = vmul.f32 %v463, %v463
    %v669 = vmul.f32 %v466, %v466
    %v670 = vmul.f32 %v471, %v471
    %v671 = vmul.f32 %v474, %v474
    %v672 = vmul.f32 %v479, %v479
    %v673 = vmul.f32 %v482, %v482
    %v674 = vmul.f32 %v487, %v487
    %v675 = vmul.f32 %v490, %v490
    %v676 = vmul.f32 %v495, %v495
    %v677 = vmul.f32 %v498, %v498
    %v678 = vmul.f32 %v503, %v503
    %v679 = vmul.f32 %v506, %v506
    %v680 = vmul.f32 %v511, %v511
    %v681 = vmul.f32 %v514, %v514
    %v682 = vmul.f32 %v519, %v519
    %v683 = vmul.f32 %v522, %v522
    %v684 = vmul.f32 %v527, %v527
    %v685 = vmul.f32 %v530, %v530
    %v686 = vmul.f32 %v535, %v535
    %v687 = vmul.f32 %v538, %v538
    %v688 = vmul.f32 %v543, %v543
    %v689 = vmul.f32 %v546, %v546
    %v690 = vmul.f32 %v551, %v551
    %v691 = vmul.f32 %v554, %v554
    %v692 = vadd.f32 %v628, %v629
    %v693 = vadd.f32 %v692, %v630
    %v694 = vadd.f32 %v693, %v631
    %v695 = vadd.f32 %v694, %v632
    %v696 = vadd.f32 %v695, %v633
    %v697 = vadd.f32 %v696, %v634
    %v698 = vadd.f32 %v697, %v635
    %v699 = vadd.f32 %v698, %v636
    %v700 = vadd.f32 %v699, %v637
    %v701 = vadd.f32 %v700, %v638
    %v702 = vadd.f32 %v701, %v639
    %v703 = vadd.f32 %v702, %v640
    %v704 = vadd.f32 %v703, %v641
    %v705 = vadd.f32 %v704, %v642
    %v706 = vadd.f32 %v705, %v643
    %v707 = vadd.f32 %v706, %v644
    %v708 = vadd.f32 %v707, %v645
    %v709 = vadd.f32 %v708, %v646
    %v710 = vadd.f32 %v709, %v647
    %v711 = vadd.f32 %v710, %v648
    %v712 = vadd.f32 %v711, %v649
    %v713 = vadd.f32 %v712, %v650
    %v714 = vadd.f32 %v713, %v651
    %v715 = vadd.f32 %v714, %v652
    %v716 = vadd.f32 %v715, %v653
    %v717 = vadd.f32 %v716, %v654
    %v718 = vadd.f32 %v717, %v655
    %v719 = vadd.f32 %v718, %v656
    %v720 = vadd.f32 %v719, %v657
    %v721 = vadd.f32 %v720, %v658
    %v722 = vadd.f32 %v721, %v659
    %v723 = vadd.f32 %v722, %v660
    %v724 = vadd.f32 %v723, %v661
    %v725 = vadd.f32 %v724, %v662
    %v726 = vadd.f32 %v725, %v663
    %v727 = vadd.f32 %v726, %v664
    %v728 = vadd.f32 %v727, %v665
    %v729 = vadd.f32 %v728, %v666
    %v730 = vadd.f32 %v729, %v667
    %v731 = vadd.f32 %v730, %v668
    %v732 = vadd.f32 %v731, %v669
    %v733 = vadd.f32 %v732, %v670
    %v734 = vadd.f32 %v733, %v671
    %v735 = vadd.f32 %v734, %v672
    %v736 = vadd.f32 %v735, %v673
    %v737 = vadd.f32 %v736, %v674
    %v738 = vadd.f32 %v737, %v675
    %v739 = vadd.f32 %v738, %v676
    %v740 = vadd.f32 %v739, %v677
    %v741 = vadd.f32 %v740, %v678
    %v742 = vadd.f32 %v741, %v679
    %v743 = vadd.f32 %v742, %v680
    %v744 = vadd.f32 %v743, %v681
    %v745 = vadd.f32 %v744, %v682
    %v746 = vadd.f32 %v745, %v683
    %v747 = vadd.f32 %v746, %v684
    %v748 = vadd.f32 %v747, %v685
    %v749 = vadd.f32 %v748, %v686
    %v750 = vadd.f32 %v749, %v687
    %v751 = vadd.f32 %v750, %v688
    %v752 = vadd.f32 %v751, %v689
    %v753 = vadd.f32 %v752, %v690
    %v754 = vadd.f32 %v753, %v691
    %v755 = vrot.slane %v754, 4
    %v756 = vadd.f32 %v754, %v755
    %v757 = vrot.slane %v756, 2
    %v758 = vadd.f32 %v756, %v757
    %v759 = vrot.slane %v758, 1
    %v760 = vadd.f32 %v758, %v759
    %v761 = vmul.f32 %v627, 0.001953125
    %v762 = vmul.f32 %v760, 0.001953125
    %v763 = vmul.f32 %v761, %v761
    %v764 = vsub.f32 %v762, %v763
    %v765 = vsub.f32 %v303, %v761
    %v766 = vsub.f32 %v306, %v761
    %v767 = vsub.f32 %v311, %v761
    %v768 = vsub.f32 %v314, %v761
    %v769 = vsub.f32 %v319, %v761
    %v770 = vsub.f32 %v322, %v761
    %v771 = vsub.f32 %v327, %v761
    %v772 = vsub.f32 %v330, %v761
    %v773 = vsub.f32 %v335, %v761
    %v774 = vsub.f32 %v338, %v761
    %v775 = vsub.f32 %v343, %v761
    %v776 = vsub.f32 %v346, %v761
    %v777 = vsub.f32 %v351, %v761
    %v778 = vsub.f32 %v354, %v761
    %v779 = vsub.f32 %v359, %v761
    %v780 = vsub.f32 %v362, %v761
    %v781 = vsub.f32 %v367, %v761
    %v782 = vsub.f32 %v370, %v761
    %v783 = vsub.f32 %v375, %v761
    %v784 = vsub.f32 %v378, %v761
    %v785 = vsub.f32 %v383, %v761
    %v786 = vsub.f32 %v386, %v761
    %v787 = vsub.f32 %v391, %v761
    %v788 = vsub.f32 %v394, %v761
    %v789 = vsub.f32 %v399, %v761
    %v790 = vsub.f32 %v402, %v761
    %v791 = vsub.f32 %v407, %v761
    %v792 = vsub.f32 %v410, %v761
    %v793 = vsub.f32 %v415, %v761
    %v794 = vsub.f32 %v418, %v761
    %v795 = vsub.f32 %v423, %v761
    %v796 = vsub.f32 %v426, %v761
    %v797 = vsub.f32 %v431, %v761
    %v798 = vsub.f32 %v434, %v761
    %v799 = vsub.f32 %v439, %v761
    %v800 = vsub.f32 %v442, %v761
    %v801 = vsub.f32 %v447, %v761
    %v802 = vsub.f32 %v450, %v761
    %v803 = vsub.f32 %v455, %v761
    %v804 = vsub.f32 %v458, %v761
    %v805 = vsub.f32 %v463, %v761
    %v806 = vsub.f32 %v466, %v761
    %v807 = vsub.f32 %v471, %v761
    %v808 = vsub.f32 %v474, %v761
    %v809 = vsub.f32 %v479, %v761
    %v810 = vsub.f32 %v482, %v761
    %v811 = vsub.f32 %v487, %v761
    %v812 = vsub.f32 %v490, %v761
    %v813 = vsub.f32 %v495, %v761
    %v814 = vsub.f32 %v498, %v761
    %v815 = vsub.f32 %v503, %v761
    %v816 = vsub.f32 %v506, %v761
    %v817 = vsub.f32 %v511, %v761
    %v818 = vsub.f32 %v514, %v761
    %v819 = vsub.f32 %v519, %v761
    %v820 = vsub.f32 %v522, %v761
    %v821 = vsub.f32 %v527, %v761
    %v822 = vsub.f32 %v530, %v761
    %v823 = vsub.f32 %v535, %v761
    %v824 = vsub.f32 %v538, %v761
    %v825 = vsub.f32 %v543, %v761
    %v826 = vsub.f32 %v546, %v761
    %v827 = vsub.f32 %v551, %v761
    %v828 = vsub.f32 %v554, %v761
    %v829 = vadd.f32 %v764, 1e-05
    %v830 = vrsqrt.pop %v829
    %v831 = vmul.f32 %v765, %v830
    %v832 = vmul.f32 %v766, %v830
    %v833 = vmul.f32 %v767, %v830
    %v834 = vmul.f32 %v768, %v830
    %v835 = vmul.f32 %v769, %v830
    %v836 = vmul.f32 %v770, %v830
    %v837 = vmul.f32 %v771, %v830
    %v838 = vmul.f32 %v772, %v830
    %v839 = vmul.f32 %v773, %v830
    %v840 = vmul.f32 %v774, %v830
    %v841 = vmul.f32 %v775, %v830
    %v842 = vmul.f32 %v776, %v830
    %v843 = vmul.f32 %v777, %v830
    %v844 = vmul.f32 %v778, %v830
    %v845 = vmul.f32 %v779, %v830
    %v846 = vmul.f32 %v780, %v830
    %v847 = vmul.f32 %v781, %v830
    %v848 = vmul.f32 %v782, %v830
    %v849 = vmul.f32 %v783, %v830
    %v850 = vmul.f32 %v784, %v830
    %v851 = vmul.f32 %v785, %v830
    %v852 = vmul.f32 %v786, %v830
    %v853 = vmul.f32 %v787, %v830
    %v854 = vmul.f32 %v788, %v830
    %v855 = vmul.f32 %v789, %v830
    %v856 = vmul.f32 %v790, %v830
    %v857 = vmul.f32 %v791, %v830
    %v858 = vmul.f32 %v792, %v830
    %v859 = vmul.f32 %v793, %v830
    %v860 = vmul.f32 %v794, %v830
    %v861 = vmul.f32 %v795, %v830
    %v862 = vmul.f32 %v796, %v830
    %v863 = vmul.f32 %v797, %v830
    %v864 = vmul.f32 %v798, %v830
    %v865 = vmul.f32 %v799, %v830
    %v866 = vmul.f32 %v800, %v830
    %v867 = vmul.f32 %v801, %v830
    %v868 = vmul.f32 %v802, %v830
    %v869 = vmul.f32 %v803, %v830
    %v870 = vmul.f32 %v804, %v830
    %v871 = vmul.f32 %v805, %v830
    %v872 = vmul.f32 %v806, %v830
    %v873 = vmul.f32 %v807, %v830
    %v874 = vmul.f32 %v808, %v830
    %v875 = vmul.f32 %v809, %v830
    %v876 = vmul.f32 %v810, %v830
    %v877 = vmul.f32 %v811, %v830
    %v878 = vmul.f32 %v812, %v830
    %v879 = vmul.f32 %v813, %v830
    %v880 = vmul.f32 %v814, %v830
    %v881 = vmul.f32 %v815, %v830
    %v882 = vmul.f32 %v816, %v830
    %v883 = vmul.f32 %v817, %v830
    %v884 = vmul.f32 %v818, %v830
    %v885 = vmul.f32 %v819, %v830
    %v886 = vmul.f32 %v820, %v830
    %v887 = vmul.f32 %v821, %v830
    %v888 = vmul.f32 %v822, %v830
    %v889 = vmul.f32 %v823, %v830
    %v890 = vmul.f32 %v824, %v830
    %v891 = vmul.f32 %v825, %v830
    %v892 = vmul.f32 %v826, %v830
    %v893 = vmul.f32 %v827, %v830
    %v894 = vmul.f32 %v828, %v830
    %v896 = vlaneseq
    %v897 = vshrl.u32 %v896, 7
    %v898 = vsub.s32 0, %v897
    %v899 = vrot.slane %v557, %v898
    %v901 = vmul.f32 %v831, %v899
    %v902 = vmul.f32 %v832, %v899
    %v903 = vmul.f32 %v833, %v899
    %v904 = vmul.f32 %v834, %v899
    %v905 = vmul.f32 %v835, %v899
    %v906 = vmul.f32 %v836, %v899
    %v907 = vmul.f32 %v837, %v899
    %v908 = vmul.f32 %v838, %v899
    %v909 = vmul.f32 %v839, %v899
    %v910 = vmul.f32 %v840, %v899
    %v911 = vmul.f32 %v841, %v899
    %v912 = vmul.f32 %v842, %v899
    %v913 = vmul.f32 %v843, %v899
    %v914 = vmul.f32 %v844, %v899
    %v915 = vmul.f32 %v845, %v899
    %v916 = vmul.f32 %v846, %v899
    %v917 = vmul.f32 %v847, %v899
    %v918 = vmul.f32 %v848, %v899
    %v919 = vmul.f32 %v849, %v899
    %v920 = vmul.f32 %v850, %v899
    %v921 = vmul.f32 %v851, %v899
    %v922 = vmul.f32 %v852, %v899
    %v923 = vmul.f32 %v853, %v899
    %v924 = vmul.f32 %v854, %v899
    %v925 = vmul.f32 %v855, %v899
    %v926 = vmul.f32 %v856, %v899
    %v927 = vmul.f32 %v857, %v899
    %v928 = vmul.f32 %v858, %v899
    %v929 = vmul.f32 %v859, %v899
    %v930 = vmul.f32 %v860, %v899
    %v931 = vmul.f32 %v861, %v899
    %v932 = vmul.f32 %v862, %v899
    %v933 = vmul.f32 %v863, %v899
    %v934 = vmul.f32 %v864, %v899
    %v935 = vmul.f32 %v865, %v899
    %v936 = vmul.f32 %v866, %v899
    %v937 = vmul.f32 %v867, %v899
    %v938 = vmul.f32 %v868, %v899
    %v939 = vmul.f32 %v869, %v899
    %v940 = vmul.f32 %v870, %v899
    %v941 = vmul.f32 %v871, %v899
    %v942 = vmul.f32 %v872, %v899
    %v943 = vmul.f32 %v873, %v899
    %v944 = vmul.f32 %v874, %v899
    %v945 = vmul.f32 %v875, %v899
    %v946 = vmul.f32 %v876, %v899
    %v947 = vmul.f32 %v877, %v899
    %v948 = vmul.f32 %v878, %v899
    %v949 = vmul.f32 %v879, %v899
    %v950 = vmul.f32 %v880, %v899
    %v951 = vmul.f32 %v881, %v899
    %v952 = vmul.f32 %v882, %v899
    %v953 = vmul.f32 %v883, %v899
    %v954 = vmul.f32 %v884, %v899
    %v955 = vmul.f32 %v885, %v899
    %v956 = vmul.f32 %v886, %v899
    %v957 = vmul.f32 %v887, %v899
    %v958 = vmul.f32 %v888, %v899
    %v959 = vmul.f32 %v889, %v899
    %v960 = vmul.f32 %v890, %v899
    %v961 = vmul.f32 %v891, %v899
    %v962 = vmul.f32 %v892, %v899
    %v963 = vmul.f32 %v893, %v899
    %v964 = vmul.f32 %v894, %v899
    %v966 = vlaneseq
    %v967 = vshrl.u32 %v966, 7
    %v968 = vsub.s32 0, %v967
    %v969 = vrot.slane %v558, %v968
    %v971 = vadd.f32 %v901, %v969
    %v972 = vadd.f32 %v902, %v969
    %v973 = vadd.f32 %v903, %v969
    %v974 = vadd.f32 %v904, %v969
    %v975 = vadd.f32 %v905, %v969
    %v976 = vadd.f32 %v906, %v969
    %v977 = vadd.f32 %v907, %v969
    %v978 = vadd.f32 %v908, %v969
    %v979 = vadd.f32 %v909, %v969
    %v980 = vadd.f32 %v910, %v969
    %v981 = vadd.f32 %v911, %v969
    %v982 = vadd.f32 %v912, %v969
    %v983 = vadd.f32 %v913, %v969
    %v984 = vadd.f32 %v914, %v969
    %v985 = vadd.f32 %v915, %v969
    %v986 = vadd.f32 %v916, %v969
    %v987 = vadd.f32 %v917, %v969
    %v988 = vadd.f32 %v918, %v969
    %v989 = vadd.f32 %v919, %v969
    %v990 = vadd.f32 %v920, %v969
    %v991 = vadd.f32 %v921, %v969
    %v992 = vadd.f32 %v922, %v969
    %v993 = vadd.f32 %v923, %v969
    %v994 = vadd.f32 %v924, %v969
    %v995 = vadd.f32 %v925, %v969
    %v996 = vadd.f32 %v926, %v969
    %v997 = vadd.f32 %v927, %v969
    %v998 = vadd.f32 %v928, %v969
    %v999 = vadd.f32 %v929, %v969
    %v1000 = vadd.f32 %v930, %v969
    %v1001 = vadd.f32 %v931, %v969
    %v1002 = vadd.f32 %v932, %v969
    %v1003 = vadd.f32 %v933, %v969
    %v1004 = vadd.f32 %v934, %v969
    %v1005 = vadd.f32 %v935, %v969
    %v1006 = vadd.f32 %v936, %v969
    %v1007 = vadd.f32 %v937, %v969
    %v1008 = vadd.f32 %v938, %v969
    %v1009 = vadd.f32 %v939, %v969
    %v1010 = vadd.f32 %v940, %v969
    %v1011 = vadd.f32 %v941, %v969
    %v1012 = vadd.f32 %v942, %v969
    %v1013 = vadd.f32 %v943, %v969
    %v1014 = vadd.f32 %v944, %v969
    %v1015 = vadd.f32 %v945, %v969
    %v1016 = vadd.f32 %v946, %v969
    %v1017 = vadd.f32 %v947, %v969
    %v1018 = vadd.f32 %v948, %v969
    %v1019 = vadd.f32 %v949, %v969
    %v1020 = vadd.f32 %v950, %v969
    %v1021 = vadd.f32 %v951, %v969
    %v1022 = vadd.f32 %v952, %v969
    %v1023 = vadd.f32 %v953, %v969
    %v1024 = vadd.f32 %v954, %v969
    %v1025 = vadd.f32 %v955, %v969
    %v1026 = vadd.f32 %v956, %v969
    %v1027 = vadd.f32 %v957, %v969
    %v1028 = vadd.f32 %v958, %v969
    %v1029 = vadd.f32 %v959, %v969
    %v1030 = vadd.f32 %v960, %v969
    %v1031 = vadd.f32 %v961, %v969
    %v1032 = vadd.f32 %v962, %v969
    %v1033 = vadd.f32 %v963, %v969
    %v1034 = vadd.f32 %v964, %v969
    %v1035 = vmax.f32 %v971, 0.0
    %v1036 = vmax.f32 %v972, 0.0
    %v1037 = vmax.f32 %v973, 0.0
    %v1038 = vmax.f32 %v974, 0.0
    %v1039 = vmax.f32 %v975, 0.0
    %v1040 = vmax.f32 %v976, 0.0
    %v1041 = vmax.f32 %v977, 0.0
    %v1042 = vmax.f32 %v978, 0.0
    %v1043 = vmax.f32 %v979, 0.0
    %v1044 = vmax.f32 %v980, 0.0
    %v1045 = vmax.f32 %v981, 0.0
    %v1046 = vmax.f32 %v982, 0.0
    %v1047 = vmax.f32 %v983, 0.0
    %v1048 = vmax.f32 %v984, 0.0
    %v1049 = vmax.f32 %v985, 0.0
    %v1050 = vmax.f32 %v986, 0.0
    %v1051 = vmax.f32 %v987, 0.0
    %v1052 = vmax.f32 %v988, 0.0
    %v1053 = vmax.f32 %v989, 0.0
    %v1054 = vmax.f32 %v990, 0.0
    %v1055 = vmax.f32 %v991, 0.0
    %v1056 = vmax.f32 %v992, 0.0
    %v1057 = vmax.f32 %v993, 0.0
    %v1058 = vmax.f32 %v994, 0.0
    %v1059 = vmax.f32 %v995, 0.0
    %v1060 = vmax.f32 %v996, 0.0
    %v1061 = vmax.f32 %v997, 0.0
    %v1062 = vmax.f32 %v998, 0.0
    %v1063 = vmax.f32 %v999, 0.0
    %v1064 = vmax.f32 %v1000, 0.0
    %v1065 = vmax.f32 %v1001, 0.0
    %v1066 = vmax.f32 %v1002, 0.0
    %v1067 = vmax.f32 %v1003, 0.0
    %v1068 = vmax.f32 %v1004, 0.0
    %v1069 = vmax.f32 %v1005, 0.0
    %v1070 = vmax.f32 %v1006, 0.0
    %v1071 = vmax.f32 %v1007, 0.0
    %v1072 = vmax.f32 %v1008, 0.0
    %v1073 = vmax.f32 %v1009, 0.0
    %v1074 = vmax.f32 %v1010, 0.0
    %v1075 = vmax.f32 %v1011, 0.0
    %v1076 = vmax.f32 %v1012, 0.0
    %v1077 = vmax.f32 %v1013, 0.0
    %v1078 = vmax.f32 %v1014, 0.0
    %v1079 = vmax.f32 %v1015, 0.0
    %v1080 = vmax.f32 %v1016, 0.0
    %v1081 = vmax.f32 %v1017, 0.0
    %v1082 = vmax.f32 %v1018, 0.0
    %v1083 = vmax.f32 %v1019, 0.0
    %v1084 = vmax.f32 %v1020, 0.0
    %v1085 = vmax.f32 %v1021, 0.0
    %v1086 = vmax.f32 %v1022, 0.0
    %v1087 = vmax.f32 %v1023, 0.0
    %v1088 = vmax.f32 %v1024, 0.0
    %v1089 = vmax.f32 %v1025, 0.0
    %v1090 = vmax.f32 %v1026, 0.0
    %v1091 = vmax.f32 %v1027, 0.0
    %v1092 = vmax.f32 %v1028, 0.0
    %v1093 = vmax.f32 %v1029, 0.0
    %v1094 = vmax.f32 %v1030, 0.0
    %v1095 = vmax.f32 %v1031, 0.0
    %v1096 = vmax.f32 %v1032, 0.0
    %v1097 = vmax.f32 %v1033, 0.0
    %v1098 = vmax.f32 %v1034, 0.0
    %s1099 = scalar_lea.vmem [#allocation2], 24
    %1100 = vst [vmem:[%s1099 + $0x1] sm:$0xff] %v1035
    %1101 = vst [vmem:[%s1099 + $0x9] sm:$0xff] %v1036
    %1102 = vst [vmem:[%s1099 + $0x19] sm:$0xff] %v1037
    %1103 = vst [vmem:[%s1099 + $0x21] sm:$0xff] %v1038
    %1104 = vst [vmem:[%s1099 + $0x31] sm:$0xff] %v1039
    %1105 = vst [vmem:[%s1099 + $0x39] sm:$0xff] %v1040
    %1106 = vst [vmem:[%s1099 + $0x49] sm:$0xff] %v1041
    %1107 = vst [vmem:[%s1099 + $0x51] sm:$0xff] %v1042
    %1108 = vst [vmem:[%s1099 + $0x61] sm:$0xff] %v1043
    %1109 = vst [vmem:[%s1099 + $0x69] sm:$0xff] %v1044
    %1110 = vst [vmem:[%s1099 + $0x79] sm:$0xff] %v1045
    %1111 = vst [vmem:[%s1099 + $0x81] sm:$0xff] %v1046
    %1112 = vst [vmem:[%s1099 + $0x91] sm:$0xff] %v1047
    %1113 = vst [vmem:[%s1099 + $0x99] sm:$0xff] %v1048
    %1114 = vst [vmem:[%s1099 + $0xa9] sm:$0xff] %v1049
    %1115 = vst [vmem:[%s1099 + $0xb1] sm:$0xff] %v1050
    %1116 = vst [vmem:[%s1099 + $0xc1] sm:$0xff] %v1051
    %1117 = vst [vmem:[%s1099 + $0xc9] sm:$0xff] %v1052
    %1118 = vst [vmem:[%s1099 + $0xd9] sm:$0xff] %v1053
    %1119 = vst [vmem:[%s1099 + $0xe1] sm:$0xff] %v1054
    %1120 = vst [vmem:[%s1099 + $0xf1] sm:$0xff] %v1055
    %1121 = vst [vmem:[%s1099 + $0xf9] sm:$0xff] %v1056
    %1122 = vst [vmem:[%s1099 + $0x109] sm:$0xff] %v1057
    %1123 = vst [vmem:[%s1099 + $0x111] sm:$0xff] %v1058
    %1124 = vst [vmem:[%s1099 + $0x121] sm:$0xff] %v1059
    %1125 = vst [vmem:[%s1099 + $0x129] sm:$0xff] %v1060
    %1126 = vst [vmem:[%s1099 + $0x139] sm:$0xff] %v1061
    %1127 = vst [vmem:[%s1099 + $0x141] sm:$0xff] %v1062
    %1128 = vst [vmem:[%s1099 + $0x151] sm:$0xff] %v1063
    %1129 = vst [vmem:[%s1099 + $0x159] sm:$0xff] %v1064
    %1130 = vst [vmem:[%s1099 + $0x169] sm:$0xff] %v1065
    %1131 = vst [vmem:[%s1099 + $0x171] sm:$0xff] %v1066
    %1132 = vst [vmem:[%s1099 + $0x1b1] sm:$0xff] %v1067
    %1133 = vst [vmem:[%s1099 + $0x1b9] sm:$0xff] %v1068
    %1134 = vst [vmem:[%s1099 + $0x1c9] sm:$0xff] %v1069
    %1135 = vst [vmem:[%s1099 + $0x1d1] sm:$0xff] %v1070
    %1136 = vst [vmem:[%s1099 + $0x1e1] sm:$0xff] %v1071
    %1137 = vst [vmem:[%s1099 + $0x1e9] sm:$0xff] %v1072
    %1138 = vst [vmem:[%s1099 + $0x1f9] sm:$0xff] %v1073
    %1139 = vst [vmem:[%s1099 + $0x201] sm:$0xff] %v1074
    %1140 = vst [vmem:[%s1099 + $0x211] sm:$0xff] %v1075
    %1141 = vst [vmem:[%s1099 + $0x219] sm:$0xff] %v1076
    %1142 = vst [vmem:[%s1099 + $0x229] sm:$0xff] %v1077
    %1143 = vst [vmem:[%s1099 + $0x231] sm:$0xff] %v1078
    %1144 = vst [vmem:[%s1099 + $0x241] sm:$0xff] %v1079
    %1145 = vst [vmem:[%s1099 + $0x249] sm:$0xff] %v1080
    %1146 = vst [vmem:[%s1099 + $0x259] sm:$0xff] %v1081
    %1147 = vst [vmem:[%s1099 + $0x261] sm:$0xff] %v1082
    %1148 = vst [vmem:[%s1099 + $0x271] sm:$0xff] %v1083
    %1149 = vst [vmem:[%s1099 + $0x279] sm:$0xff] %v1084
    %1150 = vst [vmem:[%s1099 + $0x289] sm:$0xff] %v1085
    %1151 = vst [vmem:[%s1099 + $0x291] sm:$0xff] %v1086
    %1152 = vst [vmem:[%s1099 + $0x2a1] sm:$0xff] %v1087
    %1153 = vst [vmem:[%s1099 + $0x2a9] sm:$0xff] %v1088
    %1154 = vst [vmem:[%s1099 + $0x2b9] sm:$0xff] %v1089
    %1155 = vst [vmem:[%s1099 + $0x2c1] sm:$0xff] %v1090
    %1156 = vst [vmem:[%s1099 + $0x2d1] sm:$0xff] %v1091
    %1157 = vst [vmem:[%s1099 + $0x2d9] sm:$0xff] %v1092
    %1158 = vst [vmem:[%s1099 + $0x2e9] sm:$0xff] %v1093
    %1159 = vst [vmem:[%s1099 + $0x2f1] sm:$0xff] %v1094
    %1160 = vst [vmem:[%s1099 + $0x301] sm:$0xff] %v1095
    %1161 = vst [vmem:[%s1099 + $0x309] sm:$0xff] %v1096
    %1162 = vst [vmem:[%s1099 + $0x319] sm:$0xff] %v1097
    %1163 = vst [vmem:[%s1099 + $0x321] sm:$0xff] %v1098
    %1164 = vst [vmem:[#allocation2] sm:$0xff] 0.0
    %1165 = vst [vmem:[#allocation2 + $0x8] sm:$0xff] 0.0
    %1166 = vst [vmem:[#allocation2 + $0x10] sm:$0x3] 0.0
    %1167 = vst [vmem:[#allocation2 + $0x1b0] sm:$0xff] 0.0
    %1168 = vst [vmem:[#allocation2 + $0x1b8] sm:$0xff] 0.0
    %1169 = vst [vmem:[#allocation2 + $0x1c0] sm:$0x3] 0.0
    %s1170 = scalar_lea.vmem [#allocation2], 408
    %1171 = vst [vmem:[%s1170] sm:$0xff] 0.0
    %1172 = vst [vmem:[%s1170 + $0x8] sm:$0xff] 0.0
    %1173 = vst [vmem:[%s1170 + $0x10] sm:$0x3] 0.0
    %1174 = vst [vmem:[%s1170 + $0x1b0] sm:$0xff] 0.0
    %1175 = vst [vmem:[%s1170 + $0x1b8] sm:$0xff] 0.0
    %1176 = vst [vmem:[%s1170 + $0x1c0] sm:$0x3] 0.0
    %1177 = vst [vmem:[#allocation2] sm:$0x1] 0.0
    %1178 = vst [vmem:[#allocation2 + $0x18] sm:$0x1] 0.0
    %1179 = vst [vmem:[#allocation2 + $0x30] sm:$0x1] 0.0
    %1180 = vst [vmem:[#allocation2 + $0x48] sm:$0x1] 0.0
    %1181 = vst [vmem:[#allocation2 + $0x60] sm:$0x1] 0.0
    %1182 = vst [vmem:[#allocation2 + $0x78] sm:$0x1] 0.0
    %1183 = vst [vmem:[#allocation2 + $0x90] sm:$0x1] 0.0
    %1184 = vst [vmem:[#allocation2 + $0xa8] sm:$0x1] 0.0
    %1185 = vst [vmem:[#allocation2 + $0xc0] sm:$0x1] 0.0
    %1186 = vst [vmem:[#allocation2 + $0xd8] sm:$0x1] 0.0
    %1187 = vst [vmem:[#allocation2 + $0xf0] sm:$0x1] 0.0
    %1188 = vst [vmem:[#allocation2 + $0x108] sm:$0x1] 0.0
    %1189 = vst [vmem:[#allocation2 + $0x120] sm:$0x1] 0.0
    %1190 = vst [vmem:[#allocation2 + $0x138] sm:$0x1] 0.0
    %1191 = vst [vmem:[#allocation2 + $0x150] sm:$0x1] 0.0
    %1192 = vst [vmem:[#allocation2 + $0x168] sm:$0x1] 0.0
    %1193 = vst [vmem:[#allocation2 + $0x180] sm:$0x1] 0.0
    %1194 = vst [vmem:[#allocation2 + $0x198] sm:$0x1] 0.0
    %1195 = vst [vmem:[#allocation2 + $0x1b0] sm:$0x1] 0.0
    %1196 = vst [vmem:[#allocation2 + $0x1c8] sm:$0x1] 0.0
    %1197 = vst [vmem:[#allocation2 + $0x1e0] sm:$0x1] 0.0
    %1198 = vst [vmem:[#allocation2 + $0x1f8] sm:$0x1] 0.0
    %1199 = vst [vmem:[#allocation2 + $0x210] sm:$0x1] 0.0
    %1200 = vst [vmem:[#allocation2 + $0x228] sm:$0x1] 0.0
    %1201 = vst [vmem:[#allocation2 + $0x240] sm:$0x1] 0.0
    %1202 = vst [vmem:[#allocation2 + $0x258] sm:$0x1] 0.0
    %1203 = vst [vmem:[#allocation2 + $0x270] sm:$0x1] 0.0
    %1204 = vst [vmem:[#allocation2 + $0x288] sm:$0x1] 0.0
    %1205 = vst [vmem:[#allocation2 + $0x2a0] sm:$0x1] 0.0
    %1206 = vst [vmem:[#allocation2 + $0x2b8] sm:$0x1] 0.0
    %1207 = vst [vmem:[#allocation2 + $0x2d0] sm:$0x1] 0.0
    %1208 = vst [vmem:[#allocation2 + $0x2e8] sm:$0x1] 0.0
    %1209 = vst [vmem:[#allocation2 + $0x300] sm:$0x1] 0.0
    %1210 = vst [vmem:[#allocation2 + $0x318] sm:$0x1] 0.0
    %1211 = vst [vmem:[#allocation2 + $0x330] sm:$0x1] 0.0
    %1212 = vst [vmem:[#allocation2 + $0x348] sm:$0x1] 0.0
    %1213 = vst [vmem:[#allocation2 + $0x11] sm:$0x1] 0.0
    %1214 = vst [vmem:[#allocation2 + $0x29] sm:$0x1] 0.0
    %1215 = vst [vmem:[#allocation2 + $0x41] sm:$0x1] 0.0
    %1216 = vst [vmem:[#allocation2 + $0x59] sm:$0x1] 0.0
    %1217 = vst [vmem:[#allocation2 + $0x71] sm:$0x1] 0.0
    %1218 = vst [vmem:[#allocation2 + $0x89] sm:$0x1] 0.0
    %1219 = vst [vmem:[#allocation2 + $0xa1] sm:$0x1] 0.0
    %1220 = vst [vmem:[#allocation2 + $0xb9] sm:$0x1] 0.0
    %1221 = vst [vmem:[#allocation2 + $0xd1] sm:$0x1] 0.0
    %1222 = vst [vmem:[#allocation2 + $0xe9] sm:$0x1] 0.0
    %1223 = vst [vmem:[#allocation2 + $0x101] sm:$0x1] 0.0
    %1224 = vst [vmem:[#allocation2 + $0x119] sm:$0x1] 0.0
    %1225 = vst [vmem:[#allocation2 + $0x131] sm:$0x1] 0.0
    %1226 = vst [vmem:[#allocation2 + $0x149] sm:$0x1] 0.0
    %1227 = vst [vmem:[#allocation2 + $0x161] sm:$0x1] 0.0
    %1228 = vst [vmem:[#allocation2 + $0x179] sm:$0x1] 0.0
    %1229 = vst [vmem:[#allocation2 + $0x191] sm:$0x1] 0.0
    %1230 = vst [vmem:[#allocation2 + $0x1a9] sm:$0x1] 0.0
    %1231 = vst [vmem:[#allocation2 + $0x1c1] sm:$0x1] 0.0
    %1232 = vst [vmem:[#allocation2 + $0x1d9] sm:$0x1] 0.0
    %1233 = vst [vmem:[#allocation2 + $0x1f1] sm:$0x1] 0.0
    %1234 = vst [vmem:[#allocation2 + $0x209] sm:$0x1] 0.0
    %1235 = vst [vmem:[#allocation2 + $0x221] sm:$0x1] 0.0
    %1236 = vst [vmem:[#allocation2 + $0x239] sm:$0x1] 0.0
    %1237 = vst [vmem:[#allocation2 + $0x251] sm:$0x1] 0.0
    %1238 = vst [vmem:[#allocation2 + $0x269] sm:$0x1] 0.0
    %1239 = vst [vmem:[#allocation2 + $0x281] sm:$0x1] 0.0
    %1240 = vst [vmem:[#allocation2 + $0x299] sm:$0x1] 0.0
    %1241 = vst [vmem:[#allocation2 + $0x2b1] sm:$0x1] 0.0
    %1242 = vst [vmem:[#allocation2 + $0x2c9] sm:$0x1] 0.0
    %1243 = vst [vmem:[#allocation2 + $0x2e1] sm:$0x1] 0.0
    %1244 = vst [vmem:[#allocation2 + $0x2f9] sm:$0x1] 0.0
    %1245 = vst [vmem:[#allocation2 + $0x311] sm:$0x1] 0.0
    %1246 = vst [vmem:[#allocation2 + $0x329] sm:$0x1] 0.0
    %1247 = vst [vmem:[#allocation2 + $0x341] sm:$0x1] 0.0
    %1248 = vst [vmem:[#allocation2 + $0x359] sm:$0x1] 0.0
    %v1249 = vld [vmem:[#allocation2] sm:$0xff]
    %v1250 = vld [vmem:[#allocation2 + $0x8] sm:$0xff]
    %v1251 = vld [vmem:[#allocation2 + $0x10] sm:$0x3]
    %v1252 = vld [vmem:[#allocation2 + $0x18] sm:$0xff]
    %v1253 = vld [vmem:[#allocation2 + $0x20] sm:$0xff]
    %v1254 = vld [vmem:[#allocation2 + $0x28] sm:$0x3]
    %v1255 = vld [vmem:[#allocation2 + $0x30] sm:$0xff]
    %v1256 = vld [vmem:[#allocation2 + $0x38] sm:$0xff]
    %v1257 = vld [vmem:[#allocation2 + $0x40] sm:$0x3]
    %v1258 = vld [vmem:[#allocation2 + $0x48] sm:$0xff]
    %v1259 = vld [vmem:[#allocation2 + $0x50] sm:$0xff]
    %v1260 = vld [vmem:[#allocation2 + $0x58] sm:$0x3]
    %v1261 = vld [vmem:[#allocation2 + $0x60] sm:$0xff]
    %v1262 = vld [vmem:[#allocation2 + $0x68] sm:$0xff]
    %v1263 = vld [vmem:[#allocation2 + $0x70] sm:$0x3]
    %v1264 = vld [vmem:[#allocation2 + $0x78] sm:$0xff]
    %v1265 = vld [vmem:[#allocation2 + $0x80] sm:$0xff]
    %v1266 = vld [vmem:[#allocation2 + $0x88] sm:$0x3]
    %v1267 = vld [vmem:[#allocation2 + $0x90] sm:$0xff]
    %v1268 = vld [vmem:[#allocation2 + $0x98] sm:$0xff]
    %v1269 = vld [vmem:[#allocation2 + $0xa0] sm:$0x3]
    %v1270 = vld [vmem:[#allocation2 + $0xa8] sm:$0xff]
    %v1271 = vld [vmem:[#allocation2 + $0xb0] sm:$0xff]
    %v1272 = vld [vmem:[#allocation2 + $0xb8] sm:$0x3]
    %v1273 = vld [vmem:[#allocation2 + $0xc0] sm:$0xff]
    %v1274 = vld [vmem:[#allocation2 + $0xc8] sm:$0xff]
    %v1275 = vld [vmem:[#allocation2 + $0xd0] sm:$0x3]
    %v1276 = vld [vmem:[#allocation2 + $0xd8] sm:$0xff]
    %v1277 = vld [vmem:[#allocation2 + $0xe0] sm:$0xff]
    %v1278 = vld [vmem:[#allocation2 + $0xe8] sm:$0x3]
    %v1279 = vld [vmem:[#allocation2 + $0xf0] sm:$0xff]
    %v1280 = vld [vmem:[#allocation2 + $0xf8] sm:$0xff]
    %v1281 = vld [vmem:[#allocation2 + $0x100] sm:$0x3]
    %v1282 = vld [vmem:[#allocation2 + $0x108] sm:$0xff]
    %v1283 = vld [vmem:[#allocation2 + $0x110] sm:$0xff]
    %v1284 = vld [vmem:[#allocation2 + $0x118] sm:$0x3]
    %v1285 = vld [vmem:[#allocation2 + $0x120] sm:$0xff]
    %v1286 = vld [vmem:[#allocation2 + $0x128] sm:$0xff]
    %v1287 = vld [vmem:[#allocation2 + $0x130] sm:$0x3]
    %v1288 = vld [vmem:[#allocation2 + $0x138] sm:$0xff]
    %v1289 = vld [vmem:[#allocation2 + $0x140] sm:$0xff]
    %v1290 = vld [vmem:[#allocation2 + $0x148] sm:$0x3]
    %v1291 = vld [vmem:[#allocation2 + $0x150] sm:$0xff]
    %v1292 = vld [vmem:[#allocation2 + $0x158] sm:$0xff]
    %v1293 = vld [vmem:[#allocation2 + $0x160] sm:$0x3]
    %v1294 = vld [vmem:[#allocation2 + $0x168] sm:$0xff]
    %v1295 = vld [vmem:[#allocation2 + $0x170] sm:$0xff]
    %v1296 = vld [vmem:[#allocation2 + $0x178] sm:$0x3]
    %v1297 = vld [vmem:[#allocation2 + $0x180] sm:$0xff]
    %v1298 = vld [vmem:[#allocation2 + $0x188] sm:$0xff]
    %v1299 = vld [vmem:[#allocation2 + $0x190] sm:$0x3]
    %v1300 = vld [vmem:[#allocation2 + $0x198] sm:$0xff]
    %v1301 = vld [vmem:[#allocation2 + $0x1a0] sm:$0xff]
    %v1302 = vld [vmem:[#allocation2 + $0x1a8] sm:$0x3]
    %v1303 = vld [vmem:[#allocation2 + $0x1b0] sm:$0xff]
    %v1304 = vld [vmem:[#allocation2 + $0x1b8] sm:$0xff]
    %v1305 = vld [vmem:[#allocation2 + $0x1c0] sm:$0x3]
    %v1306 = vld [vmem:[#allocation2 + $0x1c8] sm:$0xff]
    %v1307 = vld [vmem:[#allocation2 + $0x1d0] sm:$0xff]
    %v1308 = vld [vmem:[#allocation2 + $0x1d8] sm:$0x3]
    %v1309 = vld [vmem:[#allocation2 + $0x1e0] sm:$0xff]
    %v1310 = vld [vmem:[#allocation2 + $0x1e8] sm:$0xff]
    %v1311 = vld [vmem:[#allocation2 + $0x1f0] sm:$0x3]
    %v1312 = vld [vmem:[#allocation2 + $0x1f8] sm:$0xff]
    %v1313 = vld [vmem:[#allocation2 + $0x200] sm:$0xff]
    %v1314 = vld [vmem:[#allocation2 + $0x208] sm:$0x3]
    %v1315 = vld [vmem:[#allocation2 + $0x210] sm:$0xff]
    %v1316 = vld [vmem:[#allocation2 + $0x218] sm:$0xff]
    %v1317 = vld [vmem:[#allocation2 + $0x220] sm:$0x3]
    %v1318 = vld [vmem:[#allocation2 + $0x228] sm:$0xff]
    %v1319 = vld [vmem:[#allocation2 + $0x230] sm:$0xff]
    %v1320 = vld [vmem:[#allocation2 + $0x238] sm:$0x3]
    %v1321 = vld [vmem:[#allocation2 + $0x240] sm:$0xff]
    %v1322 = vld [vmem:[#allocation2 + $0x248] sm:$0xff]
    %v1323 = vld [vmem:[#allocation2 + $0x250] sm:$0x3]
    %v1324 = vld [vmem:[#allocation2 + $0x258] sm:$0xff]
    %v1325 = vld [vmem:[#allocation2 + $0x260] sm:$0xff]
    %v1326 = vld [vmem:[#allocation2 + $0x268] sm:$0x3]
    %v1327 = vld [vmem:[#allocation2 + $0x270] sm:$0xff]
    %v1328 = vld [vmem:[#allocation2 + $0x278] sm:$0xff]
    %v1329 = vld [vmem:[#allocation2 + $0x280] sm:$0x3]
    %v1330 = vld [vmem:[#allocation2 + $0x288] sm:$0xff]
    %v1331 = vld [vmem:[#allocation2 + $0x290] sm:$0xff]
    %v1332 = vld [vmem:[#allocation2 + $0x298] sm:$0x3]
    %v1333 = vld [vmem:[#allocation2 + $0x2a0] sm:$0xff]
    %v1334 = vld [vmem:[#allocation2 + $0x2a8] sm:$0xff]
    %v1335 = vld [vmem:[#allocation2 + $0x2b0] sm:$0x3]
    %v1336 = vld [vmem:[#allocation2 + $0x2b8] sm:$0xff]
    %v1337 = vld [vmem:[#allocation2 + $0x2c0] sm:$0xff]
    %v1338 = vld [vmem:[#allocation2 + $0x2c8] sm:$0x3]
    %v1339 = vld [vmem:[#allocation2 + $0x2d0] sm:$0xff]
    %v1340 = vld [vmem:[#allocation2 + $0x2d8] sm:$0xff]
    %v1341 = vld [vmem:[#allocation2 + $0x2e0] sm:$0x3]
    %v1342 = vld [vmem:[#allocation2 + $0x2e8] sm:$0xff]
    %v1343 = vld [vmem:[#allocation2 + $0x2f0] sm:$0xff]
    %v1344 = vld [vmem:[#allocation2 + $0x2f8] sm:$0x3]
    %v1345 = vld [vmem:[#allocation2 + $0x300] sm:$0xff]
    %v1346 = vld [vmem:[#allocation2 + $0x308] sm:$0xff]
    %v1347 = vld [vmem:[#allocation2 + $0x310] sm:$0x3]
    %v1348 = vld [vmem:[#allocation2 + $0x318] sm:$0xff]
    %v1349 = vld [vmem:[#allocation2 + $0x320] sm:$0xff]
    %v1350 = vld [vmem:[#allocation2 + $0x328] sm:$0x3]
    %v1351 = vld [vmem:[#allocation2 + $0x330] sm:$0xff]
    %v1352 = vld [vmem:[#allocation2 + $0x338] sm:$0xff]
    %v1353 = vld [vmem:[#allocation2 + $0x340] sm:$0x3]
    %v1354 = vld [vmem:[#allocation2 + $0x348] sm:$0xff]
    %v1355 = vld [vmem:[#allocation2 + $0x350] sm:$0xff]
    %v1356 = vld [vmem:[#allocation2 + $0x358] sm:$0x3]
    %vm1453 = vcmask 1046528
    %v1454 = vrot.slane %v1249, 1
    %v1455 = vrot.slane %v1250, 1
    %v1456 = vsel %vm1453, %v1454, %v1455
    %v1457 = vrot.slane %v1251, 1
    %v1458 = vsel %vm1453, %v1455, %v1457
    %v1459 = vrot.slane %v1252, 1
    %v1460 = vrot.slane %v1253, 1
    %v1461 = vsel %vm1453, %v1459, %v1460
    %v1462 = vrot.slane %v1254, 1
    %v1463 = vsel %vm1453, %v1460, %v1462
    %v1464 = vrot.slane %v1255, 1
    %v1465 = vrot.slane %v1256, 1
    %v1466 = vsel %vm1453, %v1464, %v1465
    %v1467 = vrot.slane %v1257, 1
    %v1468 = vsel %vm1453, %v1465, %v1467
    %v1469 = vrot.slane %v1258, 1
    %v1470 = vrot.slane %v1259, 1
    %v1471 = vsel %vm1453, %v1469, %v1470
    %v1472 = vrot.slane %v1260, 1
    %v1473 = vsel %vm1453, %v1470, %v1472
    %v1474 = vrot.slane %v1261, 1
    %v1475 = vrot.slane %v1262, 1
    %v1476 = vsel %vm1453, %v1474, %v1475
    %v1477 = vrot.slane %v1263, 1
    %v1478 = vsel %vm1453, %v1475, %v1477
    %v1479 = vrot.slane %v1264, 1
    %v1480 = vrot.slane %v1265, 1
    %v1481 = vsel %vm1453, %v1479, %v1480
    %v1482 = vrot.slane %v1266, 1
    %v1483 = vsel %vm1453, %v1480, %v1482
    %v1484 = vrot.slane %v1267, 1
    %v1485 = vrot.slane %v1268, 1
    %v1486 = vsel %vm1453, %v1484, %v1485
    %v1487 = vrot.slane %v1269, 1
    %v1488 = vsel %vm1453, %v1485, %v1487
    %v1489 = vrot.slane %v1270, 1
    %v1490 = vrot.slane %v1271, 1
    %v1491 = vsel %vm1453, %v1489, %v1490
    %v1492 = vrot.slane %v1272, 1
    %v1493 = vsel %vm1453, %v1490, %v1492
    %v1494 = vrot.slane %v1273, 1
    %v1495 = vrot.slane %v1274, 1
    %v1496 = vsel %vm1453, %v1494, %v1495
    %v1497 = vrot.slane %v1275, 1
    %v1498 = vsel %vm1453, %v1495, %v1497
    %v1499 = vrot.slane %v1276, 1
    %v1500 = vrot.slane %v1277, 1
    %v1501 = vsel %vm1453, %v1499, %v1500
    %v1502 = vrot.slane %v1278, 1
    %v1503 = vsel %vm1453, %v1500, %v1502
    %v1504 = vrot.slane %v1279, 1
    %v1505 = vrot.slane %v1280, 1
    %v1506 = vsel %vm1453, %v1504, %v1505
    %v1507 = vrot.slane %v1281, 1
    %v1508 = vsel %vm1453, %v1505, %v1507
    %v1509 = vrot.slane %v1282, 1
    %v1510 = vrot.slane %v1283, 1
    %v1511 = vsel %vm1453, %v1509, %v1510
    %v1512 = vrot.slane %v1284, 1
    %v1513 = vsel %vm1453, %v1510, %v1512
    %v1514 = vrot.slane %v1285, 1
    %v1515 = vrot.slane %v1286, 1
    %v1516 = vsel %vm1453, %v1514, %v1515
    %v1517 = vrot.slane %v1287, 1
    %v1518 = vsel %vm1453, %v1515, %v1517
    %v1519 = vrot.slane %v1288, 1
    %v1520 = vrot.slane %v1289, 1
    %v1521 = vsel %vm1453, %v1519, %v1520
    %v1522 = vrot.slane %v1290, 1
    %v1523 = vsel %vm1453, %v1520, %v1522
    %v1524 = vrot.slane %v1291, 1
    %v1525 = vrot.slane %v1292, 1
    %v1526 = vsel %vm1453, %v1524, %v1525
    %v1527 = vrot.slane %v1293, 1
    %v1528 = vsel %vm1453, %v1525, %v1527
    %v1529 = vrot.slane %v1294, 1
    %v1530 = vrot.slane %v1295, 1
    %v1531 = vsel %vm1453, %v1529, %v1530
    %v1532 = vrot.slane %v1296, 1
    %v1533 = vsel %vm1453, %v1530, %v1532
    %v1534 = vrot.slane %v1303, 1
    %v1535 = vrot.slane %v1304, 1
    %v1536 = vsel %vm1453, %v1534, %v1535
    %v1537 = vrot.slane %v1305, 1
    %v1538 = vsel %vm1453, %v1535, %v1537
    %v1539 = vrot.slane %v1306, 1
    %v1540 = vrot.slane %v1307, 1
    %v1541 = vsel %vm1453, %v1539, %v1540
    %v1542 = vrot.slane %v1308, 1
    %v1543 = vsel %vm1453, %v1540, %v1542
    %v1544 = vrot.slane %v1309, 1
    %v1545 = vrot.slane %v1310, 1
    %v1546 = vsel %vm1453, %v1544, %v1545
    %v1547 = vrot.slane %v1311, 1
    %v1548 = vsel %vm1453, %v1545, %v1547
    %v1549 = vrot.slane %v1312, 1
    %v1550 = vrot.slane %v1313, 1
    %v1551 = vsel %vm1453, %v1549, %v1550
    %v1552 = vrot.slane %v1314, 1
    %v1553 = vsel %vm1453, %v1550, %v1552
    %v1554 = vrot.slane %v1315, 1
    %v1555 = vrot.slane %v1316, 1
    %v1556 = vsel %vm1453, %v1554, %v1555
    %v1557 = vrot.slane %v1317, 1
    %v1558 = vsel %vm1453, %v1555, %v1557
    %v1559 = vrot.slane %v1318, 1
    %v1560 = vrot.slane %v1319, 1
    %v1561 = vsel %vm1453, %v1559, %v1560
    %v1562 = vrot.slane %v1320, 1
    %v1563 = vsel %vm1453, %v1560, %v1562
    %v1564 = vrot.slane %v1321, 1
    %v1565 = vrot.slane %v1322, 1
    %v1566 = vsel %vm1453, %v1564, %v1565
    %v1567 = vrot.slane %v1323, 1
    %v1568 = vsel %vm1453, %v1565, %v1567
    %v1569 = vrot.slane %v1324, 1
    %v1570 = vrot.slane %v1325, 1
    %v1571 = vsel %vm1453, %v1569, %v1570
    %v1572 = vrot.slane %v1326, 1
    %v1573 = vsel %vm1453, %v1570, %v1572
    %v1574 = vrot.slane %v1327, 1
    %v1575 = vrot.slane %v1328, 1
    %v1576 = vsel %vm1453, %v1574, %v1575
    %v1577 = vrot.slane %v1329, 1
    %v1578 = vsel %vm1453, %v1575, %v1577
    %v1579 = vrot.slane %v1330, 1
    %v1580 = vrot.slane %v1331, 1
    %v1581 = vsel %vm1453, %v1579, %v1580
    %v1582 = vrot.slane %v1332, 1
    %v1583 = vsel %vm1453, %v1580, %v1582
    %v1584 = vrot.slane %v1333, 1
    %v1585 = vrot.slane %v1334, 1
    %v1586 = vsel %vm1453, %v1584, %v1585
    %v1587 = vrot.slane %v1335, 1
    %v1588 = vsel %vm1453, %v1585, %v1587
    %v1589 = vrot.slane %v1336, 1
    %v1590 = vrot.slane %v1337, 1
    %v1591 = vsel %vm1453, %v1589, %v1590
    %v1592 = vrot.slane %v1338, 1
    %v1593 = vsel %vm1453, %v1590, %v1592
    %v1594 = vrot.slane %v1339, 1
    %v1595 = vrot.slane %v1340, 1
    %v1596 = vsel %vm1453, %v1594, %v1595
    %v1597 = vrot.slane %v1341, 1
    %v1598 = vsel %vm1453, %v1595, %v1597
    %v1599 = vrot.slane %v1342, 1
    %v1600 = vrot.slane %v1343, 1
    %v1601 = vsel %vm1453, %v1599, %v1600
    %v1602 = vrot.slane %v1344, 1
    %v1603 = vsel %vm1453, %v1600, %v1602
    %v1604 = vrot.slane %v1345, 1
    %v1605 = vrot.slane %v1346, 1
    %v1606 = vsel %vm1453, %v1604, %v1605
    %v1607 = vrot.slane %v1347, 1
    %v1608 = vsel %vm1453, %v1605, %v1607
    %v1609 = vrot.slane %v1348, 1
    %v1610 = vrot.slane %v1349, 1
    %v1611 = vsel %vm1453, %v1609, %v1610
    %v1612 = vrot.slane %v1350, 1
    %v1613 = vsel %vm1453, %v1610, %v1612
    %vm1678 = vcmask 1045504
    %v1679 = vrot.slane %v1249, 2
    %v1680 = vrot.slane %v1250, 2
    %v1681 = vsel %vm1678, %v1679, %v1680
    %v1682 = vrot.slane %v1251, 2
    %v1683 = vsel %vm1678, %v1680, %v1682
    %v1684 = vrot.slane %v1252, 2
    %v1685 = vrot.slane %v1253, 2
    %v1686 = vsel %vm1678, %v1684, %v1685
    %v1687 = vrot.slane %v1254, 2
    %v1688 = vsel %vm1678, %v1685, %v1687
    %v1689 = vrot.slane %v1255, 2
    %v1690 = vrot.slane %v1256, 2
    %v1691 = vsel %vm1678, %v1689, %v1690
    %v1692 = vrot.slane %v1257, 2
    %v1693 = vsel %vm1678, %v1690, %v1692
    %v1694 = vrot.slane %v1258, 2
    %v1695 = vrot.slane %v1259, 2
    %v1696 = vsel %vm1678, %v1694, %v1695
    %v1697 = vrot.slane %v1260, 2
    %v1698 = vsel %vm1678, %v1695, %v1697
    %v1699 = vrot.slane %v1261, 2
    %v1700 = vrot.slane %v1262, 2
    %v1701 = vsel %vm1678, %v1699, %v1700
    %v1702 = vrot.slane %v1263, 2
    %v1703 = vsel %vm1678, %v1700, %v1702
    %v1704 = vrot.slane %v1264, 2
    %v1705 = vrot.slane %v1265, 2
    %v1706 = vsel %vm1678, %v1704, %v1705
    %v1707 = vrot.slane %v1266, 2
    %v1708 = vsel %vm1678, %v1705, %v1707
    %v1709 = vrot.slane %v1267, 2
    %v1710 = vrot.slane %v1268, 2
    %v1711 = vsel %vm1678, %v1709, %v1710
    %v1712 = vrot.slane %v1269, 2
    %v1713 = vsel %vm1678, %v1710, %v1712
    %v1714 = vrot.slane %v1270, 2
    %v1715 = vrot.slane %v1271, 2
    %v1716 = vsel %vm1678, %v1714, %v1715
    %v1717 = vrot.slane %v1272, 2
    %v1718 = vsel %vm1678, %v1715, %v1717
    %v1719 = vrot.slane %v1273, 2
    %v1720 = vrot.slane %v1274, 2
    %v1721 = vsel %vm1678, %v1719, %v1720
    %v1722 = vrot.slane %v1275, 2
    %v1723 = vsel %vm1678, %v1720, %v1722
    %v1724 = vrot.slane %v1276, 2
    %v1725 = vrot.slane %v1277, 2
    %v1726 = vsel %vm1678, %v1724, %v1725
    %v1727 = vrot.slane %v1278, 2
    %v1728 = vsel %vm1678, %v1725, %v1727
    %v1729 = vrot.slane %v1279, 2
    %v1730 = vrot.slane %v1280, 2
    %v1731 = vsel %vm1678, %v1729, %v1730
    %v1732 = vrot.slane %v1281, 2
    %v1733 = vsel %vm1678, %v1730, %v1732
    %v1734 = vrot.slane %v1282, 2
    %v1735 = vrot.slane %v1283, 2
    %v1736 = vsel %vm1678, %v1734, %v1735
    %v1737 = vrot.slane %v1284, 2
    %v1738 = vsel %vm1678, %v1735, %v1737
    %v1739 = vrot.slane %v1285, 2
    %v1740 = vrot.slane %v1286, 2
    %v1741 = vsel %vm1678, %v1739, %v1740
    %v1742 = vrot.slane %v1287, 2
    %v1743 = vsel %vm1678, %v1740, %v1742
    %v1744 = vrot.slane %v1288, 2
    %v1745 = vrot.slane %v1289, 2
    %v1746 = vsel %vm1678, %v1744, %v1745
    %v1747 = vrot.slane %v1290, 2
    %v1748 = vsel %vm1678, %v1745, %v1747
    %v1749 = vrot.slane %v1291, 2
    %v1750 = vrot.slane %v1292, 2
    %v1751 = vsel %vm1678, %v1749, %v1750
    %v1752 = vrot.slane %v1293, 2
    %v1753 = vsel %vm1678, %v1750, %v1752
    %v1754 = vrot.slane %v1294, 2
    %v1755 = vrot.slane %v1295, 2
    %v1756 = vsel %vm1678, %v1754, %v1755
    %v1757 = vrot.slane %v1296, 2
    %v1758 = vsel %vm1678, %v1755, %v1757
    %v1759 = vrot.slane %v1303, 2
    %v1760 = vrot.slane %v1304, 2
    %v1761 = vsel %vm1678, %v1759, %v1760
    %v1762 = vrot.slane %v1305, 2
    %v1763 = vsel %vm1678, %v1760, %v1762
    %v1764 = vrot.slane %v1306, 2
    %v1765 = vrot.slane %v1307, 2
    %v1766 = vsel %vm1678, %v1764, %v1765
    %v1767 = vrot.slane %v1308, 2
    %v1768 = vsel %vm1678, %v1765, %v1767
    %v1769 = vrot.slane %v1309, 2
    %v1770 = vrot.slane %v1310, 2
    %v1771 = vsel %vm1678, %v1769, %v1770
    %v1772 = vrot.slane %v1311, 2
    %v1773 = vsel %vm1678, %v1770, %v1772
    %v1774 = vrot.slane %v1312, 2
    %v1775 = vrot.slane %v1313, 2
    %v1776 = vsel %vm1678, %v1774, %v1775
    %v1777 = vrot.slane %v1314, 2
    %v1778 = vsel %vm1678, %v1775, %v1777
    %v1779 = vrot.slane %v1315, 2
    %v1780 = vrot.slane %v1316, 2
    %v1781 = vsel %vm1678, %v1779, %v1780
    %v1782 = vrot.slane %v1317, 2
    %v1783 = vsel %vm1678, %v1780, %v1782
    %v1784 = vrot.slane %v1318, 2
    %v1785 = vrot.slane %v1319, 2
    %v1786 = vsel %vm1678, %v1784, %v1785
    %v1787 = vrot.slane %v1320, 2
    %v1788 = vsel %vm1678, %v1785, %v1787
    %v1789 = vrot.slane %v1321, 2
    %v1790 = vrot.slane %v1322, 2
    %v1791 = vsel %vm1678, %v1789, %v1790
    %v1792 = vrot.slane %v1323, 2
    %v1793 = vsel %vm1678, %v1790, %v1792
    %v1794 = vrot.slane %v1324, 2
    %v1795 = vrot.slane %v1325, 2
    %v1796 = vsel %vm1678, %v1794, %v1795
    %v1797 = vrot.slane %v1326, 2
    %v1798 = vsel %vm1678, %v1795, %v1797
    %v1799 = vrot.slane %v1327, 2
    %v1800 = vrot.slane %v1328, 2
    %v1801 = vsel %vm1678, %v1799, %v1800
    %v1802 = vrot.slane %v1329, 2
    %v1803 = vsel %vm1678, %v1800, %v1802
    %v1804 = vrot.slane %v1330, 2
    %v1805 = vrot.slane %v1331, 2
    %v1806 = vsel %vm1678, %v1804, %v1805
    %v1807 = vrot.slane %v1332, 2
    %v1808 = vsel %vm1678, %v1805, %v1807
    %v1809 = vrot.slane %v1333, 2
    %v1810 = vrot.slane %v1334, 2
    %v1811 = vsel %vm1678, %v1809, %v1810
    %v1812 = vrot.slane %v1335, 2
    %v1813 = vsel %vm1678, %v1810, %v1812
    %v1814 = vrot.slane %v1336, 2
    %v1815 = vrot.slane %v1337, 2
    %v1816 = vsel %vm1678, %v1814, %v1815
    %v1817 = vrot.slane %v1338, 2
    %v1818 = vsel %vm1678, %v1815, %v1817
    %v1819 = vrot.slane %v1339, 2
    %v1820 = vrot.slane %v1340, 2
    %v1821 = vsel %vm1678, %v1819, %v1820
    %v1822 = vrot.slane %v1341, 2
    %v1823 = vsel %vm1678, %v1820, %v1822
    %v1824 = vrot.slane %v1342, 2
    %v1825 = vrot.slane %v1343, 2
    %v1826 = vsel %vm1678, %v1824, %v1825
    %v1827 = vrot.slane %v1344, 2
    %v1828 = vsel %vm1678, %v1825, %v1827
    %v1829 = vrot.slane %v1345, 2
    %v1830 = vrot.slane %v1346, 2
    %v1831 = vsel %vm1678, %v1829, %v1830
    %v1832 = vrot.slane %v1347, 2
    %v1833 = vsel %vm1678, %v1830, %v1832
    %v1834 = vrot.slane %v1348, 2
    %v1835 = vrot.slane %v1349, 2
    %v1836 = vsel %vm1678, %v1834, %v1835
    %v1837 = vrot.slane %v1350, 2
    %v1838 = vsel %vm1678, %v1835, %v1837
    %v1909 = vrot.slane %v1297, 1
    %v1910 = vrot.slane %v1298, 1
    %v1911 = vsel %vm1453, %v1909, %v1910
    %v1912 = vrot.slane %v1299, 1
    %v1913 = vsel %vm1453, %v1910, %v1912
    %v1914 = vrot.slane %v1351, 1
    %v1915 = vrot.slane %v1352, 1
    %v1916 = vsel %vm1453, %v1914, %v1915
    %v1917 = vrot.slane %v1353, 1
    %v1918 = vsel %vm1453, %v1915, %v1917
    %v1923 = vrot.slane %v1297, 2
    %v1924 = vrot.slane %v1298, 2
    %v1925 = vsel %vm1678, %v1923, %v1924
    %v1926 = vrot.slane %v1299, 2
    %v1927 = vsel %vm1678, %v1924, %v1926
    %v1928 = vrot.slane %v1351, 2
    %v1929 = vrot.slane %v1352, 2
    %v1930 = vsel %vm1678, %v1928, %v1929
    %v1931 = vrot.slane %v1353, 2
    %v1932 = vsel %vm1678, %v1929, %v1931
    %v1943 = vrot.slane %v1300, 1
    %v1944 = vrot.slane %v1301, 1
    %v1945 = vsel %vm1453, %v1943, %v1944
    %v1946 = vrot.slane %v1302, 1
    %v1947 = vsel %vm1453, %v1944, %v1946
    %v1948 = vrot.slane %v1354, 1
    %v1949 = vrot.slane %v1355, 1
    %v1950 = vsel %vm1453, %v1948, %v1949
    %v1951 = vrot.slane %v1356, 1
    %v1952 = vsel %vm1453, %v1949, %v1951
    %v1957 = vrot.slane %v1300, 2
    %v1958 = vrot.slane %v1301, 2
    %v1959 = vsel %vm1678, %v1957, %v1958
    %v1960 = vrot.slane %v1302, 2
    %v1961 = vsel %vm1678, %v1958, %v1960
    %v1962 = vrot.slane %v1354, 2
    %v1963 = vrot.slane %v1355, 2
    %v1964 = vsel %vm1678, %v1962, %v1963
    %v1965 = vrot.slane %v1356, 2
    %v1966 = vsel %vm1678, %v1963, %v1965
    %v1971 = vpack.c.bf16 %v1250, %v1249
    %v1972 = vpack.c.bf16 %v1458, %v1456
    %v1973 = vpack.c.bf16 %v1683, %v1681
    %v1974 = vpack.c.bf16 %v1253, %v1252
    %v1975 = vpack.c.bf16 %v1463, %v1461
    %v1976 = vpack.c.bf16 %v1688, %v1686
    %v1977 = vpack.c.bf16 %v1256, %v1255
    %v1978 = vpack.c.bf16 %v1468, %v1466
    %v1979 = vpack.c.bf16 %v1693, %v1691
    %v1980 = vpack.c.bf16 %v1259, %v1258
    %v1981 = vpack.c.bf16 %v1473, %v1471
    %v1982 = vpack.c.bf16 %v1698, %v1696
    %v1983 = vpack.c.bf16 %v1262, %v1261
    %v1984 = vpack.c.bf16 %v1478, %v1476
    %v1985 = vpack.c.bf16 %v1703, %v1701
    %v1986 = vpack.c.bf16 %v1265, %v1264
    %v1987 = vpack.c.bf16 %v1483, %v1481
    %v1988 = vpack.c.bf16 %v1708, %v1706
    %v1989 = vpack.c.bf16 %v1268, %v1267
    %v1990 = vpack.c.bf16 %v1488, %v1486
    %v1991 = vpack.c.bf16 %v1713, %v1711
    %v1992 = vpack.c.bf16 %v1271, %v1270
    %v1993 = vpack.c.bf16 %v1493, %v1491
    %v1994 = vpack.c.bf16 %v1718, %v1716
    %v1995 = vpack.c.bf16 %v1274, %v1273
    %v1996 = vpack.c.bf16 %v1498, %v1496
    %v1997 = vpack.c.bf16 %v1723, %v1721
    %v1998 = vpack.c.bf16 %v1277, %v1276
    %v1999 = vpack.c.bf16 %v1503, %v1501
    %v2000 = vpack.c.bf16 %v1728, %v1726
    %v2001 = vpack.c.bf16 %v1280, %v1279
    %v2002 = vpack.c.bf16 %v1508, %v1506
    %v2003 = vpack.c.bf16 %v1733, %v1731
    %v2004 = vpack.c.bf16 %v1283, %v1282
    %v2005 = vpack.c.bf16 %v1513, %v1511
    %v2006 = vpack.c.bf16 %v1738, %v1736
    %v2007 = vpack.c.bf16 %v1286, %v1285
    %v2008 = vpack.c.bf16 %v1518, %v1516
    %v2009 = vpack.c.bf16 %v1743, %v1741
    %v2010 = vpack.c.bf16 %v1289, %v1288
    %v2011 = vpack.c.bf16 %v1523, %v1521
    %v2012 = vpack.c.bf16 %v1748, %v1746
    %v2013 = vpack.c.bf16 %v1292, %v1291
    %v2014 = vpack.c.bf16 %v1528, %v1526
    %v2015 = vpack.c.bf16 %v1753, %v1751
    %v2016 = vpack.c.bf16 %v1295, %v1294
    %v2017 = vpack.c.bf16 %v1533, %v1531
    %v2018 = vpack.c.bf16 %v1758, %v1756
    %v2019 = vpack.c.bf16 %v1298, %v1297
    %v2020 = vpack.c.bf16 %v1913, %v1911
    %v2021 = vpack.c.bf16 %v1927, %v1925
    %v2022 = vpack.c.bf16 %v1301, %v1300
    %v2023 = vpack.c.bf16 %v1947, %v1945
    %v2024 = vpack.c.bf16 %v1961, %v1959
    %v2025 = vpack.c.bf16 %v1304, %v1303
    %v2026 = vpack.c.bf16 %v1538, %v1536
    %v2027 = vpack.c.bf16 %v1763, %v1761
    %v2028 = vpack.c.bf16 %v1307, %v1306
    %v2029 = vpack.c.bf16 %v1543, %v1541
    %v2030 = vpack.c.bf16 %v1768, %v1766
    %v2031 = vpack.c.bf16 %v1310, %v1309
    %v2032 = vpack.c.bf16 %v1548, %v1546
    %v2033 = vpack.c.bf16 %v1773, %v1771
    %v2034 = vpack.c.bf16 %v1313, %v1312
    %v2035 = vpack.c.bf16 %v1553, %v1551
    %v2036 = vpack.c.bf16 %v1778, %v1776
    %v2037 = vpack.c.bf16 %v1316, %v1315
    %v2038 = vpack.c.bf16 %v1558, %v1556
    %v2039 = vpack.c.bf16 %v1783, %v1781
    %v2040 = vpack.c.bf16 %v1319, %v1318
    %v2041 = vpack.c.bf16 %v1563, %v1561
    %v2042 = vpack.c.bf16 %v1788, %v1786
    %v2043 = vpack.c.bf16 %v1322, %v1321
    %v2044 = vpack.c.bf16 %v1568, %v1566
    %v2045 = vpack.c.bf16 %v1793, %v1791
    %v2046 = vpack.c.bf16 %v1325, %v1324
    %v2047 = vpack.c.bf16 %v1573, %v1571
    %v2048 = vpack.c.bf16 %v1798, %v1796
    %v2049 = vpack.c.bf16 %v1328, %v1327
    %v2050 = vpack.c.bf16 %v1578, %v1576
    %v2051 = vpack.c.bf16 %v1803, %v1801
    %v2052 = vpack.c.bf16 %v1331, %v1330
    %v2053 = vpack.c.bf16 %v1583, %v1581
    %v2054 = vpack.c.bf16 %v1808, %v1806
    %v2055 = vpack.c.bf16 %v1334, %v1333
    %v2056 = vpack.c.bf16 %v1588, %v1586
    %v2057 = vpack.c.bf16 %v1813, %v1811
    %v2058 = vpack.c.bf16 %v1337, %v1336
    %v2059 = vpack.c.bf16 %v1593, %v1591
    %v2060 = vpack.c.bf16 %v1818, %v1816
    %v2061 = vpack.c.bf16 %v1340, %v1339
    %v2062 = vpack.c.bf16 %v1598, %v1596
    %v2063 = vpack.c.bf16 %v1823, %v1821
    %v2064 = vpack.c.bf16 %v1343, %v1342
    %v2065 = vpack.c.bf16 %v1603, %v1601
    %v2066 = vpack.c.bf16 %v1828, %v1826
    %v2067 = vpack.c.bf16 %v1346, %v1345
    %v2068 = vpack.c.bf16 %v1608, %v1606
    %v2069 = vpack.c.bf16 %v1833, %v1831
    %v2070 = vpack.c.bf16 %v1349, %v1348
    %v2071 = vpack.c.bf16 %v1613, %v1611
    %v2072 = vpack.c.bf16 %v1838, %v1836
    %v2073 = vpack.c.bf16 %v1352, %v1351
    %v2074 = vpack.c.bf16 %v1918, %v1916
    %v2075 = vpack.c.bf16 %v1932, %v1930
    %v2076 = vpack.c.bf16 %v1355, %v1354
    %v2077 = vpack.c.bf16 %v1952, %v1950
    %v2078 = vpack.c.bf16 %v1966, %v1964
    %v2079 = vld [vmem:[#allocation8] sm:$0xf]
    %v2080 = vld [vmem:[#allocation8 + $0x4] sm:$0xf]
    %v2081 = vld [vmem:[#allocation8 + $0x8] sm:$0xf]
    %v2082 = vld [vmem:[#allocation8 + $0xc] sm:$0xf]
    %v2083 = vld [vmem:[#allocation8 + $0x10] sm:$0xf]
    %v2084 = vld [vmem:[#allocation8 + $0x14] sm:$0xf]
    %v2085 = vld [vmem:[#allocation8 + $0x18] sm:$0xf]
    %v2086 = vld [vmem:[#allocation8 + $0x1c] sm:$0xf]
    %v2087 = vld [vmem:[#allocation8 + $0x20] sm:$0xf]
    %v2088 = vld [vmem:[#allocation8 + $0x24] sm:$0xf]
    %v2089 = vld [vmem:[#allocation8 + $0x28] sm:$0xf]
    %v2090 = vld [vmem:[#allocation8 + $0x2c] sm:$0xf]
    %v2091 = vld [vmem:[#allocation8 + $0x30] sm:$0xf]
    %v2092 = vld [vmem:[#allocation8 + $0x34] sm:$0xf]
    %v2093 = vld [vmem:[#allocation8 + $0x38] sm:$0xf]
    %v2094 = vld [vmem:[#allocation8 + $0x3c] sm:$0xf]
    %v2095 = vld [vmem:[#allocation8 + $0x40] sm:$0xf]
    %v2096 = vld [vmem:[#allocation8 + $0x44] sm:$0xf]
    %v2097 = vld [vmem:[#allocation8 + $0x48] sm:$0xf]
    %v2098 = vld [vmem:[#allocation8 + $0x4c] sm:$0xf]
    %v2099 = vld [vmem:[#allocation8 + $0x50] sm:$0xf]
    %v2100 = vld [vmem:[#allocation8 + $0x54] sm:$0xf]
    %v2101 = vld [vmem:[#allocation8 + $0x58] sm:$0xf]
    %v2102 = vld [vmem:[#allocation8 + $0x5c] sm:$0xf]
    %v2103 = vld [vmem:[#allocation8 + $0x60] sm:$0xf]
    %v2104 = vld [vmem:[#allocation8 + $0x64] sm:$0xf]
    %v2105 = vld [vmem:[#allocation8 + $0x68] sm:$0xf]
    %v2106 = vld [vmem:[#allocation8 + $0x6c] sm:$0xf]
    %v2107 = vld [vmem:[#allocation8 + $0x70] sm:$0xf]
    %v2108 = vld [vmem:[#allocation8 + $0x74] sm:$0xf]
    %v2109 = vld [vmem:[#allocation8 + $0x78] sm:$0xf]
    %v2110 = vld [vmem:[#allocation8 + $0x7c] sm:$0xf]
    %v2111 = vld [vmem:[#allocation8 + $0x80] sm:$0xf]
    %v2112 = vld [vmem:[#allocation8 + $0x84] sm:$0xf]
    %v2113 = vld [vmem:[#allocation8 + $0x88] sm:$0xf]
    %v2114 = vld [vmem:[#allocation8 + $0x8c] sm:$0xf]
    %v2115 = vld [vmem:[#allocation8 + $0x90] sm:$0xf]
    %v2116 = vld [vmem:[#allocation8 + $0x94] sm:$0xf]
    %v2117 = vld [vmem:[#allocation8 + $0x98] sm:$0xf]
    %v2118 = vld [vmem:[#allocation8 + $0x9c] sm:$0xf]
    %v2119 = vld [vmem:[#allocation8 + $0xa0] sm:$0xf]
    %v2120 = vld [vmem:[#allocation8 + $0xa4] sm:$0xf]
    %v2121 = vld [vmem:[#allocation8 + $0xa8] sm:$0xf]
    %v2122 = vld [vmem:[#allocation8 + $0xac] sm:$0xf]
    %v2123 = vld [vmem:[#allocation8 + $0xb0] sm:$0xf]
    %v2124 = vld [vmem:[#allocation8 + $0xb4] sm:$0xf]
    %v2125 = vld [vmem:[#allocation8 + $0xb8] sm:$0xf]
    %v2126 = vld [vmem:[#allocation8 + $0xbc] sm:$0xf]
    %v2127 = vld [vmem:[#allocation8 + $0xc0] sm:$0xf]
    %v2128 = vld [vmem:[#allocation8 + $0xc4] sm:$0xf]
    %v2129 = vld [vmem:[#allocation8 + $0xc8] sm:$0xf]
    %v2130 = vld [vmem:[#allocation8 + $0xcc] sm:$0xf]
    %v2131 = vld [vmem:[#allocation8 + $0xd0] sm:$0xf]
    %v2132 = vld [vmem:[#allocation8 + $0xd4] sm:$0xf]
    %v2133 = vld [vmem:[#allocation8 + $0xd8] sm:$0xf]
    %v2134 = vld [vmem:[#allocation8 + $0xdc] sm:$0xf]
    %v2135 = vld [vmem:[#allocation8 + $0xe0] sm:$0xf]
    %v2136 = vld [vmem:[#allocation8 + $0xe4] sm:$0xf]
    %v2137 = vld [vmem:[#allocation8 + $0xe8] sm:$0xf]
    %v2138 = vld [vmem:[#allocation8 + $0xec] sm:$0xf]
    %v2139 = vld [vmem:[#allocation8 + $0xf0] sm:$0xf]
    %v2140 = vld [vmem:[#allocation8 + $0xf4] sm:$0xf]
    %v2141 = vld [vmem:[#allocation8 + $0xf8] sm:$0xf]
    %v2142 = vld [vmem:[#allocation8 + $0xfc] sm:$0xf]
    %v2143 = vld [vmem:[#allocation8 + $0x100] sm:$0xf]
    %v2144 = vld [vmem:[#allocation8 + $0x104] sm:$0xf]
    %v2145 = vld [vmem:[#allocation8 + $0x108] sm:$0xf]
    %v2146 = vld [vmem:[#allocation8 + $0x10c] sm:$0xf]
    %v2147 = vld [vmem:[#allocation8 + $0x110] sm:$0xf]
    %v2148 = vld [vmem:[#allocation8 + $0x114] sm:$0xf]
    %v2149 = vld [vmem:[#allocation8 + $0x118] sm:$0xf]
    %v2150 = vld [vmem:[#allocation8 + $0x11c] sm:$0xf]
    %v2151 = vld [vmem:[#allocation8 + $0x120] sm:$0xf]
    %v2152 = vld [vmem:[#allocation8 + $0x124] sm:$0xf]
    %v2153 = vld [vmem:[#allocation8 + $0x128] sm:$0xf]
    %v2154 = vld [vmem:[#allocation8 + $0x12c] sm:$0xf]
    %v2155 = vld [vmem:[#allocation8 + $0x130] sm:$0xf]
    %v2156 = vld [vmem:[#allocation8 + $0x134] sm:$0xf]
    %v2157 = vld [vmem:[#allocation8 + $0x138] sm:$0xf]
    %v2158 = vld [vmem:[#allocation8 + $0x13c] sm:$0xf]
    %v2159 = vld [vmem:[#allocation8 + $0x140] sm:$0xf]
    %v2160 = vld [vmem:[#allocation8 + $0x144] sm:$0xf]
    %v2161 = vld [vmem:[#allocation8 + $0x148] sm:$0xf]
    %v2162 = vld [vmem:[#allocation8 + $0x14c] sm:$0xf]
    %v2163 = vld [vmem:[#allocation8 + $0x150] sm:$0xf]
    %v2164 = vld [vmem:[#allocation8 + $0x154] sm:$0xf]
    %v2165 = vld [vmem:[#allocation8 + $0x158] sm:$0xf]
    %v2166 = vld [vmem:[#allocation8 + $0x15c] sm:$0xf]
    %v2167 = vld [vmem:[#allocation8 + $0x160] sm:$0xf]
    %v2168 = vld [vmem:[#allocation8 + $0x164] sm:$0xf]
    %v2169 = vld [vmem:[#allocation8 + $0x168] sm:$0xf]
    %v2170 = vld [vmem:[#allocation8 + $0x16c] sm:$0xf]
    %v2171 = vld [vmem:[#allocation8 + $0x170] sm:$0xf]
    %v2172 = vld [vmem:[#allocation8 + $0x174] sm:$0xf]
    %v2173 = vld [vmem:[#allocation8 + $0x178] sm:$0xf]
    %v2174 = vld [vmem:[#allocation8 + $0x17c] sm:$0xf]
    %v2175 = vld [vmem:[#allocation8 + $0x180] sm:$0xf]
    %v2176 = vld [vmem:[#allocation8 + $0x184] sm:$0xf]
    %v2177 = vld [vmem:[#allocation8 + $0x188] sm:$0xf]
    %v2178 = vld [vmem:[#allocation8 + $0x18c] sm:$0xf]
    %v2179 = vld [vmem:[#allocation8 + $0x190] sm:$0xf]
    %v2180 = vld [vmem:[#allocation8 + $0x194] sm:$0xf]
    %v2181 = vld [vmem:[#allocation8 + $0x198] sm:$0xf]
    %v2182 = vld [vmem:[#allocation8 + $0x19c] sm:$0xf]
    %v2183 = vld [vmem:[#allocation8 + $0x1a0] sm:$0xf]
    %v2184 = vld [vmem:[#allocation8 + $0x1a4] sm:$0xf]
    %v2185 = vld [vmem:[#allocation8 + $0x1a8] sm:$0xf]
    %v2186 = vld [vmem:[#allocation8 + $0x1ac] sm:$0xf]
    %v2187 = vld [vmem:[#allocation8 + $0x1b0] sm:$0xf]
    %v2188 = vld [vmem:[#allocation8 + $0x1b4] sm:$0xf]
    %v2189 = vld [vmem:[#allocation8 + $0x1b8] sm:$0xf]
    %v2190 = vld [vmem:[#allocation8 + $0x1bc] sm:$0xf]
    %v2191 = vld [vmem:[#allocation8 + $0x1c0] sm:$0xf]
    %v2192 = vld [vmem:[#allocation8 + $0x1c4] sm:$0xf]
    %v2193 = vld [vmem:[#allocation8 + $0x1c8] sm:$0xf]
    %v2194 = vld [vmem:[#allocation8 + $0x1cc] sm:$0xf]
    %v2195 = vld [vmem:[#allocation8 + $0x1d0] sm:$0xf]
    %v2196 = vld [vmem:[#allocation8 + $0x1d4] sm:$0xf]
    %v2197 = vld [vmem:[#allocation8 + $0x1d8] sm:$0xf]
    %v2198 = vld [vmem:[#allocation8 + $0x1dc] sm:$0xf]
    %v2199 = vld [vmem:[#allocation8 + $0x1e0] sm:$0xf]
    %v2200 = vld [vmem:[#allocation8 + $0x1e4] sm:$0xf]
    %v2201 = vld [vmem:[#allocation8 + $0x1e8] sm:$0xf]
    %v2202 = vld [vmem:[#allocation8 + $0x1ec] sm:$0xf]
    %v2203 = vld [vmem:[#allocation8 + $0x1f0] sm:$0xf]
    %v2204 = vld [vmem:[#allocation8 + $0x1f4] sm:$0xf]
    %v2205 = vld [vmem:[#allocation8 + $0x1f8] sm:$0xf]
    %v2206 = vld [vmem:[#allocation8 + $0x1fc] sm:$0xf]
    %v2207 = vld [vmem:[#allocation8 + $0x200] sm:$0xf]
    %v2208 = vld [vmem:[#allocation8 + $0x204] sm:$0xf]
    %v2209 = vld [vmem:[#allocation8 + $0x208] sm:$0xf]
    %v2210 = vld [vmem:[#allocation8 + $0x20c] sm:$0xf]
    %v2211 = vld [vmem:[#allocation8 + $0x210] sm:$0xf]
    %v2212 = vld [vmem:[#allocation8 + $0x214] sm:$0xf]
    %v2213 = vld [vmem:[#allocation8 + $0x218] sm:$0xf]
    %v2214 = vld [vmem:[#allocation8 + $0x21c] sm:$0xf]
    %v2215 = vld [vmem:[#allocation8 + $0x220] sm:$0xf]
    %v2216 = vld [vmem:[#allocation8 + $0x224] sm:$0xf]
    %v2217 = vld [vmem:[#allocation8 + $0x228] sm:$0xf]
    %v2218 = vld [vmem:[#allocation8 + $0x22c] sm:$0xf]
    %v2219 = vld [vmem:[#allocation8 + $0x230] sm:$0xf]
    %v2220 = vld [vmem:[#allocation8 + $0x234] sm:$0xf]
    %v2221 = vld [vmem:[#allocation8 + $0x238] sm:$0xf]
    %v2222 = vld [vmem:[#allocation8 + $0x23c] sm:$0xf]
    %v2223 = vld [vmem:[%s6] sm:$0x1]
    %v2225 = vlaneseq
    %v2226 = vshrl.u32 %v2225, 7
    %v2227 = vsub.s32 0, %v2226
    %v2228 = vrot.slane %v2223, %v2227
    %v2374 = vunpack.c.l.b16 %v2079
    %v2375 = vunpack.c.l.b16 %v2080
    %v2376 = vunpack.c.l.b16 %v2081
    %v2377 = vunpack.c.l.b16 %v2082
    %v2378 = vunpack.c.l.b16 %v2083
    %v2379 = vunpack.c.l.b16 %v2084
    %v2380 = vunpack.c.l.b16 %v2085
    %v2381 = vunpack.c.l.b16 %v2086
    %v2382 = vunpack.c.l.b16 %v2087
    %v2383 = vunpack.c.l.b16 %v2088
    %v2384 = vunpack.c.l.b16 %v2089
    %v2385 = vunpack.c.l.b16 %v2090
    %v2386 = vunpack.c.l.b16 %v2091
    %v2387 = vunpack.c.l.b16 %v2092
    %v2388 = vunpack.c.l.b16 %v2093
    %v2389 = vunpack.c.l.b16 %v2094
    %v2390 = vunpack.c.l.b16 %v2095
    %v2391 = vunpack.c.l.b16 %v2096
    %v2392 = vunpack.c.l.b16 %v2097
    %v2393 = vunpack.c.l.b16 %v2098
    %v2394 = vunpack.c.l.b16 %v2099
    %v2395 = vunpack.c.l.b16 %v2100
    %v2396 = vunpack.c.l.b16 %v2101
    %v2397 = vunpack.c.l.b16 %v2102
    %v2398 = vunpack.c.l.b16 %v2103
    %v2399 = vunpack.c.l.b16 %v2104
    %v2400 = vunpack.c.l.b16 %v2105
    %v2401 = vunpack.c.l.b16 %v2106
    %v2402 = vunpack.c.l.b16 %v2107
    %v2403 = vunpack.c.l.b16 %v2108
    %v2404 = vunpack.c.l.b16 %v2109
    %v2405 = vunpack.c.l.b16 %v2110
    %v2406 = vunpack.c.l.b16 %v2111
    %v2407 = vunpack.c.l.b16 %v2112
    %v2408 = vunpack.c.l.b16 %v2113
    %v2409 = vunpack.c.l.b16 %v2114
    %v2410 = vunpack.c.l.b16 %v2115
    %v2411 = vunpack.c.l.b16 %v2116
    %v2412 = vunpack.c.l.b16 %v2117
    %v2413 = vunpack.c.l.b16 %v2118
    %v2414 = vunpack.c.l.b16 %v2119
    %v2415 = vunpack.c.l.b16 %v2120
    %v2416 = vunpack.c.l.b16 %v2121
    %v2417 = vunpack.c.l.b16 %v2122
    %v2418 = vunpack.c.l.b16 %v2123
    %v2419 = vunpack.c.l.b16 %v2124
    %v2420 = vunpack.c.l.b16 %v2125
    %v2421 = vunpack.c.l.b16 %v2126
    %v2422 = vunpack.c.l.b16 %v2127
    %v2423 = vunpack.c.l.b16 %v2128
    %v2424 = vunpack.c.l.b16 %v2129
    %v2425 = vunpack.c.l.b16 %v2130
    %v2426 = vunpack.c.l.b16 %v2131
    %v2427 = vunpack.c.l.b16 %v2132
    %v2428 = vunpack.c.l.b16 %v2133
    %v2429 = vunpack.c.l.b16 %v2134
    %v2430 = vunpack.c.l.b16 %v2135
    %v2431 = vunpack.c.l.b16 %v2136
    %v2432 = vunpack.c.l.b16 %v2137
    %v2433 = vunpack.c.l.b16 %v2138
    %v2434 = vunpack.c.l.b16 %v2139
    %v2435 = vunpack.c.l.b16 %v2140
    %v2436 = vunpack.c.l.b16 %v2141
    %v2437 = vunpack.c.l.b16 %v2142
    %v2438 = vunpack.c.l.b16 %v2143
    %v2439 = vunpack.c.l.b16 %v2144
    %v2440 = vunpack.c.l.b16 %v2145
    %v2441 = vunpack.c.l.b16 %v2146
    %v2442 = vunpack.c.l.b16 %v2147
    %v2443 = vunpack.c.l.b16 %v2148
    %v2444 = vunpack.c.l.b16 %v2149
    %v2445 = vunpack.c.l.b16 %v2150
    %v2446 = vunpack.c.l.b16 %v2151
    %v2447 = vunpack.c.l.b16 %v2152
    %v2448 = vunpack.c.l.b16 %v2153
    %v2449 = vunpack.c.l.b16 %v2154
    %v2450 = vunpack.c.l.b16 %v2155
    %v2451 = vunpack.c.l.b16 %v2156
    %v2452 = vunpack.c.l.b16 %v2157
    %v2453 = vunpack.c.l.b16 %v2158
    %v2454 = vunpack.c.l.b16 %v2159
    %v2455 = vunpack.c.l.b16 %v2160
    %v2456 = vunpack.c.l.b16 %v2161
    %v2457 = vunpack.c.l.b16 %v2162
    %v2458 = vunpack.c.l.b16 %v2163
    %v2459 = vunpack.c.l.b16 %v2164
    %v2460 = vunpack.c.l.b16 %v2165
    %v2461 = vunpack.c.l.b16 %v2166
    %v2462 = vunpack.c.l.b16 %v2167
    %v2463 = vunpack.c.l.b16 %v2168
    %v2464 = vunpack.c.l.b16 %v2169
    %v2465 = vunpack.c.l.b16 %v2170
    %v2466 = vunpack.c.l.b16 %v2171
    %v2467 = vunpack.c.l.b16 %v2172
    %v2468 = vunpack.c.l.b16 %v2173
    %v2469 = vunpack.c.l.b16 %v2174
    %v2470 = vunpack.c.l.b16 %v2175
    %v2471 = vunpack.c.l.b16 %v2176
    %v2472 = vunpack.c.l.b16 %v2177
    %v2473 = vunpack.c.l.b16 %v2178
    %v2474 = vunpack.c.l.b16 %v2179
    %v2475 = vunpack.c.l.b16 %v2180
    %v2476 = vunpack.c.l.b16 %v2181
    %v2477 = vunpack.c.l.b16 %v2182
    %v2478 = vunpack.c.l.b16 %v2183
    %v2479 = vunpack.c.l.b16 %v2184
    %v2480 = vunpack.c.l.b16 %v2185
    %v2481 = vunpack.c.l.b16 %v2186
    %v2482 = vunpack.c.l.b16 %v2187
    %v2483 = vunpack.c.l.b16 %v2188
    %v2484 = vunpack.c.l.b16 %v2189
    %v2485 = vunpack.c.l.b16 %v2190
    %v2486 = vunpack.c.l.b16 %v2191
    %v2487 = vunpack.c.l.b16 %v2192
    %v2488 = vunpack.c.l.b16 %v2193
    %v2489 = vunpack.c.l.b16 %v2194
    %v2490 = vunpack.c.l.b16 %v2195
    %v2491 = vunpack.c.l.b16 %v2196
    %v2492 = vunpack.c.l.b16 %v2197
    %v2493 = vunpack.c.l.b16 %v2198
    %v2494 = vunpack.c.l.b16 %v2199
    %v2495 = vunpack.c.l.b16 %v2200
    %v2496 = vunpack.c.l.b16 %v2201
    %v2497 = vunpack.c.l.b16 %v2202
    %v2498 = vunpack.c.l.b16 %v2203
    %v2499 = vunpack.c.l.b16 %v2204
    %v2500 = vunpack.c.l.b16 %v2205
    %v2501 = vunpack.c.l.b16 %v2206
    %v2502 = vunpack.c.l.b16 %v2207
    %v2503 = vunpack.c.l.b16 %v2208
    %v2504 = vunpack.c.l.b16 %v2209
    %v2505 = vunpack.c.l.b16 %v2210
    %v2506 = vunpack.c.l.b16 %v2211
    %v2507 = vunpack.c.l.b16 %v2212
    %v2508 = vunpack.c.l.b16 %v2213
    %v2509 = vunpack.c.l.b16 %v2214
    %v2510 = vunpack.c.l.b16 %v2215
    %v2511 = vunpack.c.l.b16 %v2216
    %v2512 = vunpack.c.l.b16 %v2217
    %v2513 = vunpack.c.l.b16 %v2218
    %v2514 = vunpack.c.l.b16 %v2219
    %v2515 = vunpack.c.l.b16 %v2220
    %v2516 = vunpack.c.l.b16 %v2221
    %v2517 = vunpack.c.l.b16 %v2222
    %v2518 = vpack.c.b16 %v2375, %v2374
    %v2519 = vpack.c.b16 %v2377, %v2376
    %v2520 = vpack.c.b16 %v2379, %v2378
    %v2521 = vpack.c.b16 %v2381, %v2380
    %v2522 = vpack.c.b16 %v2383, %v2382
    %v2523 = vpack.c.b16 %v2385, %v2384
    %v2524 = vpack.c.b16 %v2387, %v2386
    %v2525 = vpack.c.b16 %v2389, %v2388
    %v2526 = vpack.c.b16 %v2391, %v2390
    %v2527 = vpack.c.b16 %v2393, %v2392
    %v2528 = vpack.c.b16 %v2395, %v2394
    %v2529 = vpack.c.b16 %v2397, %v2396
    %v2530 = vpack.c.b16 %v2399, %v2398
    %v2531 = vpack.c.b16 %v2401, %v2400
    %v2532 = vpack.c.b16 %v2403, %v2402
    %v2533 = vpack.c.b16 %v2405, %v2404
    %v2534 = vpack.c.b16 %v2407, %v2406
    %v2535 = vpack.c.b16 %v2409, %v2408
    %v2536 = vpack.c.b16 %v2411, %v2410
    %v2537 = vpack.c.b16 %v2413, %v2412
    %v2538 = vpack.c.b16 %v2415, %v2414
    %v2539 = vpack.c.b16 %v2417, %v2416
    %v2540 = vpack.c.b16 %v2419, %v2418
    %v2541 = vpack.c.b16 %v2421, %v2420
    %v2542 = vpack.c.b16 %v2423, %v2422
    %v2543 = vpack.c.b16 %v2425, %v2424
    %v2544 = vpack.c.b16 %v2427, %v2426
    %v2545 = vpack.c.b16 %v2429, %v2428
    %v2546 = vpack.c.b16 %v2431, %v2430
    %v2547 = vpack.c.b16 %v2433, %v2432
    %v2548 = vpack.c.b16 %v2435, %v2434
    %v2549 = vpack.c.b16 %v2437, %v2436
    %v2550 = vpack.c.b16 %v2439, %v2438
    %v2551 = vpack.c.b16 %v2441, %v2440
    %v2552 = vpack.c.b16 %v2443, %v2442
    %v2553 = vpack.c.b16 %v2445, %v2444
    %v2554 = vpack.c.b16 %v2447, %v2446
    %v2555 = vpack.c.b16 %v2449, %v2448
    %v2556 = vpack.c.b16 %v2451, %v2450
    %v2557 = vpack.c.b16 %v2453, %v2452
    %v2558 = vpack.c.b16 %v2455, %v2454
    %v2559 = vpack.c.b16 %v2457, %v2456
    %v2560 = vpack.c.b16 %v2459, %v2458
    %v2561 = vpack.c.b16 %v2461, %v2460
    %v2562 = vpack.c.b16 %v2463, %v2462
    %v2563 = vpack.c.b16 %v2465, %v2464
    %v2564 = vpack.c.b16 %v2467, %v2466
    %v2565 = vpack.c.b16 %v2469, %v2468
    %v2566 = vpack.c.b16 %v2471, %v2470
    %v2567 = vpack.c.b16 %v2473, %v2472
    %v2568 = vpack.c.b16 %v2475, %v2474
    %v2569 = vpack.c.b16 %v2477, %v2476
    %v2570 = vpack.c.b16 %v2479, %v2478
    %v2571 = vpack.c.b16 %v2481, %v2480
    %v2572 = vpack.c.b16 %v2483, %v2482
    %v2573 = vpack.c.b16 %v2485, %v2484
    %v2574 = vpack.c.b16 %v2487, %v2486
    %v2575 = vpack.c.b16 %v2489, %v2488
    %v2576 = vpack.c.b16 %v2491, %v2490
    %v2577 = vpack.c.b16 %v2493, %v2492
    %v2578 = vpack.c.b16 %v2495, %v2494
    %v2579 = vpack.c.b16 %v2497, %v2496
    %v2580 = vpack.c.b16 %v2499, %v2498
    %v2581 = vpack.c.b16 %v2501, %v2500
    %v2582 = vpack.c.b16 %v2503, %v2502
    %v2583 = vpack.c.b16 %v2505, %v2504
    %v2584 = vpack.c.b16 %v2507, %v2506
    %v2585 = vpack.c.b16 %v2509, %v2508
    %v2586 = vpack.c.b16 %v2511, %v2510
    %v2587 = vpack.c.b16 %v2513, %v2512
    %v2588 = vpack.c.b16 %v2515, %v2514
    %v2589 = vpack.c.b16 %v2517, %v2516
    %2662 = vmatprep.subr.bf16.mxu0 0
    %2663 = vmatpush1.bf16.msra.mxu0 %v2525
    %2664 = vmatprep.subr.bf16.mxu0 0
    %2665 = vmatpush1.bf16.msra.mxu0 %v2524
    %2666 = vmatprep.subr.bf16.mxu0 0
    %2667 = vmatpush1.bf16.msra.mxu0 %v2523
    %2668 = vmatprep.subr.bf16.mxu0 0
    %2669 = vmatpush1.bf16.msra.mxu0 %v2522
    %2670 = vmatprep.subr.bf16.mxu0 0
    %2671 = vmatpush1.bf16.msra.mxu0 %v2521
    %2672 = vmatprep.subr.bf16.mxu0 0
    %2673 = vmatpush1.bf16.msra.mxu0 %v2520
    %2674 = vmatprep.subr.bf16.mxu0 0
    %2675 = vmatpush1.bf16.msra.mxu0 %v2519
    %2676 = vmatprep.subr.bf16.mxu0 0
    %2677 = vmatpush1.bf16.msra.mxu0 %v2518
    %2678 = vmatprep.subr.bf16.mxu0 0
    %2679 = vmatpush2.bf16.msra.mxu0 %v2533
    %2680 = vmatprep.subr.bf16.mxu0 0
    %2681 = vmatpush2.bf16.msra.mxu0 %v2532
    %2682 = vmatprep.subr.bf16.mxu0 0
    %2683 = vmatpush2.bf16.msra.mxu0 %v2531
    %2684 = vmatprep.subr.bf16.mxu0 0
    %2685 = vmatpush2.bf16.msra.mxu0 %v2530
    %2686 = vmatprep.subr.bf16.mxu0 0
    %2687 = vmatpush2.bf16.msra.mxu0 %v2529
    %2688 = vmatprep.subr.bf16.mxu0 0
    %2689 = vmatpush2.bf16.msra.mxu0 %v2528
    %2690 = vmatprep.subr.bf16.mxu0 0
    %2691 = vmatpush2.bf16.msra.mxu0 %v2527
    %2692 = vmatprep.subr.bf16.mxu0 0
    %2693 = vmatpush2.bf16.msra.mxu0 %v2526
    %2694 = vmatprep.mubr.bf16.mxu0 %v1972
    %2695 = vmatmul.mubr.bf16.gmra.mxu0 %v1971
    %v2696 = vpop.f32.mrf.mxu0
    %v2697 = vadd.f32 %v2228, %v2696
    %v2698 = vpop.f32.mrf.mxu0
    %v2699 = vpop.f32.mrf.mxu0
    %v2700 = vadd.f32 %v2228, %v2699
    %v2701 = vpop.f32.mrf.mxu0
    %2702 = vmatprep.mubr.bf16.mxu0 %v1975
    %2703 = vmatmul.mubr.bf16.gmra.mxu0 %v1974
    %v2704 = vpop.f32.mrf.mxu0
    %v2705 = vadd.f32 %v2228, %v2704
    %v2706 = vpop.f32.mrf.mxu0
    %v2707 = vpop.f32.mrf.mxu0
    %v2708 = vadd.f32 %v2228, %v2707
    %v2709 = vpop.f32.mrf.mxu0
    %2710 = vmatprep.mubr.bf16.mxu0 %v1978
    %2711 = vmatmul.mubr.bf16.gmra.mxu0 %v1977
    %v2712 = vpop.f32.mrf.mxu0
    %v2713 = vadd.f32 %v2228, %v2712
    %v2714 = vpop.f32.mrf.mxu0
    %v2715 = vpop.f32.mrf.mxu0
    %v2716 = vadd.f32 %v2228, %v2715
    %v2717 = vpop.f32.mrf.mxu0
    %2718 = vmatprep.mubr.bf16.mxu0 %v1981
    %2719 = vmatmul.mubr.bf16.gmra.mxu0 %v1980
    %v2720 = vpop.f32.mrf.mxu0
    %v2721 = vadd.f32 %v2228, %v2720
    %v2722 = vpop.f32.mrf.mxu0
    %v2723 = vpop.f32.mrf.mxu0
    %v2724 = vadd.f32 %v2228, %v2723
    %v2725 = vpop.f32.mrf.mxu0
    %2726 = vmatprep.mubr.bf16.mxu0 %v1984
    %2727 = vmatmul.mubr.bf16.gmra.mxu0 %v1983
    %v2728 = vpop.f32.mrf.mxu0
    %v2729 = vadd.f32 %v2228, %v2728
    %v2730 = vpop.f32.mrf.mxu0
    %v2731 = vpop.f32.mrf.mxu0
    %v2732 = vadd.f32 %v2228, %v2731
    %v2733 = vpop.f32.mrf.mxu0
    %2734 = vmatprep.mubr.bf16.mxu0 %v1987
    %2735 = vmatmul.mubr.bf16.gmra.mxu0 %v1986
    %v2736 = vpop.f32.mrf.mxu0
    %v2737 = vadd.f32 %v2228, %v2736
    %v2738 = vpop.f32.mrf.mxu0
    %v2739 = vpop.f32.mrf.mxu0
    %v2740 = vadd.f32 %v2228, %v2739
    %v2741 = vpop.f32.mrf.mxu0
    %2742 = vmatprep.mubr.bf16.mxu0 %v1990
    %2743 = vmatmul.mubr.bf16.gmra.mxu0 %v1989
    %v2744 = vpop.f32.mrf.mxu0
    %v2745 = vadd.f32 %v2228, %v2744
    %v2746 = vpop.f32.mrf.mxu0
    %v2747 = vpop.f32.mrf.mxu0
    %v2748 = vadd.f32 %v2228, %v2747
    %v2749 = vpop.f32.mrf.mxu0
    %2750 = vmatprep.mubr.bf16.mxu0 %v1993
    %2751 = vmatmul.mubr.bf16.gmra.mxu0 %v1992
    %v2752 = vpop.f32.mrf.mxu0
    %v2753 = vadd.f32 %v2228, %v2752
    %v2754 = vpop.f32.mrf.mxu0
    %v2755 = vpop.f32.mrf.mxu0
    %v2756 = vadd.f32 %v2228, %v2755
    %v2757 = vpop.f32.mrf.mxu0
    %2758 = vmatprep.mubr.bf16.mxu0 %v1996
    %2759 = vmatmul.mubr.bf16.gmra.mxu0 %v1995
    %v2760 = vpop.f32.mrf.mxu0
    %v2761 = vadd.f32 %v2228, %v2760
    %v2762 = vpop.f32.mrf.mxu0
    %v2763 = vpop.f32.mrf.mxu0
    %v2764 = vadd.f32 %v2228, %v2763
    %v2765 = vpop.f32.mrf.mxu0
    %2766 = vmatprep.mubr.bf16.mxu0 %v1999
    %2767 = vmatmul.mubr.bf16.gmra.mxu0 %v1998
    %v2768 = vpop.f32.mrf.mxu0
    %v2769 = vadd.f32 %v2228, %v2768
    %v2770 = vpop.f32.mrf.mxu0
    %v2771 = vpop.f32.mrf.mxu0
    %v2772 = vadd.f32 %v2228, %v2771
    %v2773 = vpop.f32.mrf.mxu0
    %2774 = vmatprep.mubr.bf16.mxu0 %v2002
    %2775 = vmatmul.mubr.bf16.gmra.mxu0 %v2001
    %v2776 = vpop.f32.mrf.mxu0
    %v2777 = vadd.f32 %v2228, %v2776
    %v2778 = vpop.f32.mrf.mxu0
    %v2779 = vpop.f32.mrf.mxu0
    %v2780 = vadd.f32 %v2228, %v2779
    %v2781 = vpop.f32.mrf.mxu0
    %2782 = vmatprep.mubr.bf16.mxu0 %v2005
    %2783 = vmatmul.mubr.bf16.gmra.mxu0 %v2004
    %v2784 = vpop.f32.mrf.mxu0
    %v2785 = vadd.f32 %v2228, %v2784
    %v2786 = vpop.f32.mrf.mxu0
    %v2787 = vpop.f32.mrf.mxu0
    %v2788 = vadd.f32 %v2228, %v2787
    %v2789 = vpop.f32.mrf.mxu0
    %2790 = vmatprep.mubr.bf16.mxu0 %v2008
    %2791 = vmatmul.mubr.bf16.gmra.mxu0 %v2007
    %v2792 = vpop.f32.mrf.mxu0
    %v2793 = vadd.f32 %v2228, %v2792
    %v2794 = vpop.f32.mrf.mxu0
    %v2795 = vpop.f32.mrf.mxu0
    %v2796 = vadd.f32 %v2228, %v2795
    %v2797 = vpop.f32.mrf.mxu0
    %2798 = vmatprep.mubr.bf16.mxu0 %v2011
    %2799 = vmatmul.mubr.bf16.gmra.mxu0 %v2010
    %v2800 = vpop.f32.mrf.mxu0
    %v2801 = vadd.f32 %v2228, %v2800
    %v2802 = vpop.f32.mrf.mxu0
    %v2803 = vpop.f32.mrf.mxu0
    %v2804 = vadd.f32 %v2228, %v2803
    %v2805 = vpop.f32.mrf.mxu0
    %2806 = vmatprep.mubr.bf16.mxu0 %v2014
    %2807 = vmatmul.mubr.bf16.gmra.mxu0 %v2013
    %v2808 = vpop.f32.mrf.mxu0
    %v2809 = vadd.f32 %v2228, %v2808
    %v2810 = vpop.f32.mrf.mxu0
    %v2811 = vpop.f32.mrf.mxu0
    %v2812 = vadd.f32 %v2228, %v2811
    %v2813 = vpop.f32.mrf.mxu0
    %2814 = vmatprep.mubr.bf16.mxu0 %v2017
    %2815 = vmatmul.mubr.bf16.gmra.mxu0 %v2016
    %v2816 = vpop.f32.mrf.mxu0
    %v2817 = vadd.f32 %v2228, %v2816
    %v2818 = vpop.f32.mrf.mxu0
    %v2819 = vpop.f32.mrf.mxu0
    %v2820 = vadd.f32 %v2228, %v2819
    %v2821 = vpop.f32.mrf.mxu0
    %2822 = vmatprep.mubr.bf16.mxu0 %v2026
    %2823 = vmatmul.mubr.bf16.gmra.mxu0 %v2025
    %v2824 = vpop.f32.mrf.mxu0
    %v2825 = vadd.f32 %v2228, %v2824
    %v2826 = vpop.f32.mrf.mxu0
    %v2827 = vpop.f32.mrf.mxu0
    %v2828 = vadd.f32 %v2228, %v2827
    %v2829 = vpop.f32.mrf.mxu0
    %2830 = vmatprep.mubr.bf16.mxu0 %v2029
    %2831 = vmatmul.mubr.bf16.gmra.mxu0 %v2028
    %v2832 = vpop.f32.mrf.mxu0
    %v2833 = vadd.f32 %v2228, %v2832
    %v2834 = vpop.f32.mrf.mxu0
    %v2835 = vpop.f32.mrf.mxu0
    %v2836 = vadd.f32 %v2228, %v2835
    %v2837 = vpop.f32.mrf.mxu0
    %2838 = vmatprep.mubr.bf16.mxu0 %v2032
    %2839 = vmatmul.mubr.bf16.gmra.mxu0 %v2031
    %v2840 = vpop.f32.mrf.mxu0
    %v2841 = vadd.f32 %v2228, %v2840
    %v2842 = vpop.f32.mrf.mxu0
    %v2843 = vpop.f32.mrf.mxu0
    %v2844 = vadd.f32 %v2228, %v2843
    %v2845 = vpop.f32.mrf.mxu0
    %2846 = vmatprep.mubr.bf16.mxu0 %v2035
    %2847 = vmatmul.mubr.bf16.gmra.mxu0 %v2034
    %v2848 = vpop.f32.mrf.mxu0
    %v2849 = vadd.f32 %v2228, %v2848
    %v2850 = vpop.f32.mrf.mxu0
    %v2851 = vpop.f32.mrf.mxu0
    %v2852 = vadd.f32 %v2228, %v2851
    %v2853 = vpop.f32.mrf.mxu0
    %2854 = vmatprep.mubr.bf16.mxu0 %v2038
    %2855 = vmatmul.mubr.bf16.gmra.mxu0 %v2037
    %v2856 = vpop.f32.mrf.mxu0
    %v2857 = vadd.f32 %v2228, %v2856
    %v2858 = vpop.f32.mrf.mxu0
    %v2859 = vpop.f32.mrf.mxu0
    %v2860 = vadd.f32 %v2228, %v2859
    %v2861 = vpop.f32.mrf.mxu0
    %2862 = vmatprep.mubr.bf16.mxu0 %v2041
    %2863 = vmatmul.mubr.bf16.gmra.mxu0 %v2040
    %v2864 = vpop.f32.mrf.mxu0
    %v2865 = vadd.f32 %v2228, %v2864
    %v2866 = vpop.f32.mrf.mxu0
    %v2867 = vpop.f32.mrf.mxu0
    %v2868 = vadd.f32 %v2228, %v2867
    %v2869 = vpop.f32.mrf.mxu0
    %2870 = vmatprep.mubr.bf16.mxu0 %v2044
    %2871 = vmatmul.mubr.bf16.gmra.mxu0 %v2043
    %v2872 = vpop.f32.mrf.mxu0
    %v2873 = vadd.f32 %v2228, %v2872
    %v2874 = vpop.f32.mrf.mxu0
    %v2875 = vpop.f32.mrf.mxu0
    %v2876 = vadd.f32 %v2228, %v2875
    %v2877 = vpop.f32.mrf.mxu0
    %2878 = vmatprep.mubr.bf16.mxu0 %v2047
    %2879 = vmatmul.mubr.bf16.gmra.mxu0 %v2046
    %v2880 = vpop.f32.mrf.mxu0
    %v2881 = vadd.f32 %v2228, %v2880
    %v2882 = vpop.f32.mrf.mxu0
    %v2883 = vpop.f32.mrf.mxu0
    %v2884 = vadd.f32 %v2228, %v2883
    %v2885 = vpop.f32.mrf.mxu0
    %2886 = vmatprep.mubr.bf16.mxu0 %v2050
    %2887 = vmatmul.mubr.bf16.gmra.mxu0 %v2049
    %v2888 = vpop.f32.mrf.mxu0
    %v2889 = vadd.f32 %v2228, %v2888
    %v2890 = vpop.f32.mrf.mxu0
    %v2891 = vpop.f32.mrf.mxu0
    %v2892 = vadd.f32 %v2228, %v2891
    %v2893 = vpop.f32.mrf.mxu0
    %2894 = vmatprep.mubr.bf16.mxu0 %v2053
    %2895 = vmatmul.mubr.bf16.gmra.mxu0 %v2052
    %v2896 = vpop.f32.mrf.mxu0
    %v2897 = vadd.f32 %v2228, %v2896
    %v2898 = vpop.f32.mrf.mxu0
    %v2899 = vpop.f32.mrf.mxu0
    %v2900 = vadd.f32 %v2228, %v2899
    %v2901 = vpop.f32.mrf.mxu0
    %2902 = vmatprep.mubr.bf16.mxu0 %v2056
    %2903 = vmatmul.mubr.bf16.gmra.mxu0 %v2055
    %v2904 = vpop.f32.mrf.mxu0
    %v2905 = vadd.f32 %v2228, %v2904
    %v2906 = vpop.f32.mrf.mxu0
    %v2907 = vpop.f32.mrf.mxu0
    %v2908 = vadd.f32 %v2228, %v2907
    %v2909 = vpop.f32.mrf.mxu0
    %2910 = vmatprep.mubr.bf16.mxu0 %v2059
    %2911 = vmatmul.mubr.bf16.gmra.mxu0 %v2058
    %v2912 = vpop.f32.mrf.mxu0
    %v2913 = vadd.f32 %v2228, %v2912
    %v2914 = vpop.f32.mrf.mxu0
    %v2915 = vpop.f32.mrf.mxu0
    %v2916 = vadd.f32 %v2228, %v2915
    %v2917 = vpop.f32.mrf.mxu0
    %2918 = vmatprep.mubr.bf16.mxu0 %v2062
    %2919 = vmatmul.mubr.bf16.gmra.mxu0 %v2061
    %v2920 = vpop.f32.mrf.mxu0
    %v2921 = vadd.f32 %v2228, %v2920
    %v2922 = vpop.f32.mrf.mxu0
    %v2923 = vpop.f32.mrf.mxu0
    %v2924 = vadd.f32 %v2228, %v2923
    %v2925 = vpop.f32.mrf.mxu0
    %2926 = vmatprep.mubr.bf16.mxu0 %v2065
    %2927 = vmatmul.mubr.bf16.gmra.mxu0 %v2064
    %v2928 = vpop.f32.mrf.mxu0
    %v2929 = vadd.f32 %v2228, %v2928
    %v2930 = vpop.f32.mrf.mxu0
    %v2931 = vpop.f32.mrf.mxu0
    %v2932 = vadd.f32 %v2228, %v2931
    %v2933 = vpop.f32.mrf.mxu0
    %2934 = vmatprep.mubr.bf16.mxu0 %v2068
    %2935 = vmatmul.mubr.bf16.gmra.mxu0 %v2067
    %v2936 = vpop.f32.mrf.mxu0
    %v2937 = vadd.f32 %v2228, %v2936
    %v2938 = vpop.f32.mrf.mxu0
    %v2939 = vpop.f32.mrf.mxu0
    %v2940 = vadd.f32 %v2228, %v2939
    %v2941 = vpop.f32.mrf.mxu0
    %2942 = vmatprep.mubr.bf16.mxu0 %v2071
    %2943 = vmatmul.mubr.bf16.gmra.mxu0 %v2070
    %v2944 = vpop.f32.mrf.mxu0
    %v2945 = vadd.f32 %v2228, %v2944
    %v2946 = vpop.f32.mrf.mxu0
    %v2947 = vpop.f32.mrf.mxu0
    %v2948 = vadd.f32 %v2228, %v2947
    %v2949 = vpop.f32.mrf.mxu0
    %2950 = vdwg.mxu0
    %2951 = vmatprep.subr.bf16.mxu0 0
    %2952 = vmatpush1.bf16.msra.mxu0 %v2541
    %2953 = vmatprep.subr.bf16.mxu0 0
    %2954 = vmatpush1.bf16.msra.mxu0 %v2540
    %2955 = vmatprep.subr.bf16.mxu0 0
    %2956 = vmatpush1.bf16.msra.mxu0 %v2539
    %2957 = vmatprep.subr.bf16.mxu0 0
    %2958 = vmatpush1.bf16.msra.mxu0 %v2538
    %2959 = vmatprep.subr.bf16.mxu0 0
    %2960 = vmatpush1.bf16.msra.mxu0 %v2537
    %2961 = vmatprep.subr.bf16.mxu0 0
    %2962 = vmatpush1.bf16.msra.mxu0 %v2536
    %2963 = vmatprep.subr.bf16.mxu0 0
    %2964 = vmatpush1.bf16.msra.mxu0 %v2535
    %2965 = vmatprep.subr.bf16.mxu0 0
    %2966 = vmatpush1.bf16.msra.mxu0 %v2534
    %2967 = vmatprep.subr.bf16.mxu0 0
    %2968 = vmatpush2.bf16.msra.mxu0 %v2549
    %2969 = vmatprep.subr.bf16.mxu0 0
    %2970 = vmatpush2.bf16.msra.mxu0 %v2548
    %2971 = vmatprep.subr.bf16.mxu0 0
    %2972 = vmatpush2.bf16.msra.mxu0 %v2547
    %2973 = vmatprep.subr.bf16.mxu0 0
    %2974 = vmatpush2.bf16.msra.mxu0 %v2546
    %2975 = vmatprep.subr.bf16.mxu0 0
    %2976 = vmatpush2.bf16.msra.mxu0 %v2545
    %2977 = vmatprep.subr.bf16.mxu0 0
    %2978 = vmatpush2.bf16.msra.mxu0 %v2544
    %2979 = vmatprep.subr.bf16.mxu0 0
    %2980 = vmatpush2.bf16.msra.mxu0 %v2543
    %2981 = vmatprep.subr.bf16.mxu0 0
    %2982 = vmatpush2.bf16.msra.mxu0 %v2542
    %2983 = vmatprep.mubr.bf16.mxu0 %v1974
    %2984 = vmatmul.mubr.bf16.gmra.mxu0 %v1973
    %v2985 = vpop.f32.mrf.mxu0
    %v2986 = vadd.f32 %v2697, %v2985
    %v2987 = vpop.f32.mrf.mxu0
    %v2988 = vpop.f32.mrf.mxu0
    %v2989 = vadd.f32 %v2700, %v2988
    %v2990 = vpop.f32.mrf.mxu0
    %2991 = vmatprep.mubr.bf16.mxu0 %v1977
    %2992 = vmatmul.mubr.bf16.gmra.mxu0 %v1976
    %v2993 = vpop.f32.mrf.mxu0
    %v2994 = vadd.f32 %v2705, %v2993
    %v2995 = vpop.f32.mrf.mxu0
    %v2996 = vpop.f32.mrf.mxu0
    %v2997 = vadd.f32 %v2708, %v2996
    %v2998 = vpop.f32.mrf.mxu0
    %2999 = vmatprep.mubr.bf16.mxu0 %v1980
    %3000 = vmatmul.mubr.bf16.gmra.mxu0 %v1979
    %v3001 = vpop.f32.mrf.mxu0
    %v3002 = vadd.f32 %v2713, %v3001
    %v3003 = vpop.f32.mrf.mxu0
    %v3004 = vpop.f32.mrf.mxu0
    %v3005 = vadd.f32 %v2716, %v3004
    %v3006 = vpop.f32.mrf.mxu0
    %3007 = vmatprep.mubr.bf16.mxu0 %v1983
    %3008 = vmatmul.mubr.bf16.gmra.mxu0 %v1982
    %v3009 = vpop.f32.mrf.mxu0
    %v3010 = vadd.f32 %v2721, %v3009
    %v3011 = vpop.f32.mrf.mxu0
    %v3012 = vpop.f32.mrf.mxu0
    %v3013 = vadd.f32 %v2724, %v3012
    %v3014 = vpop.f32.mrf.mxu0
    %3015 = vmatprep.mubr.bf16.mxu0 %v1986
    %3016 = vmatmul.mubr.bf16.gmra.mxu0 %v1985
    %v3017 = vpop.f32.mrf.mxu0
    %v3018 = vadd.f32 %v2729, %v3017
    %v3019 = vpop.f32.mrf.mxu0
    %v3020 = vpop.f32.mrf.mxu0
    %v3021 = vadd.f32 %v2732, %v3020
    %v3022 = vpop.f32.mrf.mxu0
    %3023 = vmatprep.mubr.bf16.mxu0 %v1989
    %3024 = vmatmul.mubr.bf16.gmra.mxu0 %v1988
    %v3025 = vpop.f32.mrf.mxu0
    %v3026 = vadd.f32 %v2737, %v3025
    %v3027 = vpop.f32.mrf.mxu0
    %v3028 = vpop.f32.mrf.mxu0
    %v3029 = vadd.f32 %v2740, %v3028
    %v3030 = vpop.f32.mrf.mxu0
    %3031 = vmatprep.mubr.bf16.mxu0 %v1992
    %3032 = vmatmul.mubr.bf16.gmra.mxu0 %v1991
    %v3033 = vpop.f32.mrf.mxu0
    %v3034 = vadd.f32 %v2745, %v3033
    %v3035 = vpop.f32.mrf.mxu0
    %v3036 = vpop.f32.mrf.mxu0
    %v3037 = vadd.f32 %v2748, %v3036
    %v3038 = vpop.f32.mrf.mxu0
    %3039 = vmatprep.mubr.bf16.mxu0 %v1995
    %3040 = vmatmul.mubr.bf16.gmra.mxu0 %v1994
    %v3041 = vpop.f32.mrf.mxu0
    %v3042 = vadd.f32 %v2753, %v3041
    %v3043 = vpop.f32.mrf.mxu0
    %v3044 = vpop.f32.mrf.mxu0
    %v3045 = vadd.f32 %v2756, %v3044
    %v3046 = vpop.f32.mrf.mxu0
    %3047 = vmatprep.mubr.bf16.mxu0 %v1998
    %3048 = vmatmul.mubr.bf16.gmra.mxu0 %v1997
    %v3049 = vpop.f32.mrf.mxu0
    %v3050 = vadd.f32 %v2761, %v3049
    %v3051 = vpop.f32.mrf.mxu0
    %v3052 = vpop.f32.mrf.mxu0
    %v3053 = vadd.f32 %v2764, %v3052
    %v3054 = vpop.f32.mrf.mxu0
    %3055 = vmatprep.mubr.bf16.mxu0 %v2001
    %3056 = vmatmul.mubr.bf16.gmra.mxu0 %v2000
    %v3057 = vpop.f32.mrf.mxu0
    %v3058 = vadd.f32 %v2769, %v3057
    %v3059 = vpop.f32.mrf.mxu0
    %v3060 = vpop.f32.mrf.mxu0
    %v3061 = vadd.f32 %v2772, %v3060
    %v3062 = vpop.f32.mrf.mxu0
    %3063 = vmatprep.mubr.bf16.mxu0 %v2004
    %3064 = vmatmul.mubr.bf16.gmra.mxu0 %v2003
    %v3065 = vpop.f32.mrf.mxu0
    %v3066 = vadd.f32 %v2777, %v3065
    %v3067 = vpop.f32.mrf.mxu0
    %v3068 = vpop.f32.mrf.mxu0
    %v3069 = vadd.f32 %v2780, %v3068
    %v3070 = vpop.f32.mrf.mxu0
    %3071 = vmatprep.mubr.bf16.mxu0 %v2007
    %3072 = vmatmul.mubr.bf16.gmra.mxu0 %v2006
    %v3073 = vpop.f32.mrf.mxu0
    %v3074 = vadd.f32 %v2785, %v3073
    %v3075 = vpop.f32.mrf.mxu0
    %v3076 = vpop.f32.mrf.mxu0
    %v3077 = vadd.f32 %v2788, %v3076
    %v3078 = vpop.f32.mrf.mxu0
    %3079 = vmatprep.mubr.bf16.mxu0 %v2010
    %3080 = vmatmul.mubr.bf16.gmra.mxu0 %v2009
    %v3081 = vpop.f32.mrf.mxu0
    %v3082 = vadd.f32 %v2793, %v3081
    %v3083 = vpop.f32.mrf.mxu0
    %v3084 = vpop.f32.mrf.mxu0
    %v3085 = vadd.f32 %v2796, %v3084
    %v3086 = vpop.f32.mrf.mxu0
    %3087 = vmatprep.mubr.bf16.mxu0 %v2013
    %3088 = vmatmul.mubr.bf16.gmra.mxu0 %v2012
    %v3089 = vpop.f32.mrf.mxu0
    %v3090 = vadd.f32 %v2801, %v3089
    %v3091 = vpop.f32.mrf.mxu0
    %v3092 = vpop.f32.mrf.mxu0
    %v3093 = vadd.f32 %v2804, %v3092
    %v3094 = vpop.f32.mrf.mxu0
    %3095 = vmatprep.mubr.bf16.mxu0 %v2016
    %3096 = vmatmul.mubr.bf16.gmra.mxu0 %v2015
    %v3097 = vpop.f32.mrf.mxu0
    %v3098 = vadd.f32 %v2809, %v3097
    %v3099 = vpop.f32.mrf.mxu0
    %v3100 = vpop.f32.mrf.mxu0
    %v3101 = vadd.f32 %v2812, %v3100
    %v3102 = vpop.f32.mrf.mxu0
    %3103 = vmatprep.mubr.bf16.mxu0 %v2019
    %3104 = vmatmul.mubr.bf16.gmra.mxu0 %v2018
    %v3105 = vpop.f32.mrf.mxu0
    %v3106 = vadd.f32 %v2817, %v3105
    %v3107 = vpop.f32.mrf.mxu0
    %v3108 = vpop.f32.mrf.mxu0
    %v3109 = vadd.f32 %v2820, %v3108
    %v3110 = vpop.f32.mrf.mxu0
    %3111 = vmatprep.mubr.bf16.mxu0 %v2028
    %3112 = vmatmul.mubr.bf16.gmra.mxu0 %v2027
    %v3113 = vpop.f32.mrf.mxu0
    %v3114 = vadd.f32 %v2825, %v3113
    %v3115 = vpop.f32.mrf.mxu0
    %v3116 = vpop.f32.mrf.mxu0
    %v3117 = vadd.f32 %v2828, %v3116
    %v3118 = vpop.f32.mrf.mxu0
    %3119 = vmatprep.mubr.bf16.mxu0 %v2031
    %3120 = vmatmul.mubr.bf16.gmra.mxu0 %v2030
    %v3121 = vpop.f32.mrf.mxu0
    %v3122 = vadd.f32 %v2833, %v3121
    %v3123 = vpop.f32.mrf.mxu0
    %v3124 = vpop.f32.mrf.mxu0
    %v3125 = vadd.f32 %v2836, %v3124
    %v3126 = vpop.f32.mrf.mxu0
    %3127 = vmatprep.mubr.bf16.mxu0 %v2034
    %3128 = vmatmul.mubr.bf16.gmra.mxu0 %v2033
    %v3129 = vpop.f32.mrf.mxu0
    %v3130 = vadd.f32 %v2841, %v3129
    %v3131 = vpop.f32.mrf.mxu0
    %v3132 = vpop.f32.mrf.mxu0
    %v3133 = vadd.f32 %v2844, %v3132
    %v3134 = vpop.f32.mrf.mxu0
    %3135 = vmatprep.mubr.bf16.mxu0 %v2037
    %3136 = vmatmul.mubr.bf16.gmra.mxu0 %v2036
    %v3137 = vpop.f32.mrf.mxu0
    %v3138 = vadd.f32 %v2849, %v3137
    %v3139 = vpop.f32.mrf.mxu0
    %v3140 = vpop.f32.mrf.mxu0
    %v3141 = vadd.f32 %v2852, %v3140
    %v3142 = vpop.f32.mrf.mxu0
    %3143 = vmatprep.mubr.bf16.mxu0 %v2040
    %3144 = vmatmul.mubr.bf16.gmra.mxu0 %v2039
    %v3145 = vpop.f32.mrf.mxu0
    %v3146 = vadd.f32 %v2857, %v3145
    %v3147 = vpop.f32.mrf.mxu0
    %v3148 = vpop.f32.mrf.mxu0
    %v3149 = vadd.f32 %v2860, %v3148
    %v3150 = vpop.f32.mrf.mxu0
    %3151 = vmatprep.mubr.bf16.mxu0 %v2043
    %3152 = vmatmul.mubr.bf16.gmra.mxu0 %v2042
    %v3153 = vpop.f32.mrf.mxu0
    %v3154 = vadd.f32 %v2865, %v3153
    %v3155 = vpop.f32.mrf.mxu0
    %v3156 = vpop.f32.mrf.mxu0
    %v3157 = vadd.f32 %v2868, %v3156
    %v3158 = vpop.f32.mrf.mxu0
    %3159 = vmatprep.mubr.bf16.mxu0 %v2046
    %3160 = vmatmul.mubr.bf16.gmra.mxu0 %v2045
    %v3161 = vpop.f32.mrf.mxu0
    %v3162 = vadd.f32 %v2873, %v3161
    %v3163 = vpop.f32.mrf.mxu0
    %v3164 = vpop.f32.mrf.mxu0
    %v3165 = vadd.f32 %v2876, %v3164
    %v3166 = vpop.f32.mrf.mxu0
    %3167 = vmatprep.mubr.bf16.mxu0 %v2049
    %3168 = vmatmul.mubr.bf16.gmra.mxu0 %v2048
    %v3169 = vpop.f32.mrf.mxu0
    %v3170 = vadd.f32 %v2881, %v3169
    %v3171 = vpop.f32.mrf.mxu0
    %v3172 = vpop.f32.mrf.mxu0
    %v3173 = vadd.f32 %v2884, %v3172
    %v3174 = vpop.f32.mrf.mxu0
    %3175 = vmatprep.mubr.bf16.mxu0 %v2052
    %3176 = vmatmul.mubr.bf16.gmra.mxu0 %v2051
    %v3177 = vpop.f32.mrf.mxu0
    %v3178 = vadd.f32 %v2889, %v3177
    %v3179 = vpop.f32.mrf.mxu0
    %v3180 = vpop.f32.mrf.mxu0
    %v3181 = vadd.f32 %v2892, %v3180
    %v3182 = vpop.f32.mrf.mxu0
    %3183 = vmatprep.mubr.bf16.mxu0 %v2055
    %3184 = vmatmul.mubr.bf16.gmra.mxu0 %v2054
    %v3185 = vpop.f32.mrf.mxu0
    %v3186 = vadd.f32 %v2897, %v3185
    %v3187 = vpop.f32.mrf.mxu0
    %v3188 = vpop.f32.mrf.mxu0
    %v3189 = vadd.f32 %v2900, %v3188
    %v3190 = vpop.f32.mrf.mxu0
    %3191 = vmatprep.mubr.bf16.mxu0 %v2058
    %3192 = vmatmul.mubr.bf16.gmra.mxu0 %v2057
    %v3193 = vpop.f32.mrf.mxu0
    %v3194 = vadd.f32 %v2905, %v3193
    %v3195 = vpop.f32.mrf.mxu0
    %v3196 = vpop.f32.mrf.mxu0
    %v3197 = vadd.f32 %v2908, %v3196
    %v3198 = vpop.f32.mrf.mxu0
    %3199 = vmatprep.mubr.bf16.mxu0 %v2061
    %3200 = vmatmul.mubr.bf16.gmra.mxu0 %v2060
    %v3201 = vpop.f32.mrf.mxu0
    %v3202 = vadd.f32 %v2913, %v3201
    %v3203 = vpop.f32.mrf.mxu0
    %v3204 = vpop.f32.mrf.mxu0
    %v3205 = vadd.f32 %v2916, %v3204
    %v3206 = vpop.f32.mrf.mxu0
    %3207 = vmatprep.mubr.bf16.mxu0 %v2064
    %3208 = vmatmul.mubr.bf16.gmra.mxu0 %v2063
    %v3209 = vpop.f32.mrf.mxu0
    %v3210 = vadd.f32 %v2921, %v3209
    %v3211 = vpop.f32.mrf.mxu0
    %v3212 = vpop.f32.mrf.mxu0
    %v3213 = vadd.f32 %v2924, %v3212
    %v3214 = vpop.f32.mrf.mxu0
    %3215 = vmatprep.mubr.bf16.mxu0 %v2067
    %3216 = vmatmul.mubr.bf16.gmra.mxu0 %v2066
    %v3217 = vpop.f32.mrf.mxu0
    %v3218 = vadd.f32 %v2929, %v3217
    %v3219 = vpop.f32.mrf.mxu0
    %v3220 = vpop.f32.mrf.mxu0
    %v3221 = vadd.f32 %v2932, %v3220
    %v3222 = vpop.f32.mrf.mxu0
    %3223 = vmatprep.mubr.bf16.mxu0 %v2070
    %3224 = vmatmul.mubr.bf16.gmra.mxu0 %v2069
    %v3225 = vpop.f32.mrf.mxu0
    %v3226 = vadd.f32 %v2937, %v3225
    %v3227 = vpop.f32.mrf.mxu0
    %v3228 = vpop.f32.mrf.mxu0
    %v3229 = vadd.f32 %v2940, %v3228
    %v3230 = vpop.f32.mrf.mxu0
    %3231 = vmatprep.mubr.bf16.mxu0 %v2073
    %3232 = vmatmul.mubr.bf16.gmra.mxu0 %v2072
    %v3233 = vpop.f32.mrf.mxu0
    %v3234 = vadd.f32 %v2945, %v3233
    %v3235 = vpop.f32.mrf.mxu0
    %v3236 = vpop.f32.mrf.mxu0
    %v3237 = vadd.f32 %v2948, %v3236
    %v3238 = vpop.f32.mrf.mxu0
    %3239 = vdwg.mxu0
    %3240 = vmatprep.subr.bf16.mxu0 0
    %3241 = vmatpush1.bf16.msra.mxu0 %v2557
    %3242 = vmatprep.subr.bf16.mxu0 0
    %3243 = vmatpush1.bf16.msra.mxu0 %v2556
    %3244 = vmatprep.subr.bf16.mxu0 0
    %3245 = vmatpush1.bf16.msra.mxu0 %v2555
    %3246 = vmatprep.subr.bf16.mxu0 0
    %3247 = vmatpush1.bf16.msra.mxu0 %v2554
    %3248 = vmatprep.subr.bf16.mxu0 0
    %3249 = vmatpush1.bf16.msra.mxu0 %v2553
    %3250 = vmatprep.subr.bf16.mxu0 0
    %3251 = vmatpush1.bf16.msra.mxu0 %v2552
    %3252 = vmatprep.subr.bf16.mxu0 0
    %3253 = vmatpush1.bf16.msra.mxu0 %v2551
    %3254 = vmatprep.subr.bf16.mxu0 0
    %3255 = vmatpush1.bf16.msra.mxu0 %v2550
    %3256 = vmatprep.subr.bf16.mxu0 0
    %3257 = vmatpush2.bf16.msra.mxu0 %v2565
    %3258 = vmatprep.subr.bf16.mxu0 0
    %3259 = vmatpush2.bf16.msra.mxu0 %v2564
    %3260 = vmatprep.subr.bf16.mxu0 0
    %3261 = vmatpush2.bf16.msra.mxu0 %v2563
    %3262 = vmatprep.subr.bf16.mxu0 0
    %3263 = vmatpush2.bf16.msra.mxu0 %v2562
    %3264 = vmatprep.subr.bf16.mxu0 0
    %3265 = vmatpush2.bf16.msra.mxu0 %v2561
    %3266 = vmatprep.subr.bf16.mxu0 0
    %3267 = vmatpush2.bf16.msra.mxu0 %v2560
    %3268 = vmatprep.subr.bf16.mxu0 0
    %3269 = vmatpush2.bf16.msra.mxu0 %v2559
    %3270 = vmatprep.subr.bf16.mxu0 0
    %3271 = vmatpush2.bf16.msra.mxu0 %v2558
    %3272 = vmatprep.mubr.bf16.mxu0 %v1976
    %3273 = vmatmul.mubr.bf16.gmra.mxu0 %v1975
    %v3274 = vpop.f32.mrf.mxu0
    %v3275 = vadd.f32 %v2986, %v3274
    %v3276 = vpop.f32.mrf.mxu0
    %v3277 = vpop.f32.mrf.mxu0
    %v3278 = vadd.f32 %v2989, %v3277
    %v3279 = vpop.f32.mrf.mxu0
    %3280 = vmatprep.mubr.bf16.mxu0 %v1979
    %3281 = vmatmul.mubr.bf16.gmra.mxu0 %v1978
    %v3282 = vpop.f32.mrf.mxu0
    %v3283 = vadd.f32 %v2994, %v3282
    %v3284 = vpop.f32.mrf.mxu0
    %v3285 = vpop.f32.mrf.mxu0
    %v3286 = vadd.f32 %v2997, %v3285
    %v3287 = vpop.f32.mrf.mxu0
    %3288 = vmatprep.mubr.bf16.mxu0 %v1982
    %3289 = vmatmul.mubr.bf16.gmra.mxu0 %v1981
    %v3290 = vpop.f32.mrf.mxu0
    %v3291 = vadd.f32 %v3002, %v3290
    %v3292 = vpop.f32.mrf.mxu0
    %v3293 = vpop.f32.mrf.mxu0
    %v3294 = vadd.f32 %v3005, %v3293
    %v3295 = vpop.f32.mrf.mxu0
    %3296 = vmatprep.mubr.bf16.mxu0 %v1985
    %3297 = vmatmul.mubr.bf16.gmra.mxu0 %v1984
    %v3298 = vpop.f32.mrf.mxu0
    %v3299 = vadd.f32 %v3010, %v3298
    %v3300 = vpop.f32.mrf.mxu0
    %v3301 = vpop.f32.mrf.mxu0
    %v3302 = vadd.f32 %v3013, %v3301
    %v3303 = vpop.f32.mrf.mxu0
    %3304 = vmatprep.mubr.bf16.mxu0 %v1988
    %3305 = vmatmul.mubr.bf16.gmra.mxu0 %v1987
    %v3306 = vpop.f32.mrf.mxu0
    %v3307 = vadd.f32 %v3018, %v3306
    %v3308 = vpop.f32.mrf.mxu0
    %v3309 = vpop.f32.mrf.mxu0
    %v3310 = vadd.f32 %v3021, %v3309
    %v3311 = vpop.f32.mrf.mxu0
    %3312 = vmatprep.mubr.bf16.mxu0 %v1991
    %3313 = vmatmul.mubr.bf16.gmra.mxu0 %v1990
    %v3314 = vpop.f32.mrf.mxu0
    %v3315 = vadd.f32 %v3026, %v3314
    %v3316 = vpop.f32.mrf.mxu0
    %v3317 = vpop.f32.mrf.mxu0
    %v3318 = vadd.f32 %v3029, %v3317
    %v3319 = vpop.f32.mrf.mxu0
    %3320 = vmatprep.mubr.bf16.mxu0 %v1994
    %3321 = vmatmul.mubr.bf16.gmra.mxu0 %v1993
    %v3322 = vpop.f32.mrf.mxu0
    %v3323 = vadd.f32 %v3034, %v3322
    %v3324 = vpop.f32.mrf.mxu0
    %v3325 = vpop.f32.mrf.mxu0
    %v3326 = vadd.f32 %v3037, %v3325
    %v3327 = vpop.f32.mrf.mxu0
    %3328 = vmatprep.mubr.bf16.mxu0 %v1997
    %3329 = vmatmul.mubr.bf16.gmra.mxu0 %v1996
    %v3330 = vpop.f32.mrf.mxu0
    %v3331 = vadd.f32 %v3042, %v3330
    %v3332 = vpop.f32.mrf.mxu0
    %v3333 = vpop.f32.mrf.mxu0
    %v3334 = vadd.f32 %v3045, %v3333
    %v3335 = vpop.f32.mrf.mxu0
    %3336 = vmatprep.mubr.bf16.mxu0 %v2000
    %3337 = vmatmul.mubr.bf16.gmra.mxu0 %v1999
    %v3338 = vpop.f32.mrf.mxu0
    %v3339 = vadd.f32 %v3050, %v3338
    %v3340 = vpop.f32.mrf.mxu0
    %v3341 = vpop.f32.mrf.mxu0
    %v3342 = vadd.f32 %v3053, %v3341
    %v3343 = vpop.f32.mrf.mxu0
    %3344 = vmatprep.mubr.bf16.mxu0 %v2003
    %3345 = vmatmul.mubr.bf16.gmra.mxu0 %v2002
    %v3346 = vpop.f32.mrf.mxu0
    %v3347 = vadd.f32 %v3058, %v3346
    %v3348 = vpop.f32.mrf.mxu0
    %v3349 = vpop.f32.mrf.mxu0
    %v3350 = vadd.f32 %v3061, %v3349
    %v3351 = vpop.f32.mrf.mxu0
    %3352 = vmatprep.mubr.bf16.mxu0 %v2006
    %3353 = vmatmul.mubr.bf16.gmra.mxu0 %v2005
    %v3354 = vpop.f32.mrf.mxu0
    %v3355 = vadd.f32 %v3066, %v3354
    %v3356 = vpop.f32.mrf.mxu0
    %v3357 = vpop.f32.mrf.mxu0
    %v3358 = vadd.f32 %v3069, %v3357
    %v3359 = vpop.f32.mrf.mxu0
    %3360 = vmatprep.mubr.bf16.mxu0 %v2009
    %3361 = vmatmul.mubr.bf16.gmra.mxu0 %v2008
    %v3362 = vpop.f32.mrf.mxu0
    %v3363 = vadd.f32 %v3074, %v3362
    %v3364 = vpop.f32.mrf.mxu0
    %v3365 = vpop.f32.mrf.mxu0
    %v3366 = vadd.f32 %v3077, %v3365
    %v3367 = vpop.f32.mrf.mxu0
    %3368 = vmatprep.mubr.bf16.mxu0 %v2012
    %3369 = vmatmul.mubr.bf16.gmra.mxu0 %v2011
    %v3370 = vpop.f32.mrf.mxu0
    %v3371 = vadd.f32 %v3082, %v3370
    %v3372 = vpop.f32.mrf.mxu0
    %v3373 = vpop.f32.mrf.mxu0
    %v3374 = vadd.f32 %v3085, %v3373
    %v3375 = vpop.f32.mrf.mxu0
    %3376 = vmatprep.mubr.bf16.mxu0 %v2015
    %3377 = vmatmul.mubr.bf16.gmra.mxu0 %v2014
    %v3378 = vpop.f32.mrf.mxu0
    %v3379 = vadd.f32 %v3090, %v3378
    %v3380 = vpop.f32.mrf.mxu0
    %v3381 = vpop.f32.mrf.mxu0
    %v3382 = vadd.f32 %v3093, %v3381
    %v3383 = vpop.f32.mrf.mxu0
    %3384 = vmatprep.mubr.bf16.mxu0 %v2018
    %3385 = vmatmul.mubr.bf16.gmra.mxu0 %v2017
    %v3386 = vpop.f32.mrf.mxu0
    %v3387 = vadd.f32 %v3098, %v3386
    %v3388 = vpop.f32.mrf.mxu0
    %v3389 = vpop.f32.mrf.mxu0
    %v3390 = vadd.f32 %v3101, %v3389
    %v3391 = vpop.f32.mrf.mxu0
    %3392 = vmatprep.mubr.bf16.mxu0 %v2021
    %3393 = vmatmul.mubr.bf16.gmra.mxu0 %v2020
    %v3394 = vpop.f32.mrf.mxu0
    %v3395 = vadd.f32 %v3106, %v3394
    %v3396 = vpop.f32.mrf.mxu0
    %v3397 = vpop.f32.mrf.mxu0
    %v3398 = vadd.f32 %v3109, %v3397
    %v3399 = vpop.f32.mrf.mxu0
    %3400 = vmatprep.mubr.bf16.mxu0 %v2030
    %3401 = vmatmul.mubr.bf16.gmra.mxu0 %v2029
    %v3402 = vpop.f32.mrf.mxu0
    %v3403 = vadd.f32 %v3114, %v3402
    %v3404 = vpop.f32.mrf.mxu0
    %v3405 = vpop.f32.mrf.mxu0
    %v3406 = vadd.f32 %v3117, %v3405
    %v3407 = vpop.f32.mrf.mxu0
    %3408 = vmatprep.mubr.bf16.mxu0 %v2033
    %3409 = vmatmul.mubr.bf16.gmra.mxu0 %v2032
    %v3410 = vpop.f32.mrf.mxu0
    %v3411 = vadd.f32 %v3122, %v3410
    %v3412 = vpop.f32.mrf.mxu0
    %v3413 = vpop.f32.mrf.mxu0
    %v3414 = vadd.f32 %v3125, %v3413
    %v3415 = vpop.f32.mrf.mxu0
    %3416 = vmatprep.mubr.bf16.mxu0 %v2036
    %3417 = vmatmul.mubr.bf16.gmra.mxu0 %v2035
    %v3418 = vpop.f32.mrf.mxu0
    %v3419 = vadd.f32 %v3130, %v3418
    %v3420 = vpop.f32.mrf.mxu0
    %v3421 = vpop.f32.mrf.mxu0
    %v3422 = vadd.f32 %v3133, %v3421
    %v3423 = vpop.f32.mrf.mxu0
    %3424 = vmatprep.mubr.bf16.mxu0 %v2039
    %3425 = vmatmul.mubr.bf16.gmra.mxu0 %v2038
    %v3426 = vpop.f32.mrf.mxu0
    %v3427 = vadd.f32 %v3138, %v3426
    %v3428 = vpop.f32.mrf.mxu0
    %v3429 = vpop.f32.mrf.mxu0
    %v3430 = vadd.f32 %v3141, %v3429
    %v3431 = vpop.f32.mrf.mxu0
    %3432 = vmatprep.mubr.bf16.mxu0 %v2042
    %3433 = vmatmul.mubr.bf16.gmra.mxu0 %v2041
    %v3434 = vpop.f32.mrf.mxu0
    %v3435 = vadd.f32 %v3146, %v3434
    %v3436 = vpop.f32.mrf.mxu0
    %v3437 = vpop.f32.mrf.mxu0
    %v3438 = vadd.f32 %v3149, %v3437
    %v3439 = vpop.f32.mrf.mxu0
    %3440 = vmatprep.mubr.bf16.mxu0 %v2045
    %3441 = vmatmul.mubr.bf16.gmra.mxu0 %v2044
    %v3442 = vpop.f32.mrf.mxu0
    %v3443 = vadd.f32 %v3154, %v3442
    %v3444 = vpop.f32.mrf.mxu0
    %v3445 = vpop.f32.mrf.mxu0
    %v3446 = vadd.f32 %v3157, %v3445
    %v3447 = vpop.f32.mrf.mxu0
    %3448 = vmatprep.mubr.bf16.mxu0 %v2048
    %3449 = vmatmul.mubr.bf16.gmra.mxu0 %v2047
    %v3450 = vpop.f32.mrf.mxu0
    %v3451 = vadd.f32 %v3162, %v3450
    %v3452 = vpop.f32.mrf.mxu0
    %v3453 = vpop.f32.mrf.mxu0
    %v3454 = vadd.f32 %v3165, %v3453
    %v3455 = vpop.f32.mrf.mxu0
    %3456 = vmatprep.mubr.bf16.mxu0 %v2051
    %3457 = vmatmul.mubr.bf16.gmra.mxu0 %v2050
    %v3458 = vpop.f32.mrf.mxu0
    %v3459 = vadd.f32 %v3170, %v3458
    %v3460 = vpop.f32.mrf.mxu0
    %v3461 = vpop.f32.mrf.mxu0
    %v3462 = vadd.f32 %v3173, %v3461
    %v3463 = vpop.f32.mrf.mxu0
    %3464 = vmatprep.mubr.bf16.mxu0 %v2054
    %3465 = vmatmul.mubr.bf16.gmra.mxu0 %v2053
    %v3466 = vpop.f32.mrf.mxu0
    %v3467 = vadd.f32 %v3178, %v3466
    %v3468 = vpop.f32.mrf.mxu0
    %v3469 = vpop.f32.mrf.mxu0
    %v3470 = vadd.f32 %v3181, %v3469
    %v3471 = vpop.f32.mrf.mxu0
    %3472 = vmatprep.mubr.bf16.mxu0 %v2057
    %3473 = vmatmul.mubr.bf16.gmra.mxu0 %v2056
    %v3474 = vpop.f32.mrf.mxu0
    %v3475 = vadd.f32 %v3186, %v3474
    %v3476 = vpop.f32.mrf.mxu0
    %v3477 = vpop.f32.mrf.mxu0
    %v3478 = vadd.f32 %v3189, %v3477
    %v3479 = vpop.f32.mrf.mxu0
    %3480 = vmatprep.mubr.bf16.mxu0 %v2060
    %3481 = vmatmul.mubr.bf16.gmra.mxu0 %v2059
    %v3482 = vpop.f32.mrf.mxu0
    %v3483 = vadd.f32 %v3194, %v3482
    %v3484 = vpop.f32.mrf.mxu0
    %v3485 = vpop.f32.mrf.mxu0
    %v3486 = vadd.f32 %v3197, %v3485
    %v3487 = vpop.f32.mrf.mxu0
    %3488 = vmatprep.mubr.bf16.mxu0 %v2063
    %3489 = vmatmul.mubr.bf16.gmra.mxu0 %v2062
    %v3490 = vpop.f32.mrf.mxu0
    %v3491 = vadd.f32 %v3202, %v3490
    %v3492 = vpop.f32.mrf.mxu0
    %v3493 = vpop.f32.mrf.mxu0
    %v3494 = vadd.f32 %v3205, %v3493
    %v3495 = vpop.f32.mrf.mxu0
    %3496 = vmatprep.mubr.bf16.mxu0 %v2066
    %3497 = vmatmul.mubr.bf16.gmra.mxu0 %v2065
    %v3498 = vpop.f32.mrf.mxu0
    %v3499 = vadd.f32 %v3210, %v3498
    %v3500 = vpop.f32.mrf.mxu0
    %v3501 = vpop.f32.mrf.mxu0
    %v3502 = vadd.f32 %v3213, %v3501
    %v3503 = vpop.f32.mrf.mxu0
    %3504 = vmatprep.mubr.bf16.mxu0 %v2069
    %3505 = vmatmul.mubr.bf16.gmra.mxu0 %v2068
    %v3506 = vpop.f32.mrf.mxu0
    %v3507 = vadd.f32 %v3218, %v3506
    %v3508 = vpop.f32.mrf.mxu0
    %v3509 = vpop.f32.mrf.mxu0
    %v3510 = vadd.f32 %v3221, %v3509
    %v3511 = vpop.f32.mrf.mxu0
    %3512 = vmatprep.mubr.bf16.mxu0 %v2072
    %3513 = vmatmul.mubr.bf16.gmra.mxu0 %v2071
    %v3514 = vpop.f32.mrf.mxu0
    %v3515 = vadd.f32 %v3226, %v3514
    %v3516 = vpop.f32.mrf.mxu0
    %v3517 = vpop.f32.mrf.mxu0
    %v3518 = vadd.f32 %v3229, %v3517
    %v3519 = vpop.f32.mrf.mxu0
    %3520 = vmatprep.mubr.bf16.mxu0 %v2075
    %3521 = vmatmul.mubr.bf16.gmra.mxu0 %v2074
    %v3522 = vpop.f32.mrf.mxu0
    %v3523 = vadd.f32 %v3234, %v3522
    %v3524 = vpop.f32.mrf.mxu0
    %v3525 = vpop.f32.mrf.mxu0
    %v3526 = vadd.f32 %v3237, %v3525
    %v3527 = vpop.f32.mrf.mxu0
    %3528 = vdwg.mxu0
    %3529 = vmatprep.subr.bf16.mxu0 0
    %3530 = vmatpush1.bf16.msra.mxu0 %v2573
    %3531 = vmatprep.subr.bf16.mxu0 0
    %3532 = vmatpush1.bf16.msra.mxu0 %v2572
    %3533 = vmatprep.subr.bf16.mxu0 0
    %3534 = vmatpush1.bf16.msra.mxu0 %v2571
    %3535 = vmatprep.subr.bf16.mxu0 0
    %3536 = vmatpush1.bf16.msra.mxu0 %v2570
    %3537 = vmatprep.subr.bf16.mxu0 0
    %3538 = vmatpush1.bf16.msra.mxu0 %v2569
    %3539 = vmatprep.subr.bf16.mxu0 0
    %3540 = vmatpush1.bf16.msra.mxu0 %v2568
    %3541 = vmatprep.subr.bf16.mxu0 0
    %3542 = vmatpush1.bf16.msra.mxu0 %v2567
    %3543 = vmatprep.subr.bf16.mxu0 0
    %3544 = vmatpush1.bf16.msra.mxu0 %v2566
    %3545 = vmatprep.subr.bf16.mxu0 0
    %3546 = vmatpush2.bf16.msra.mxu0 %v2581
    %3547 = vmatprep.subr.bf16.mxu0 0
    %3548 = vmatpush2.bf16.msra.mxu0 %v2580
    %3549 = vmatprep.subr.bf16.mxu0 0
    %3550 = vmatpush2.bf16.msra.mxu0 %v2579
    %3551 = vmatprep.subr.bf16.mxu0 0
    %3552 = vmatpush2.bf16.msra.mxu0 %v2578
    %3553 = vmatprep.subr.bf16.mxu0 0
    %3554 = vmatpush2.bf16.msra.mxu0 %v2577
    %3555 = vmatprep.subr.bf16.mxu0 0
    %3556 = vmatpush2.bf16.msra.mxu0 %v2576
    %3557 = vmatprep.subr.bf16.mxu0 0
    %3558 = vmatpush2.bf16.msra.mxu0 %v2575
    %3559 = vmatprep.subr.bf16.mxu0 0
    %3560 = vmatpush2.bf16.msra.mxu0 %v2574
    %3561 = vmatprep.mubr.bf16.mxu0 %v1978
    %3562 = vmatmul.mubr.bf16.gmra.mxu0 %v1977
    %v3563 = vpop.f32.mrf.mxu0
    %v3564 = vadd.f32 %v3275, %v3563
    %v3565 = vpop.f32.mrf.mxu0
    %v3566 = vpop.f32.mrf.mxu0
    %v3567 = vadd.f32 %v3278, %v3566
    %v3568 = vpop.f32.mrf.mxu0
    %3569 = vmatprep.mubr.bf16.mxu0 %v1981
    %3570 = vmatmul.mubr.bf16.gmra.mxu0 %v1980
    %v3571 = vpop.f32.mrf.mxu0
    %v3572 = vadd.f32 %v3283, %v3571
    %v3573 = vpop.f32.mrf.mxu0
    %v3574 = vpop.f32.mrf.mxu0
    %v3575 = vadd.f32 %v3286, %v3574
    %v3576 = vpop.f32.mrf.mxu0
    %3577 = vmatprep.mubr.bf16.mxu0 %v1984
    %3578 = vmatmul.mubr.bf16.gmra.mxu0 %v1983
    %v3579 = vpop.f32.mrf.mxu0
    %v3580 = vadd.f32 %v3291, %v3579
    %v3581 = vpop.f32.mrf.mxu0
    %v3582 = vpop.f32.mrf.mxu0
    %v3583 = vadd.f32 %v3294, %v3582
    %v3584 = vpop.f32.mrf.mxu0
    %3585 = vmatprep.mubr.bf16.mxu0 %v1987
    %3586 = vmatmul.mubr.bf16.gmra.mxu0 %v1986
    %v3587 = vpop.f32.mrf.mxu0
    %v3588 = vadd.f32 %v3299, %v3587
    %v3589 = vpop.f32.mrf.mxu0
    %v3590 = vpop.f32.mrf.mxu0
    %v3591 = vadd.f32 %v3302, %v3590
    %v3592 = vpop.f32.mrf.mxu0
    %3593 = vmatprep.mubr.bf16.mxu0 %v1990
    %3594 = vmatmul.mubr.bf16.gmra.mxu0 %v1989
    %v3595 = vpop.f32.mrf.mxu0
    %v3596 = vadd.f32 %v3307, %v3595
    %v3597 = vpop.f32.mrf.mxu0
    %v3598 = vpop.f32.mrf.mxu0
    %v3599 = vadd.f32 %v3310, %v3598
    %v3600 = vpop.f32.mrf.mxu0
    %3601 = vmatprep.mubr.bf16.mxu0 %v1993
    %3602 = vmatmul.mubr.bf16.gmra.mxu0 %v1992
    %v3603 = vpop.f32.mrf.mxu0
    %v3604 = vadd.f32 %v3315, %v3603
    %v3605 = vpop.f32.mrf.mxu0
    %v3606 = vpop.f32.mrf.mxu0
    %v3607 = vadd.f32 %v3318, %v3606
    %v3608 = vpop.f32.mrf.mxu0
    %3609 = vmatprep.mubr.bf16.mxu0 %v1996
    %3610 = vmatmul.mubr.bf16.gmra.mxu0 %v1995
    %v3611 = vpop.f32.mrf.mxu0
    %v3612 = vadd.f32 %v3323, %v3611
    %v3613 = vpop.f32.mrf.mxu0
    %v3614 = vpop.f32.mrf.mxu0
    %v3615 = vadd.f32 %v3326, %v3614
    %v3616 = vpop.f32.mrf.mxu0
    %3617 = vmatprep.mubr.bf16.mxu0 %v1999
    %3618 = vmatmul.mubr.bf16.gmra.mxu0 %v1998
    %v3619 = vpop.f32.mrf.mxu0
    %v3620 = vadd.f32 %v3331, %v3619
    %v3621 = vpop.f32.mrf.mxu0
    %v3622 = vpop.f32.mrf.mxu0
    %v3623 = vadd.f32 %v3334, %v3622
    %v3624 = vpop.f32.mrf.mxu0
    %3625 = vmatprep.mubr.bf16.mxu0 %v2002
    %3626 = vmatmul.mubr.bf16.gmra.mxu0 %v2001
    %v3627 = vpop.f32.mrf.mxu0
    %v3628 = vadd.f32 %v3339, %v3627
    %v3629 = vpop.f32.mrf.mxu0
    %v3630 = vpop.f32.mrf.mxu0
    %v3631 = vadd.f32 %v3342, %v3630
    %v3632 = vpop.f32.mrf.mxu0
    %3633 = vmatprep.mubr.bf16.mxu0 %v2005
    %3634 = vmatmul.mubr.bf16.gmra.mxu0 %v2004
    %v3635 = vpop.f32.mrf.mxu0
    %v3636 = vadd.f32 %v3347, %v3635
    %v3637 = vpop.f32.mrf.mxu0
    %v3638 = vpop.f32.mrf.mxu0
    %v3639 = vadd.f32 %v3350, %v3638
    %v3640 = vpop.f32.mrf.mxu0
    %3641 = vmatprep.mubr.bf16.mxu0 %v2008
    %3642 = vmatmul.mubr.bf16.gmra.mxu0 %v2007
    %v3643 = vpop.f32.mrf.mxu0
    %v3644 = vadd.f32 %v3355, %v3643
    %v3645 = vpop.f32.mrf.mxu0
    %v3646 = vpop.f32.mrf.mxu0
    %v3647 = vadd.f32 %v3358, %v3646
    %v3648 = vpop.f32.mrf.mxu0
    %3649 = vmatprep.mubr.bf16.mxu0 %v2011
    %3650 = vmatmul.mubr.bf16.gmra.mxu0 %v2010
    %v3651 = vpop.f32.mrf.mxu0
    %v3652 = vadd.f32 %v3363, %v3651
    %v3653 = vpop.f32.mrf.mxu0
    %v3654 = vpop.f32.mrf.mxu0
    %v3655 = vadd.f32 %v3366, %v3654
    %v3656 = vpop.f32.mrf.mxu0
    %3657 = vmatprep.mubr.bf16.mxu0 %v2014
    %3658 = vmatmul.mubr.bf16.gmra.mxu0 %v2013
    %v3659 = vpop.f32.mrf.mxu0
    %v3660 = vadd.f32 %v3371, %v3659
    %v3661 = vpop.f32.mrf.mxu0
    %v3662 = vpop.f32.mrf.mxu0
    %v3663 = vadd.f32 %v3374, %v3662
    %v3664 = vpop.f32.mrf.mxu0
    %3665 = vmatprep.mubr.bf16.mxu0 %v2017
    %3666 = vmatmul.mubr.bf16.gmra.mxu0 %v2016
    %v3667 = vpop.f32.mrf.mxu0
    %v3668 = vadd.f32 %v3379, %v3667
    %v3669 = vpop.f32.mrf.mxu0
    %v3670 = vpop.f32.mrf.mxu0
    %v3671 = vadd.f32 %v3382, %v3670
    %v3672 = vpop.f32.mrf.mxu0
    %3673 = vmatprep.mubr.bf16.mxu0 %v2020
    %3674 = vmatmul.mubr.bf16.gmra.mxu0 %v2019
    %v3675 = vpop.f32.mrf.mxu0
    %v3676 = vadd.f32 %v3387, %v3675
    %v3677 = vpop.f32.mrf.mxu0
    %v3678 = vpop.f32.mrf.mxu0
    %v3679 = vadd.f32 %v3390, %v3678
    %v3680 = vpop.f32.mrf.mxu0
    %3681 = vmatprep.mubr.bf16.mxu0 %v2023
    %3682 = vmatmul.mubr.bf16.gmra.mxu0 %v2022
    %v3683 = vpop.f32.mrf.mxu0
    %v3684 = vadd.f32 %v3395, %v3683
    %v3685 = vpop.f32.mrf.mxu0
    %v3686 = vpop.f32.mrf.mxu0
    %v3687 = vadd.f32 %v3398, %v3686
    %v3688 = vpop.f32.mrf.mxu0
    %3689 = vmatprep.mubr.bf16.mxu0 %v2032
    %3690 = vmatmul.mubr.bf16.gmra.mxu0 %v2031
    %v3691 = vpop.f32.mrf.mxu0
    %v3692 = vadd.f32 %v3403, %v3691
    %v3693 = vpop.f32.mrf.mxu0
    %v3694 = vpop.f32.mrf.mxu0
    %v3695 = vadd.f32 %v3406, %v3694
    %v3696 = vpop.f32.mrf.mxu0
    %3697 = vmatprep.mubr.bf16.mxu0 %v2035
    %3698 = vmatmul.mubr.bf16.gmra.mxu0 %v2034
    %v3699 = vpop.f32.mrf.mxu0
    %v3700 = vadd.f32 %v3411, %v3699
    %v3701 = vpop.f32.mrf.mxu0
    %v3702 = vpop.f32.mrf.mxu0
    %v3703 = vadd.f32 %v3414, %v3702
    %v3704 = vpop.f32.mrf.mxu0
    %3705 = vmatprep.mubr.bf16.mxu0 %v2038
    %3706 = vmatmul.mubr.bf16.gmra.mxu0 %v2037
    %v3707 = vpop.f32.mrf.mxu0
    %v3708 = vadd.f32 %v3419, %v3707
    %v3709 = vpop.f32.mrf.mxu0
    %v3710 = vpop.f32.mrf.mxu0
    %v3711 = vadd.f32 %v3422, %v3710
    %v3712 = vpop.f32.mrf.mxu0
    %3713 = vmatprep.mubr.bf16.mxu0 %v2041
    %3714 = vmatmul.mubr.bf16.gmra.mxu0 %v2040
    %v3715 = vpop.f32.mrf.mxu0
    %v3716 = vadd.f32 %v3427, %v3715
    %v3717 = vpop.f32.mrf.mxu0
    %v3718 = vpop.f32.mrf.mxu0
    %v3719 = vadd.f32 %v3430, %v3718
    %v3720 = vpop.f32.mrf.mxu0
    %3721 = vmatprep.mubr.bf16.mxu0 %v2044
    %3722 = vmatmul.mubr.bf16.gmra.mxu0 %v2043
    %v3723 = vpop.f32.mrf.mxu0
    %v3724 = vadd.f32 %v3435, %v3723
    %v3725 = vpop.f32.mrf.mxu0
    %v3726 = vpop.f32.mrf.mxu0
    %v3727 = vadd.f32 %v3438, %v3726
    %v3728 = vpop.f32.mrf.mxu0
    %3729 = vmatprep.mubr.bf16.mxu0 %v2047
    %3730 = vmatmul.mubr.bf16.gmra.mxu0 %v2046
    %v3731 = vpop.f32.mrf.mxu0
    %v3732 = vadd.f32 %v3443, %v3731
    %v3733 = vpop.f32.mrf.mxu0
    %v3734 = vpop.f32.mrf.mxu0
    %v3735 = vadd.f32 %v3446, %v3734
    %v3736 = vpop.f32.mrf.mxu0
    %3737 = vmatprep.mubr.bf16.mxu0 %v2050
    %3738 = vmatmul.mubr.bf16.gmra.mxu0 %v2049
    %v3739 = vpop.f32.mrf.mxu0
    %v3740 = vadd.f32 %v3451, %v3739
    %v3741 = vpop.f32.mrf.mxu0
    %v3742 = vpop.f32.mrf.mxu0
    %v3743 = vadd.f32 %v3454, %v3742
    %v3744 = vpop.f32.mrf.mxu0
    %3745 = vmatprep.mubr.bf16.mxu0 %v2053
    %3746 = vmatmul.mubr.bf16.gmra.mxu0 %v2052
    %v3747 = vpop.f32.mrf.mxu0
    %v3748 = vadd.f32 %v3459, %v3747
    %v3749 = vpop.f32.mrf.mxu0
    %v3750 = vpop.f32.mrf.mxu0
    %v3751 = vadd.f32 %v3462, %v3750
    %v3752 = vpop.f32.mrf.mxu0
    %3753 = vmatprep.mubr.bf16.mxu0 %v2056
    %3754 = vmatmul.mubr.bf16.gmra.mxu0 %v2055
    %v3755 = vpop.f32.mrf.mxu0
    %v3756 = vadd.f32 %v3467, %v3755
    %v3757 = vpop.f32.mrf.mxu0
    %v3758 = vpop.f32.mrf.mxu0
    %v3759 = vadd.f32 %v3470, %v3758
    %v3760 = vpop.f32.mrf.mxu0
    %3761 = vmatprep.mubr.bf16.mxu0 %v2059
    %3762 = vmatmul.mubr.bf16.gmra.mxu0 %v2058
    %v3763 = vpop.f32.mrf.mxu0
    %v3764 = vadd.f32 %v3475, %v3763
    %v3765 = vpop.f32.mrf.mxu0
    %v3766 = vpop.f32.mrf.mxu0
    %v3767 = vadd.f32 %v3478, %v3766
    %v3768 = vpop.f32.mrf.mxu0
    %3769 = vmatprep.mubr.bf16.mxu0 %v2062
    %3770 = vmatmul.mubr.bf16.gmra.mxu0 %v2061
    %v3771 = vpop.f32.mrf.mxu0
    %v3772 = vadd.f32 %v3483, %v3771
    %v3773 = vpop.f32.mrf.mxu0
    %v3774 = vpop.f32.mrf.mxu0
    %v3775 = vadd.f32 %v3486, %v3774
    %v3776 = vpop.f32.mrf.mxu0
    %3777 = vmatprep.mubr.bf16.mxu0 %v2065
    %3778 = vmatmul.mubr.bf16.gmra.mxu0 %v2064
    %v3779 = vpop.f32.mrf.mxu0
    %v3780 = vadd.f32 %v3491, %v3779
    %v3781 = vpop.f32.mrf.mxu0
    %v3782 = vpop.f32.mrf.mxu0
    %v3783 = vadd.f32 %v3494, %v3782
    %v3784 = vpop.f32.mrf.mxu0
    %3785 = vmatprep.mubr.bf16.mxu0 %v2068
    %3786 = vmatmul.mubr.bf16.gmra.mxu0 %v2067
    %v3787 = vpop.f32.mrf.mxu0
    %v3788 = vadd.f32 %v3499, %v3787
    %v3789 = vpop.f32.mrf.mxu0
    %v3790 = vpop.f32.mrf.mxu0
    %v3791 = vadd.f32 %v3502, %v3790
    %v3792 = vpop.f32.mrf.mxu0
    %3793 = vmatprep.mubr.bf16.mxu0 %v2071
    %3794 = vmatmul.mubr.bf16.gmra.mxu0 %v2070
    %v3795 = vpop.f32.mrf.mxu0
    %v3796 = vadd.f32 %v3507, %v3795
    %v3797 = vpop.f32.mrf.mxu0
    %v3798 = vpop.f32.mrf.mxu0
    %v3799 = vadd.f32 %v3510, %v3798
    %v3800 = vpop.f32.mrf.mxu0
    %3801 = vmatprep.mubr.bf16.mxu0 %v2074
    %3802 = vmatmul.mubr.bf16.gmra.mxu0 %v2073
    %v3803 = vpop.f32.mrf.mxu0
    %v3804 = vadd.f32 %v3515, %v3803
    %v3805 = vpop.f32.mrf.mxu0
    %v3806 = vpop.f32.mrf.mxu0
    %v3807 = vadd.f32 %v3518, %v3806
    %v3808 = vpop.f32.mrf.mxu0
    %3809 = vmatprep.mubr.bf16.mxu0 %v2077
    %3810 = vmatmul.mubr.bf16.gmra.mxu0 %v2076
    %v3811 = vpop.f32.mrf.mxu0
    %v3812 = vadd.f32 %v3523, %v3811
    %v3813 = vpop.f32.mrf.mxu0
    %v3814 = vpop.f32.mrf.mxu0
    %v3815 = vadd.f32 %v3526, %v3814
    %v3816 = vpop.f32.mrf.mxu0
    %3817 = vdwg.mxu0
    %3818 = vmatprep.subr.bf16.mxu0 0
    %3819 = vmatpush1.bf16.msra.mxu0 %v2589
    %3820 = vmatprep.subr.bf16.mxu0 0
    %3821 = vmatpush1.bf16.msra.mxu0 %v2588
    %3822 = vmatprep.subr.bf16.mxu0 0
    %3823 = vmatpush1.bf16.msra.mxu0 %v2587
    %3824 = vmatprep.subr.bf16.mxu0 0
    %3825 = vmatpush1.bf16.msra.mxu0 %v2586
    %3826 = vmatprep.subr.bf16.mxu0 0
    %3827 = vmatpush1.bf16.msra.mxu0 %v2585
    %3828 = vmatprep.subr.bf16.mxu0 0
    %3829 = vmatpush1.bf16.msra.mxu0 %v2584
    %3830 = vmatprep.subr.bf16.mxu0 0
    %3831 = vmatpush1.bf16.msra.mxu0 %v2583
    %3832 = vmatprep.subr.bf16.mxu0 0
    %3833 = vmatpush1.bf16.msra.mxu0 %v2582
    %3834 = vmatprep.subr.bf16.mxu0 0
    %3835 = vmatpush2.bf16.msra.mxu0 0
    %3836 = vmatprep.subr.bf16.mxu0 0
    %3837 = vmatpush2.bf16.msra.mxu0 0
    %3838 = vmatprep.subr.bf16.mxu0 0
    %3839 = vmatpush2.bf16.msra.mxu0 0
    %3840 = vmatprep.subr.bf16.mxu0 0
    %3841 = vmatpush2.bf16.msra.mxu0 0
    %3842 = vmatprep.subr.bf16.mxu0 0
    %3843 = vmatpush2.bf16.msra.mxu0 0
    %3844 = vmatprep.subr.bf16.mxu0 0
    %3845 = vmatpush2.bf16.msra.mxu0 0
    %3846 = vmatprep.subr.bf16.mxu0 0
    %3847 = vmatpush2.bf16.msra.mxu0 0
    %3848 = vmatprep.subr.bf16.mxu0 0
    %3849 = vmatpush2.bf16.msra.mxu0 0
    %3850 = vmatprep.mubr.bf16.mxu0 0
    %3851 = vmatmul.mubr.bf16.gmra.mxu0 %v1979
    %v3852 = vpop.f32.mrf.mxu0
    %v3853 = vadd.f32 %v3564, %v3852
    %v3854 = vpop.f32.mrf.mxu0
    %v3855 = vpop.f32.mrf.mxu0
    %v3856 = vadd.f32 %v3567, %v3855
    %v3857 = vpop.f32.mrf.mxu0
    %3858 = vmatprep.mubr.bf16.mxu0 0
    %3859 = vmatmul.mubr.bf16.gmra.mxu0 %v1982
    %v3860 = vpop.f32.mrf.mxu0
    %v3861 = vadd.f32 %v3572, %v3860
    %v3862 = vpop.f32.mrf.mxu0
    %v3863 = vpop.f32.mrf.mxu0
    %v3864 = vadd.f32 %v3575, %v3863
    %v3865 = vpop.f32.mrf.mxu0
    %3866 = vmatprep.mubr.bf16.mxu0 0
    %3867 = vmatmul.mubr.bf16.gmra.mxu0 %v1985
    %v3868 = vpop.f32.mrf.mxu0
    %v3869 = vadd.f32 %v3580, %v3868
    %v3870 = vpop.f32.mrf.mxu0
    %v3871 = vpop.f32.mrf.mxu0
    %v3872 = vadd.f32 %v3583, %v3871
    %v3873 = vpop.f32.mrf.mxu0
    %3874 = vmatprep.mubr.bf16.mxu0 0
    %3875 = vmatmul.mubr.bf16.gmra.mxu0 %v1988
    %v3876 = vpop.f32.mrf.mxu0
    %v3877 = vadd.f32 %v3588, %v3876
    %v3878 = vpop.f32.mrf.mxu0
    %v3879 = vpop.f32.mrf.mxu0
    %v3880 = vadd.f32 %v3591, %v3879
    %v3881 = vpop.f32.mrf.mxu0
    %3882 = vmatprep.mubr.bf16.mxu0 0
    %3883 = vmatmul.mubr.bf16.gmra.mxu0 %v1991
    %v3884 = vpop.f32.mrf.mxu0
    %v3885 = vadd.f32 %v3596, %v3884
    %v3886 = vpop.f32.mrf.mxu0
    %v3887 = vpop.f32.mrf.mxu0
    %v3888 = vadd.f32 %v3599, %v3887
    %v3889 = vpop.f32.mrf.mxu0
    %3890 = vmatprep.mubr.bf16.mxu0 0
    %3891 = vmatmul.mubr.bf16.gmra.mxu0 %v1994
    %v3892 = vpop.f32.mrf.mxu0
    %v3893 = vadd.f32 %v3604, %v3892
    %v3894 = vpop.f32.mrf.mxu0
    %v3895 = vpop.f32.mrf.mxu0
    %v3896 = vadd.f32 %v3607, %v3895
    %v3897 = vpop.f32.mrf.mxu0
    %3898 = vmatprep.mubr.bf16.mxu0 0
    %3899 = vmatmul.mubr.bf16.gmra.mxu0 %v1997
    %v3900 = vpop.f32.mrf.mxu0
    %v3901 = vadd.f32 %v3612, %v3900
    %v3902 = vpop.f32.mrf.mxu0
    %v3903 = vpop.f32.mrf.mxu0
    %v3904 = vadd.f32 %v3615, %v3903
    %v3905 = vpop.f32.mrf.mxu0
    %3906 = vmatprep.mubr.bf16.mxu0 0
    %3907 = vmatmul.mubr.bf16.gmra.mxu0 %v2000
    %v3908 = vpop.f32.mrf.mxu0
    %v3909 = vadd.f32 %v3620, %v3908
    %v3910 = vpop.f32.mrf.mxu0
    %v3911 = vpop.f32.mrf.mxu0
    %v3912 = vadd.f32 %v3623, %v3911
    %v3913 = vpop.f32.mrf.mxu0
    %3914 = vmatprep.mubr.bf16.mxu0 0
    %3915 = vmatmul.mubr.bf16.gmra.mxu0 %v2003
    %v3916 = vpop.f32.mrf.mxu0
    %v3917 = vadd.f32 %v3628, %v3916
    %v3918 = vpop.f32.mrf.mxu0
    %v3919 = vpop.f32.mrf.mxu0
    %v3920 = vadd.f32 %v3631, %v3919
    %v3921 = vpop.f32.mrf.mxu0
    %3922 = vmatprep.mubr.bf16.mxu0 0
    %3923 = vmatmul.mubr.bf16.gmra.mxu0 %v2006
    %v3924 = vpop.f32.mrf.mxu0
    %v3925 = vadd.f32 %v3636, %v3924
    %v3926 = vpop.f32.mrf.mxu0
    %v3927 = vpop.f32.mrf.mxu0
    %v3928 = vadd.f32 %v3639, %v3927
    %v3929 = vpop.f32.mrf.mxu0
    %3930 = vmatprep.mubr.bf16.mxu0 0
    %3931 = vmatmul.mubr.bf16.gmra.mxu0 %v2009
    %v3932 = vpop.f32.mrf.mxu0
    %v3933 = vadd.f32 %v3644, %v3932
    %v3934 = vpop.f32.mrf.mxu0
    %v3935 = vpop.f32.mrf.mxu0
    %v3936 = vadd.f32 %v3647, %v3935
    %v3937 = vpop.f32.mrf.mxu0
    %3938 = vmatprep.mubr.bf16.mxu0 0
    %3939 = vmatmul.mubr.bf16.gmra.mxu0 %v2012
    %v3940 = vpop.f32.mrf.mxu0
    %v3941 = vadd.f32 %v3652, %v3940
    %v3942 = vpop.f32.mrf.mxu0
    %v3943 = vpop.f32.mrf.mxu0
    %v3944 = vadd.f32 %v3655, %v3943
    %v3945 = vpop.f32.mrf.mxu0
    %3946 = vmatprep.mubr.bf16.mxu0 0
    %3947 = vmatmul.mubr.bf16.gmra.mxu0 %v2015
    %v3948 = vpop.f32.mrf.mxu0
    %v3949 = vadd.f32 %v3660, %v3948
    %v3950 = vpop.f32.mrf.mxu0
    %v3951 = vpop.f32.mrf.mxu0
    %v3952 = vadd.f32 %v3663, %v3951
    %v3953 = vpop.f32.mrf.mxu0
    %3954 = vmatprep.mubr.bf16.mxu0 0
    %3955 = vmatmul.mubr.bf16.gmra.mxu0 %v2018
    %v3956 = vpop.f32.mrf.mxu0
    %v3957 = vadd.f32 %v3668, %v3956
    %v3958 = vpop.f32.mrf.mxu0
    %v3959 = vpop.f32.mrf.mxu0
    %v3960 = vadd.f32 %v3671, %v3959
    %v3961 = vpop.f32.mrf.mxu0
    %3962 = vmatprep.mubr.bf16.mxu0 0
    %3963 = vmatmul.mubr.bf16.gmra.mxu0 %v2021
    %v3964 = vpop.f32.mrf.mxu0
    %v3965 = vadd.f32 %v3676, %v3964
    %v3966 = vpop.f32.mrf.mxu0
    %v3967 = vpop.f32.mrf.mxu0
    %v3968 = vadd.f32 %v3679, %v3967
    %v3969 = vpop.f32.mrf.mxu0
    %3970 = vmatprep.mubr.bf16.mxu0 0
    %3971 = vmatmul.mubr.bf16.gmra.mxu0 %v2024
    %v3972 = vpop.f32.mrf.mxu0
    %v3973 = vadd.f32 %v3684, %v3972
    %v3974 = vpop.f32.mrf.mxu0
    %v3975 = vpop.f32.mrf.mxu0
    %v3976 = vadd.f32 %v3687, %v3975
    %v3977 = vpop.f32.mrf.mxu0
    %3978 = vmatprep.mubr.bf16.mxu0 0
    %3979 = vmatmul.mubr.bf16.gmra.mxu0 %v2033
    %v3980 = vpop.f32.mrf.mxu0
    %v3981 = vadd.f32 %v3692, %v3980
    %v3982 = vpop.f32.mrf.mxu0
    %v3983 = vpop.f32.mrf.mxu0
    %v3984 = vadd.f32 %v3695, %v3983
    %v3985 = vpop.f32.mrf.mxu0
    %3986 = vmatprep.mubr.bf16.mxu0 0
    %3987 = vmatmul.mubr.bf16.gmra.mxu0 %v2036
    %v3988 = vpop.f32.mrf.mxu0
    %v3989 = vadd.f32 %v3700, %v3988
    %v3990 = vpop.f32.mrf.mxu0
    %v3991 = vpop.f32.mrf.mxu0
    %v3992 = vadd.f32 %v3703, %v3991
    %v3993 = vpop.f32.mrf.mxu0
    %3994 = vmatprep.mubr.bf16.mxu0 0
    %3995 = vmatmul.mubr.bf16.gmra.mxu0 %v2039
    %v3996 = vpop.f32.mrf.mxu0
    %v3997 = vadd.f32 %v3708, %v3996
    %v3998 = vpop.f32.mrf.mxu0
    %v3999 = vpop.f32.mrf.mxu0
    %v4000 = vadd.f32 %v3711, %v3999
    %v4001 = vpop.f32.mrf.mxu0
    %4002 = vmatprep.mubr.bf16.mxu0 0
    %4003 = vmatmul.mubr.bf16.gmra.mxu0 %v2042
    %v4004 = vpop.f32.mrf.mxu0
    %v4005 = vadd.f32 %v3716, %v4004
    %v4006 = vpop.f32.mrf.mxu0
    %v4007 = vpop.f32.mrf.mxu0
    %v4008 = vadd.f32 %v3719, %v4007
    %v4009 = vpop.f32.mrf.mxu0
    %4010 = vmatprep.mubr.bf16.mxu0 0
    %4011 = vmatmul.mubr.bf16.gmra.mxu0 %v2045
    %v4012 = vpop.f32.mrf.mxu0
    %v4013 = vadd.f32 %v3724, %v4012
    %v4014 = vpop.f32.mrf.mxu0
    %v4015 = vpop.f32.mrf.mxu0
    %v4016 = vadd.f32 %v3727, %v4015
    %v4017 = vpop.f32.mrf.mxu0
    %4018 = vmatprep.mubr.bf16.mxu0 0
    %4019 = vmatmul.mubr.bf16.gmra.mxu0 %v2048
    %v4020 = vpop.f32.mrf.mxu0
    %v4021 = vadd.f32 %v3732, %v4020
    %v4022 = vpop.f32.mrf.mxu0
    %v4023 = vpop.f32.mrf.mxu0
    %v4024 = vadd.f32 %v3735, %v4023
    %v4025 = vpop.f32.mrf.mxu0
    %4026 = vmatprep.mubr.bf16.mxu0 0
    %4027 = vmatmul.mubr.bf16.gmra.mxu0 %v2051
    %v4028 = vpop.f32.mrf.mxu0
    %v4029 = vadd.f32 %v3740, %v4028
    %v4030 = vpop.f32.mrf.mxu0
    %v4031 = vpop.f32.mrf.mxu0
    %v4032 = vadd.f32 %v3743, %v4031
    %v4033 = vpop.f32.mrf.mxu0
    %4034 = vmatprep.mubr.bf16.mxu0 0
    %4035 = vmatmul.mubr.bf16.gmra.mxu0 %v2054
    %v4036 = vpop.f32.mrf.mxu0
    %v4037 = vadd.f32 %v3748, %v4036
    %v4038 = vpop.f32.mrf.mxu0
    %v4039 = vpop.f32.mrf.mxu0
    %v4040 = vadd.f32 %v3751, %v4039
    %v4041 = vpop.f32.mrf.mxu0
    %4042 = vmatprep.mubr.bf16.mxu0 0
    %4043 = vmatmul.mubr.bf16.gmra.mxu0 %v2057
    %v4044 = vpop.f32.mrf.mxu0
    %v4045 = vadd.f32 %v3756, %v4044
    %v4046 = vpop.f32.mrf.mxu0
    %v4047 = vpop.f32.mrf.mxu0
    %v4048 = vadd.f32 %v3759, %v4047
    %v4049 = vpop.f32.mrf.mxu0
    %4050 = vmatprep.mubr.bf16.mxu0 0
    %4051 = vmatmul.mubr.bf16.gmra.mxu0 %v2060
    %v4052 = vpop.f32.mrf.mxu0
    %v4053 = vadd.f32 %v3764, %v4052
    %v4054 = vpop.f32.mrf.mxu0
    %v4055 = vpop.f32.mrf.mxu0
    %v4056 = vadd.f32 %v3767, %v4055
    %v4057 = vpop.f32.mrf.mxu0
    %4058 = vmatprep.mubr.bf16.mxu0 0
    %4059 = vmatmul.mubr.bf16.gmra.mxu0 %v2063
    %v4060 = vpop.f32.mrf.mxu0
    %v4061 = vadd.f32 %v3772, %v4060
    %v4062 = vpop.f32.mrf.mxu0
    %v4063 = vpop.f32.mrf.mxu0
    %v4064 = vadd.f32 %v3775, %v4063
    %v4065 = vpop.f32.mrf.mxu0
    %4066 = vmatprep.mubr.bf16.mxu0 0
    %4067 = vmatmul.mubr.bf16.gmra.mxu0 %v2066
    %v4068 = vpop.f32.mrf.mxu0
    %v4069 = vadd.f32 %v3780, %v4068
    %v4070 = vpop.f32.mrf.mxu0
    %v4071 = vpop.f32.mrf.mxu0
    %v4072 = vadd.f32 %v3783, %v4071
    %v4073 = vpop.f32.mrf.mxu0
    %4074 = vmatprep.mubr.bf16.mxu0 0
    %4075 = vmatmul.mubr.bf16.gmra.mxu0 %v2069
    %v4076 = vpop.f32.mrf.mxu0
    %v4077 = vadd.f32 %v3788, %v4076
    %v4078 = vpop.f32.mrf.mxu0
    %v4079 = vpop.f32.mrf.mxu0
    %v4080 = vadd.f32 %v3791, %v4079
    %v4081 = vpop.f32.mrf.mxu0
    %4082 = vmatprep.mubr.bf16.mxu0 0
    %4083 = vmatmul.mubr.bf16.gmra.mxu0 %v2072
    %v4084 = vpop.f32.mrf.mxu0
    %v4085 = vadd.f32 %v3796, %v4084
    %v4086 = vpop.f32.mrf.mxu0
    %v4087 = vpop.f32.mrf.mxu0
    %v4088 = vadd.f32 %v3799, %v4087
    %v4089 = vpop.f32.mrf.mxu0
    %4090 = vmatprep.mubr.bf16.mxu0 0
    %4091 = vmatmul.mubr.bf16.gmra.mxu0 %v2075
    %v4092 = vpop.f32.mrf.mxu0
    %v4093 = vadd.f32 %v3804, %v4092
    %v4094 = vpop.f32.mrf.mxu0
    %v4095 = vpop.f32.mrf.mxu0
    %v4096 = vadd.f32 %v3807, %v4095
    %v4097 = vpop.f32.mrf.mxu0
    %4098 = vmatprep.mubr.bf16.mxu0 0
    %4099 = vmatmul.mubr.bf16.gmra.mxu0 %v2078
    %v4100 = vpop.f32.mrf.mxu0
    %v4101 = vadd.f32 %v3812, %v4100
    %v4102 = vpop.f32.mrf.mxu0
    %v4103 = vpop.f32.mrf.mxu0
    %v4104 = vadd.f32 %v3815, %v4103
    %v4105 = vpop.f32.mrf.mxu0
    %4106 = vdwg.mxu0
    %v4107 = vld [vmem:[%s7] sm:$0x1]
    %v4108 = vld [vmem:[%s8] sm:$0x1]
    %v4109 = vadd.f32 %v3853, %v3856
    %v4110 = vadd.f32 %v4109, %v3861
    %v4111 = vadd.f32 %v4110, %v3864
    %v4112 = vadd.f32 %v4111, %v3869
    %v4113 = vadd.f32 %v4112, %v3872
    %v4114 = vadd.f32 %v4113, %v3877
    %v4115 = vadd.f32 %v4114, %v3880
    %v4116 = vadd.f32 %v4115, %v3885
    %v4117 = vadd.f32 %v4116, %v3888
    %v4118 = vadd.f32 %v4117, %v3893
    %v4119 = vadd.f32 %v4118, %v3896
    %v4120 = vadd.f32 %v4119, %v3901
    %v4121 = vadd.f32 %v4120, %v3904
    %v4122 = vadd.f32 %v4121, %v3909
    %v4123 = vadd.f32 %v4122, %v3912
    %v4124 = vadd.f32 %v4123, %v3917
    %v4125 = vadd.f32 %v4124, %v3920
    %v4126 = vadd.f32 %v4125, %v3925
    %v4127 = vadd.f32 %v4126, %v3928
    %v4128 = vadd.f32 %v4127, %v3933
    %v4129 = vadd.f32 %v4128, %v3936
    %v4130 = vadd.f32 %v4129, %v3941
    %v4131 = vadd.f32 %v4130, %v3944
    %v4132 = vadd.f32 %v4131, %v3949
    %v4133 = vadd.f32 %v4132, %v3952
    %v4134 = vadd.f32 %v4133, %v3957
    %v4135 = vadd.f32 %v4134, %v3960
    %v4136 = vadd.f32 %v4135, %v3965
    %v4137 = vadd.f32 %v4136, %v3968
    %v4138 = vadd.f32 %v4137, %v3973
    %v4139 = vadd.f32 %v4138, %v3976
    %v4140 = vadd.f32 %v4139, %v3981
    %v4141 = vadd.f32 %v4140, %v3984
    %v4142 = vadd.f32 %v4141, %v3989
    %v4143 = vadd.f32 %v4142, %v3992
    %v4144 = vadd.f32 %v4143, %v3997
    %v4145 = vadd.f32 %v4144, %v4000
    %v4146 = vadd.f32 %v4145, %v4005
    %v4147 = vadd.f32 %v4146, %v4008
    %v4148 = vadd.f32 %v4147, %v4013
    %v4149 = vadd.f32 %v4148, %v4016
    %v4150 = vadd.f32 %v4149, %v4021
    %v4151 = vadd.f32 %v4150, %v4024
    %v4152 = vadd.f32 %v4151, %v4029
    %v4153 = vadd.f32 %v4152, %v4032
    %v4154 = vadd.f32 %v4153, %v4037
    %v4155 = vadd.f32 %v4154, %v4040
    %v4156 = vadd.f32 %v4155, %v4045
    %v4157 = vadd.f32 %v4156, %v4048
    %v4158 = vadd.f32 %v4157, %v4053
    %v4159 = vadd.f32 %v4158, %v4056
    %v4160 = vadd.f32 %v4159, %v4061
    %v4161 = vadd.f32 %v4160, %v4064
    %v4162 = vadd.f32 %v4161, %v4069
    %v4163 = vadd.f32 %v4162, %v4072
    %v4164 = vadd.f32 %v4163, %v4077
    %v4165 = vadd.f32 %v4164, %v4080
    %v4166 = vadd.f32 %v4165, %v4085
    %v4167 = vadd.f32 %v4166, %v4088
    %v4168 = vadd.f32 %v4167, %v4093
    %v4169 = vadd.f32 %v4168, %v4096
    %v4170 = vadd.f32 %v4169, %v4101
    %v4171 = vadd.f32 %v4170, %v4104
    %v4172 = vrot.slane %v4171, 4
    %v4173 = vadd.f32 %v4171, %v4172
    %v4174 = vrot.slane %v4173, 2
    %v4175 = vadd.f32 %v4173, %v4174
    %v4176 = vrot.slane %v4175, 1
    %v4177 = vadd.f32 %v4175, %v4176
    %v4178 = vmul.f32 %v3853, %v3853
    %v4179 = vmul.f32 %v3856, %v3856
    %v4180 = vmul.f32 %v3861, %v3861
    %v4181 = vmul.f32 %v3864, %v3864
    %v4182 = vmul.f32 %v3869, %v3869
    %v4183 = vmul.f32 %v3872, %v3872
    %v4184 = vmul.f32 %v3877, %v3877
    %v4185 = vmul.f32 %v3880, %v3880
    %v4186 = vmul.f32 %v3885, %v3885
    %v4187 = vmul.f32 %v3888, %v3888
    %v4188 = vmul.f32 %v3893, %v3893
    %v4189 = vmul.f32 %v3896, %v3896
    %v4190 = vmul.f32 %v3901, %v3901
    %v4191 = vmul.f32 %v3904, %v3904
    %v4192 = vmul.f32 %v3909, %v3909
    %v4193 = vmul.f32 %v3912, %v3912
    %v4194 = vmul.f32 %v3917, %v3917
    %v4195 = vmul.f32 %v3920, %v3920
    %v4196 = vmul.f32 %v3925, %v3925
    %v4197 = vmul.f32 %v3928, %v3928
    %v4198 = vmul.f32 %v3933, %v3933
    %v4199 = vmul.f32 %v3936, %v3936
    %v4200 = vmul.f32 %v3941, %v3941
    %v4201 = vmul.f32 %v3944, %v3944
    %v4202 = vmul.f32 %v3949, %v3949
    %v4203 = vmul.f32 %v3952, %v3952
    %v4204 = vmul.f32 %v3957, %v3957
    %v4205 = vmul.f32 %v3960, %v3960
    %v4206 = vmul.f32 %v3965, %v3965
    %v4207 = vmul.f32 %v3968, %v3968
    %v4208 = vmul.f32 %v3973, %v3973
    %v4209 = vmul.f32 %v3976, %v3976
    %v4210 = vmul.f32 %v3981, %v3981
    %v4211 = vmul.f32 %v3984, %v3984
    %v4212 = vmul.f32 %v3989, %v3989
    %v4213 = vmul.f32 %v3992, %v3992
    %v4214 = vmul.f32 %v3997, %v3997
    %v4215 = vmul.f32 %v4000, %v4000
    %v4216 = vmul.f32 %v4005, %v4005
    %v4217 = vmul.f32 %v4008, %v4008
    %v4218 = vmul.f32 %v4013, %v4013
    %v4219 = vmul.f32 %v4016, %v4016
    %v4220 = vmul.f32 %v4021, %v4021
    %v4221 = vmul.f32 %v4024, %v4024
    %v4222 = vmul.f32 %v4029, %v4029
    %v4223 = vmul.f32 %v4032, %v4032
    %v4224 = vmul.f32 %v4037, %v4037
    %v4225 = vmul.f32 %v4040, %v4040
    %v4226 = vmul.f32 %v4045, %v4045
    %v4227 = vmul.f32 %v4048, %v4048
    %v4228 = vmul.f32 %v4053, %v4053
    %v4229 = vmul.f32 %v4056, %v4056
    %v4230 = vmul.f32 %v4061, %v4061
    %v4231 = vmul.f32 %v4064, %v4064
    %v4232 = vmul.f32 %v4069, %v4069
    %v4233 = vmul.f32 %v4072, %v4072
    %v4234 = vmul.f32 %v4077, %v4077
    %v4235 = vmul.f32 %v4080, %v4080
    %v4236 = vmul.f32 %v4085, %v4085
    %v4237 = vmul.f32 %v4088, %v4088
    %v4238 = vmul.f32 %v4093, %v4093
    %v4239 = vmul.f32 %v4096, %v4096
    %v4240 = vmul.f32 %v4101, %v4101
    %v4241 = vmul.f32 %v4104, %v4104
    %v4242 = vadd.f32 %v4178, %v4179
    %v4243 = vadd.f32 %v4242, %v4180
    %v4244 = vadd.f32 %v4243, %v4181
    %v4245 = vadd.f32 %v4244, %v4182
    %v4246 = vadd.f32 %v4245, %v4183
    %v4247 = vadd.f32 %v4246, %v4184
    %v4248 = vadd.f32 %v4247, %v4185
    %v4249 = vadd.f32 %v4248, %v4186
    %v4250 = vadd.f32 %v4249, %v4187
    %v4251 = vadd.f32 %v4250, %v4188
    %v4252 = vadd.f32 %v4251, %v4189
    %v4253 = vadd.f32 %v4252, %v4190
    %v4254 = vadd.f32 %v4253, %v4191
    %v4255 = vadd.f32 %v4254, %v4192
    %v4256 = vadd.f32 %v4255, %v4193
    %v4257 = vadd.f32 %v4256, %v4194
    %v4258 = vadd.f32 %v4257, %v4195
    %v4259 = vadd.f32 %v4258, %v4196
    %v4260 = vadd.f32 %v4259, %v4197
    %v4261 = vadd.f32 %v4260, %v4198
    %v4262 = vadd.f32 %v4261, %v4199
    %v4263 = vadd.f32 %v4262, %v4200
    %v4264 = vadd.f32 %v4263, %v4201
    %v4265 = vadd.f32 %v4264, %v4202
    %v4266 = vadd.f32 %v4265, %v4203
    %v4267 = vadd.f32 %v4266, %v4204
    %v4268 = vadd.f32 %v4267, %v4205
    %v4269 = vadd.f32 %v4268, %v4206
    %v4270 = vadd.f32 %v4269, %v4207
    %v4271 = vadd.f32 %v4270, %v4208
    %v4272 = vadd.f32 %v4271, %v4209
    %v4273 = vadd.f32 %v4272, %v4210
    %v4274 = vadd.f32 %v4273, %v4211
    %v4275 = vadd.f32 %v4274, %v4212
    %v4276 = vadd.f32 %v4275, %v4213
    %v4277 = vadd.f32 %v4276, %v4214
    %v4278 = vadd.f32 %v4277, %v4215
    %v4279 = vadd.f32 %v4278, %v4216
    %v4280 = vadd.f32 %v4279, %v4217
    %v4281 = vadd.f32 %v4280, %v4218
    %v4282 = vadd.f32 %v4281, %v4219
    %v4283 = vadd.f32 %v4282, %v4220
    %v4284 = vadd.f32 %v4283, %v4221
    %v4285 = vadd.f32 %v4284, %v4222
    %v4286 = vadd.f32 %v4285, %v4223
    %v4287 = vadd.f32 %v4286, %v4224
    %v4288 = vadd.f32 %v4287, %v4225
    %v4289 = vadd.f32 %v4288, %v4226
    %v4290 = vadd.f32 %v4289, %v4227
    %v4291 = vadd.f32 %v4290, %v4228
    %v4292 = vadd.f32 %v4291, %v4229
    %v4293 = vadd.f32 %v4292, %v4230
    %v4294 = vadd.f32 %v4293, %v4231
    %v4295 = vadd.f32 %v4294, %v4232
    %v4296 = vadd.f32 %v4295, %v4233
    %v4297 = vadd.f32 %v4296, %v4234
    %v4298 = vadd.f32 %v4297, %v4235
    %v4299 = vadd.f32 %v4298, %v4236
    %v4300 = vadd.f32 %v4299, %v4237
    %v4301 = vadd.f32 %v4300, %v4238
    %v4302 = vadd.f32 %v4301, %v4239
    %v4303 = vadd.f32 %v4302, %v4240
    %v4304 = vadd.f32 %v4303, %v4241
    %v4305 = vrot.slane %v4304, 4
    %v4306 = vadd.f32 %v4304, %v4305
    %v4307 = vrot.slane %v4306, 2
    %v4308 = vadd.f32 %v4306, %v4307
    %v4309 = vrot.slane %v4308, 1
    %v4310 = vadd.f32 %v4308, %v4309
    %v4311 = vmul.f32 %v4177, 0.001953125
    %v4312 = vmul.f32 %v4310, 0.001953125
    %v4313 = vmul.f32 %v4311, %v4311
    %v4314 = vsub.f32 %v4312, %v4313
    %v4315 = vsub.f32 %v3853, %v4311
    %v4316 = vsub.f32 %v3856, %v4311
    %v4317 = vsub.f32 %v3861, %v4311
    %v4318 = vsub.f32 %v3864, %v4311
    %v4319 = vsub.f32 %v3869, %v4311
    %v4320 = vsub.f32 %v3872, %v4311
    %v4321 = vsub.f32 %v3877, %v4311
    %v4322 = vsub.f32 %v3880, %v4311
    %v4323 = vsub.f32 %v3885, %v4311
    %v4324 = vsub.f32 %v3888, %v4311
    %v4325 = vsub.f32 %v3893, %v4311
    %v4326 = vsub.f32 %v3896, %v4311
    %v4327 = vsub.f32 %v3901, %v4311
    %v4328 = vsub.f32 %v3904, %v4311
    %v4329 = vsub.f32 %v3909, %v4311
    %v4330 = vsub.f32 %v3912, %v4311
    %v4331 = vsub.f32 %v3917, %v4311
    %v4332 = vsub.f32 %v3920, %v4311
    %v4333 = vsub.f32 %v3925, %v4311
    %v4334 = vsub.f32 %v3928, %v4311
    %v4335 = vsub.f32 %v3933, %v4311
    %v4336 = vsub.f32 %v3936, %v4311
    %v4337 = vsub.f32 %v3941, %v4311
    %v4338 = vsub.f32 %v3944, %v4311
    %v4339 = vsub.f32 %v3949, %v4311
    %v4340 = vsub.f32 %v3952, %v4311
    %v4341 = vsub.f32 %v3957, %v4311
    %v4342 = vsub.f32 %v3960, %v4311
    %v4343 = vsub.f32 %v3965, %v4311
    %v4344 = vsub.f32 %v3968, %v4311
    %v4345 = vsub.f32 %v3973, %v4311
    %v4346 = vsub.f32 %v3976, %v4311
    %v4347 = vsub.f32 %v3981, %v4311
    %v4348 = vsub.f32 %v3984, %v4311
    %v4349 = vsub.f32 %v3989, %v4311
    %v4350 = vsub.f32 %v3992, %v4311
    %v4351 = vsub.f32 %v3997, %v4311
    %v4352 = vsub.f32 %v4000, %v4311
    %v4353 = vsub.f32 %v4005, %v4311
    %v4354 = vsub.f32 %v4008, %v4311
    %v4355 = vsub.f32 %v4013, %v4311
    %v4356 = vsub.f32 %v4016, %v4311
    %v4357 = vsub.f32 %v4021, %v4311
    %v4358 = vsub.f32 %v4024, %v4311
    %v4359 = vsub.f32 %v4029, %v4311
    %v4360 = vsub.f32 %v4032, %v4311
    %v4361 = vsub.f32 %v4037, %v4311
    %v4362 = vsub.f32 %v4040, %v4311
    %v4363 = vsub.f32 %v4045, %v4311
    %v4364 = vsub.f32 %v4048, %v4311
    %v4365 = vsub.f32 %v4053, %v4311
    %v4366 = vsub.f32 %v4056, %v4311
    %v4367 = vsub.f32 %v4061, %v4311
    %v4368 = vsub.f32 %v4064, %v4311
    %v4369 = vsub.f32 %v4069, %v4311
    %v4370 = vsub.f32 %v4072, %v4311
    %v4371 = vsub.f32 %v4077, %v4311
    %v4372 = vsub.f32 %v4080, %v4311
    %v4373 = vsub.f32 %v4085, %v4311
    %v4374 = vsub.f32 %v4088, %v4311
    %v4375 = vsub.f32 %v4093, %v4311
    %v4376 = vsub.f32 %v4096, %v4311
    %v4377 = vsub.f32 %v4101, %v4311
    %v4378 = vsub.f32 %v4104, %v4311
    %v4379 = vadd.f32 %v4314, 1e-05
    %v4380 = vrsqrt.pop %v4379
    %v4381 = vmul.f32 %v4315, %v4380
    %v4382 = vmul.f32 %v4316, %v4380
    %v4383 = vmul.f32 %v4317, %v4380
    %v4384 = vmul.f32 %v4318, %v4380
    %v4385 = vmul.f32 %v4319, %v4380
    %v4386 = vmul.f32 %v4320, %v4380
    %v4387 = vmul.f32 %v4321, %v4380
    %v4388 = vmul.f32 %v4322, %v4380
    %v4389 = vmul.f32 %v4323, %v4380
    %v4390 = vmul.f32 %v4324, %v4380
    %v4391 = vmul.f32 %v4325, %v4380
    %v4392 = vmul.f32 %v4326, %v4380
    %v4393 = vmul.f32 %v4327, %v4380
    %v4394 = vmul.f32 %v4328, %v4380
    %v4395 = vmul.f32 %v4329, %v4380
    %v4396 = vmul.f32 %v4330, %v4380
    %v4397 = vmul.f32 %v4331, %v4380
    %v4398 = vmul.f32 %v4332, %v4380
    %v4399 = vmul.f32 %v4333, %v4380
    %v4400 = vmul.f32 %v4334, %v4380
    %v4401 = vmul.f32 %v4335, %v4380
    %v4402 = vmul.f32 %v4336, %v4380
    %v4403 = vmul.f32 %v4337, %v4380
    %v4404 = vmul.f32 %v4338, %v4380
    %v4405 = vmul.f32 %v4339, %v4380
    %v4406 = vmul.f32 %v4340, %v4380
    %v4407 = vmul.f32 %v4341, %v4380
    %v4408 = vmul.f32 %v4342, %v4380
    %v4409 = vmul.f32 %v4343, %v4380
    %v4410 = vmul.f32 %v4344, %v4380
    %v4411 = vmul.f32 %v4345, %v4380
    %v4412 = vmul.f32 %v4346, %v4380
    %v4413 = vmul.f32 %v4347, %v4380
    %v4414 = vmul.f32 %v4348, %v4380
    %v4415 = vmul.f32 %v4349, %v4380
    %v4416 = vmul.f32 %v4350, %v4380
    %v4417 = vmul.f32 %v4351, %v4380
    %v4418 = vmul.f32 %v4352, %v4380
    %v4419 = vmul.f32 %v4353, %v4380
    %v4420 = vmul.f32 %v4354, %v4380
    %v4421 = vmul.f32 %v4355, %v4380
    %v4422 = vmul.f32 %v4356, %v4380
    %v4423 = vmul.f32 %v4357, %v4380
    %v4424 = vmul.f32 %v4358, %v4380
    %v4425 = vmul.f32 %v4359, %v4380
    %v4426 = vmul.f32 %v4360, %v4380
    %v4427 = vmul.f32 %v4361, %v4380
    %v4428 = vmul.f32 %v4362, %v4380
    %v4429 = vmul.f32 %v4363, %v4380
    %v4430 = vmul.f32 %v4364, %v4380
    %v4431 = vmul.f32 %v4365, %v4380
    %v4432 = vmul.f32 %v4366, %v4380
    %v4433 = vmul.f32 %v4367, %v4380
    %v4434 = vmul.f32 %v4368, %v4380
    %v4435 = vmul.f32 %v4369, %v4380
    %v4436 = vmul.f32 %v4370, %v4380
    %v4437 = vmul.f32 %v4371, %v4380
    %v4438 = vmul.f32 %v4372, %v4380
    %v4439 = vmul.f32 %v4373, %v4380
    %v4440 = vmul.f32 %v4374, %v4380
    %v4441 = vmul.f32 %v4375, %v4380
    %v4442 = vmul.f32 %v4376, %v4380
    %v4443 = vmul.f32 %v4377, %v4380
    %v4444 = vmul.f32 %v4378, %v4380
    %v4446 = vlaneseq
    %v4447 = vshrl.u32 %v4446, 7
    %v4448 = vsub.s32 0, %v4447
    %v4449 = vrot.slane %v4107, %v4448
    %v4451 = vmul.f32 %v4381, %v4449
    %v4452 = vmul.f32 %v4382, %v4449
    %v4453 = vmul.f32 %v4383, %v4449
    %v4454 = vmul.f32 %v4384, %v4449
    %v4455 = vmul.f32 %v4385, %v4449
    %v4456 = vmul.f32 %v4386, %v4449
    %v4457 = vmul.f32 %v4387, %v4449
    %v4458 = vmul.f32 %v4388, %v4449
    %v4459 = vmul.f32 %v4389, %v4449
    %v4460 = vmul.f32 %v4390, %v4449
    %v4461 = vmul.f32 %v4391, %v4449
    %v4462 = vmul.f32 %v4392, %v4449
    %v4463 = vmul.f32 %v4393, %v4449
    %v4464 = vmul.f32 %v4394, %v4449
    %v4465 = vmul.f32 %v4395, %v4449
    %v4466 = vmul.f32 %v4396, %v4449
    %v4467 = vmul.f32 %v4397, %v4449
    %v4468 = vmul.f32 %v4398, %v4449
    %v4469 = vmul.f32 %v4399, %v4449
    %v4470 = vmul.f32 %v4400, %v4449
    %v4471 = vmul.f32 %v4401, %v4449
    %v4472 = vmul.f32 %v4402, %v4449
    %v4473 = vmul.f32 %v4403, %v4449
    %v4474 = vmul.f32 %v4404, %v4449
    %v4475 = vmul.f32 %v4405, %v4449
    %v4476 = vmul.f32 %v4406, %v4449
    %v4477 = vmul.f32 %v4407, %v4449
    %v4478 = vmul.f32 %v4408, %v4449
    %v4479 = vmul.f32 %v4409, %v4449
    %v4480 = vmul.f32 %v4410, %v4449
    %v4481 = vmul.f32 %v4411, %v4449
    %v4482 = vmul.f32 %v4412, %v4449
    %v4483 = vmul.f32 %v4413, %v4449
    %v4484 = vmul.f32 %v4414, %v4449
    %v4485 = vmul.f32 %v4415, %v4449
    %v4486 = vmul.f32 %v4416, %v4449
    %v4487 = vmul.f32 %v4417, %v4449
    %v4488 = vmul.f32 %v4418, %v4449
    %v4489 = vmul.f32 %v4419, %v4449
    %v4490 = vmul.f32 %v4420, %v4449
    %v4491 = vmul.f32 %v4421, %v4449
    %v4492 = vmul.f32 %v4422, %v4449
    %v4493 = vmul.f32 %v4423, %v4449
    %v4494 = vmul.f32 %v4424, %v4449
    %v4495 = vmul.f32 %v4425, %v4449
    %v4496 = vmul.f32 %v4426, %v4449
    %v4497 = vmul.f32 %v4427, %v4449
    %v4498 = vmul.f32 %v4428, %v4449
    %v4499 = vmul.f32 %v4429, %v4449
    %v4500 = vmul.f32 %v4430, %v4449
    %v4501 = vmul.f32 %v4431, %v4449
    %v4502 = vmul.f32 %v4432, %v4449
    %v4503 = vmul.f32 %v4433, %v4449
    %v4504 = vmul.f32 %v4434, %v4449
    %v4505 = vmul.f32 %v4435, %v4449
    %v4506 = vmul.f32 %v4436, %v4449
    %v4507 = vmul.f32 %v4437, %v4449
    %v4508 = vmul.f32 %v4438, %v4449
    %v4509 = vmul.f32 %v4439, %v4449
    %v4510 = vmul.f32 %v4440, %v4449
    %v4511 = vmul.f32 %v4441, %v4449
    %v4512 = vmul.f32 %v4442, %v4449
    %v4513 = vmul.f32 %v4443, %v4449
    %v4514 = vmul.f32 %v4444, %v4449
    %v4516 = vlaneseq
    %v4517 = vshrl.u32 %v4516, 7
    %v4518 = vsub.s32 0, %v4517
    %v4519 = vrot.slane %v4108, %v4518
    %v4521 = vadd.f32 %v4451, %v4519
    %v4522 = vadd.f32 %v4452, %v4519
    %v4523 = vadd.f32 %v4453, %v4519
    %v4524 = vadd.f32 %v4454, %v4519
    %v4525 = vadd.f32 %v4455, %v4519
    %v4526 = vadd.f32 %v4456, %v4519
    %v4527 = vadd.f32 %v4457, %v4519
    %v4528 = vadd.f32 %v4458, %v4519
    %v4529 = vadd.f32 %v4459, %v4519
    %v4530 = vadd.f32 %v4460, %v4519
    %v4531 = vadd.f32 %v4461, %v4519
    %v4532 = vadd.f32 %v4462, %v4519
    %v4533 = vadd.f32 %v4463, %v4519
    %v4534 = vadd.f32 %v4464, %v4519
    %v4535 = vadd.f32 %v4465, %v4519
    %v4536 = vadd.f32 %v4466, %v4519
    %v4537 = vadd.f32 %v4467, %v4519
    %v4538 = vadd.f32 %v4468, %v4519
    %v4539 = vadd.f32 %v4469, %v4519
    %v4540 = vadd.f32 %v4470, %v4519
    %v4541 = vadd.f32 %v4471, %v4519
    %v4542 = vadd.f32 %v4472, %v4519
    %v4543 = vadd.f32 %v4473, %v4519
    %v4544 = vadd.f32 %v4474, %v4519
    %v4545 = vadd.f32 %v4475, %v4519
    %v4546 = vadd.f32 %v4476, %v4519
    %v4547 = vadd.f32 %v4477, %v4519
    %v4548 = vadd.f32 %v4478, %v4519
    %v4549 = vadd.f32 %v4479, %v4519
    %v4550 = vadd.f32 %v4480, %v4519
    %v4551 = vadd.f32 %v4481, %v4519
    %v4552 = vadd.f32 %v4482, %v4519
    %v4553 = vadd.f32 %v4483, %v4519
    %v4554 = vadd.f32 %v4484, %v4519
    %v4555 = vadd.f32 %v4485, %v4519
    %v4556 = vadd.f32 %v4486, %v4519
    %v4557 = vadd.f32 %v4487, %v4519
    %v4558 = vadd.f32 %v4488, %v4519
    %v4559 = vadd.f32 %v4489, %v4519
    %v4560 = vadd.f32 %v4490, %v4519
    %v4561 = vadd.f32 %v4491, %v4519
    %v4562 = vadd.f32 %v4492, %v4519
    %v4563 = vadd.f32 %v4493, %v4519
    %v4564 = vadd.f32 %v4494, %v4519
    %v4565 = vadd.f32 %v4495, %v4519
    %v4566 = vadd.f32 %v4496, %v4519
    %v4567 = vadd.f32 %v4497, %v4519
    %v4568 = vadd.f32 %v4498, %v4519
    %v4569 = vadd.f32 %v4499, %v4519
    %v4570 = vadd.f32 %v4500, %v4519
    %v4571 = vadd.f32 %v4501, %v4519
    %v4572 = vadd.f32 %v4502, %v4519
    %v4573 = vadd.f32 %v4503, %v4519
    %v4574 = vadd.f32 %v4504, %v4519
    %v4575 = vadd.f32 %v4505, %v4519
    %v4576 = vadd.f32 %v4506, %v4519
    %v4577 = vadd.f32 %v4507, %v4519
    %v4578 = vadd.f32 %v4508, %v4519
    %v4579 = vadd.f32 %v4509, %v4519
    %v4580 = vadd.f32 %v4510, %v4519
    %v4581 = vadd.f32 %v4511, %v4519
    %v4582 = vadd.f32 %v4512, %v4519
    %v4583 = vadd.f32 %v4513, %v4519
    %v4584 = vadd.f32 %v4514, %v4519
    %v4585 = vmax.f32 %v4521, 0.0
    %v4586 = vmax.f32 %v4522, 0.0
    %v4587 = vmax.f32 %v4523, 0.0
    %v4588 = vmax.f32 %v4524, 0.0
    %v4589 = vmax.f32 %v4525, 0.0
    %v4590 = vmax.f32 %v4526, 0.0
    %v4591 = vmax.f32 %v4527, 0.0
    %v4592 = vmax.f32 %v4528, 0.0
    %v4593 = vmax.f32 %v4529, 0.0
    %v4594 = vmax.f32 %v4530, 0.0
    %v4595 = vmax.f32 %v4531, 0.0
    %v4596 = vmax.f32 %v4532, 0.0
    %v4597 = vmax.f32 %v4533, 0.0
    %v4598 = vmax.f32 %v4534, 0.0
    %v4599 = vmax.f32 %v4535, 0.0
    %v4600 = vmax.f32 %v4536, 0.0
    %v4601 = vmax.f32 %v4537, 0.0
    %v4602 = vmax.f32 %v4538, 0.0
    %v4603 = vmax.f32 %v4539, 0.0
    %v4604 = vmax.f32 %v4540, 0.0
    %v4605 = vmax.f32 %v4541, 0.0
    %v4606 = vmax.f32 %v4542, 0.0
    %v4607 = vmax.f32 %v4543, 0.0
    %v4608 = vmax.f32 %v4544, 0.0
    %v4609 = vmax.f32 %v4545, 0.0
    %v4610 = vmax.f32 %v4546, 0.0
    %v4611 = vmax.f32 %v4547, 0.0
    %v4612 = vmax.f32 %v4548, 0.0
    %v4613 = vmax.f32 %v4549, 0.0
    %v4614 = vmax.f32 %v4550, 0.0
    %v4615 = vmax.f32 %v4551, 0.0
    %v4616 = vmax.f32 %v4552, 0.0
    %v4617 = vmax.f32 %v4553, 0.0
    %v4618 = vmax.f32 %v4554, 0.0
    %v4619 = vmax.f32 %v4555, 0.0
    %v4620 = vmax.f32 %v4556, 0.0
    %v4621 = vmax.f32 %v4557, 0.0
    %v4622 = vmax.f32 %v4558, 0.0
    %v4623 = vmax.f32 %v4559, 0.0
    %v4624 = vmax.f32 %v4560, 0.0
    %v4625 = vmax.f32 %v4561, 0.0
    %v4626 = vmax.f32 %v4562, 0.0
    %v4627 = vmax.f32 %v4563, 0.0
    %v4628 = vmax.f32 %v4564, 0.0
    %v4629 = vmax.f32 %v4565, 0.0
    %v4630 = vmax.f32 %v4566, 0.0
    %v4631 = vmax.f32 %v4567, 0.0
    %v4632 = vmax.f32 %v4568, 0.0
    %v4633 = vmax.f32 %v4569, 0.0
    %v4634 = vmax.f32 %v4570, 0.0
    %v4635 = vmax.f32 %v4571, 0.0
    %v4636 = vmax.f32 %v4572, 0.0
    %v4637 = vmax.f32 %v4573, 0.0
    %v4638 = vmax.f32 %v4574, 0.0
    %v4639 = vmax.f32 %v4575, 0.0
    %v4640 = vmax.f32 %v4576, 0.0
    %v4641 = vmax.f32 %v4577, 0.0
    %v4642 = vmax.f32 %v4578, 0.0
    %v4643 = vmax.f32 %v4579, 0.0
    %v4644 = vmax.f32 %v4580, 0.0
    %v4645 = vmax.f32 %v4581, 0.0
    %v4646 = vmax.f32 %v4582, 0.0
    %v4647 = vmax.f32 %v4583, 0.0
    %v4648 = vmax.f32 %v4584, 0.0
    %v4649 = vpack.c.bf16 %v4586, %v4585
    %v4650 = vpack.c.bf16 %v4588, %v4587
    %v4651 = vpack.c.bf16 %v4590, %v4589
    %v4652 = vpack.c.bf16 %v4592, %v4591
    %v4653 = vpack.c.bf16 %v4594, %v4593
    %v4654 = vpack.c.bf16 %v4596, %v4595
    %v4655 = vpack.c.bf16 %v4598, %v4597
    %v4656 = vpack.c.bf16 %v4600, %v4599
    %v4657 = vpack.c.bf16 %v4602, %v4601
    %v4658 = vpack.c.bf16 %v4604, %v4603
    %v4659 = vpack.c.bf16 %v4606, %v4605
    %v4660 = vpack.c.bf16 %v4608, %v4607
    %v4661 = vpack.c.bf16 %v4610, %v4609
    %v4662 = vpack.c.bf16 %v4612, %v4611
    %v4663 = vpack.c.bf16 %v4614, %v4613
    %v4664 = vpack.c.bf16 %v4616, %v4615
    %v4665 = vpack.c.bf16 %v4618, %v4617
    %v4666 = vpack.c.bf16 %v4620, %v4619
    %v4667 = vpack.c.bf16 %v4622, %v4621
    %v4668 = vpack.c.bf16 %v4624, %v4623
    %v4669 = vpack.c.bf16 %v4626, %v4625
    %v4670 = vpack.c.bf16 %v4628, %v4627
    %v4671 = vpack.c.bf16 %v4630, %v4629
    %v4672 = vpack.c.bf16 %v4632, %v4631
    %v4673 = vpack.c.bf16 %v4634, %v4633
    %v4674 = vpack.c.bf16 %v4636, %v4635
    %v4675 = vpack.c.bf16 %v4638, %v4637
    %v4676 = vpack.c.bf16 %v4640, %v4639
    %v4677 = vpack.c.bf16 %v4642, %v4641
    %v4678 = vpack.c.bf16 %v4644, %v4643
    %v4679 = vpack.c.bf16 %v4646, %v4645
    %v4680 = vpack.c.bf16 %v4648, %v4647
    %v4681 = vld [vmem:[#allocation9] sm:$0xf]
    %v4682 = vld [vmem:[#allocation9 + $0x4] sm:$0xf]
    %v4683 = vld [vmem:[#allocation9 + $0x8] sm:$0xf]
    %v4684 = vld [vmem:[#allocation9 + $0xc] sm:$0xf]
    %v4685 = vld [vmem:[#allocation9 + $0x10] sm:$0xf]
    %v4686 = vld [vmem:[#allocation9 + $0x14] sm:$0xf]
    %v4687 = vld [vmem:[#allocation9 + $0x18] sm:$0xf]
    %v4688 = vld [vmem:[#allocation9 + $0x1c] sm:$0xf]
    %v4689 = vld [vmem:[#allocation9 + $0x20] sm:$0xf]
    %v4690 = vld [vmem:[#allocation9 + $0x24] sm:$0xf]
    %v4691 = vld [vmem:[#allocation9 + $0x28] sm:$0xf]
    %v4692 = vld [vmem:[#allocation9 + $0x2c] sm:$0xf]
    %v4693 = vld [vmem:[#allocation9 + $0x30] sm:$0xf]
    %v4694 = vld [vmem:[#allocation9 + $0x34] sm:$0xf]
    %v4695 = vld [vmem:[#allocation9 + $0x38] sm:$0xf]
    %v4696 = vld [vmem:[#allocation9 + $0x3c] sm:$0xf]
    %v4697 = vld [vmem:[%s10] sm:$0x1]
    %v4699 = vlaneseq
    %v4700 = vshrl.u32 %v4699, 7
    %v4701 = vsub.s32 0, %v4700
    %v4702 = vrot.slane %v4697, %v4701
    %v4720 = vunpack.c.l.b16 %v4681
    %v4721 = vunpack.c.l.b16 %v4682
    %v4722 = vunpack.c.l.b16 %v4683
    %v4723 = vunpack.c.l.b16 %v4684
    %v4724 = vunpack.c.l.b16 %v4685
    %v4725 = vunpack.c.l.b16 %v4686
    %v4726 = vunpack.c.l.b16 %v4687
    %v4727 = vunpack.c.l.b16 %v4688
    %v4728 = vunpack.c.l.b16 %v4689
    %v4729 = vunpack.c.l.b16 %v4690
    %v4730 = vunpack.c.l.b16 %v4691
    %v4731 = vunpack.c.l.b16 %v4692
    %v4732 = vunpack.c.l.b16 %v4693
    %v4733 = vunpack.c.l.b16 %v4694
    %v4734 = vunpack.c.l.b16 %v4695
    %v4735 = vunpack.c.l.b16 %v4696
    %v4736 = vpack.c.b16 %v4721, %v4720
    %v4737 = vpack.c.b16 %v4723, %v4722
    %v4738 = vpack.c.b16 %v4725, %v4724
    %v4739 = vpack.c.b16 %v4727, %v4726
    %v4740 = vpack.c.b16 %v4729, %v4728
    %v4741 = vpack.c.b16 %v4731, %v4730
    %v4742 = vpack.c.b16 %v4733, %v4732
    %v4743 = vpack.c.b16 %v4735, %v4734
    %4752 = vmatprep.subr.bf16.mxu0 0
    %4753 = vmatpush1.bf16.msra.mxu0 %v4743
    %4754 = vmatprep.subr.bf16.mxu0 0
    %4755 = vmatpush1.bf16.msra.mxu0 %v4742
    %4756 = vmatprep.subr.bf16.mxu0 0
    %4757 = vmatpush1.bf16.msra.mxu0 %v4741
    %4758 = vmatprep.subr.bf16.mxu0 0
    %4759 = vmatpush1.bf16.msra.mxu0 %v4740
    %4760 = vmatprep.subr.bf16.mxu0 0
    %4761 = vmatpush1.bf16.msra.mxu0 %v4739
    %4762 = vmatprep.subr.bf16.mxu0 0
    %4763 = vmatpush1.bf16.msra.mxu0 %v4738
    %4764 = vmatprep.subr.bf16.mxu0 0
    %4765 = vmatpush1.bf16.msra.mxu0 %v4737
    %4766 = vmatprep.subr.bf16.mxu0 0
    %4767 = vmatpush1.bf16.msra.mxu0 %v4736
    %4768 = vmatprep.subr.bf16.mxu0 0
    %4769 = vmatpush2.bf16.msra.mxu0 0
    %4770 = vmatprep.subr.bf16.mxu0 0
    %4771 = vmatpush2.bf16.msra.mxu0 0
    %4772 = vmatprep.subr.bf16.mxu0 0
    %4773 = vmatpush2.bf16.msra.mxu0 0
    %4774 = vmatprep.subr.bf16.mxu0 0
    %4775 = vmatpush2.bf16.msra.mxu0 0
    %4776 = vmatprep.subr.bf16.mxu0 0
    %4777 = vmatpush2.bf16.msra.mxu0 0
    %4778 = vmatprep.subr.bf16.mxu0 0
    %4779 = vmatpush2.bf16.msra.mxu0 0
    %4780 = vmatprep.subr.bf16.mxu0 0
    %4781 = vmatpush2.bf16.msra.mxu0 0
    %4782 = vmatprep.subr.bf16.mxu0 0
    %4783 = vmatpush2.bf16.msra.mxu0 0
    %4784 = vmatprep.mubr.bf16.mxu0 0
    %4785 = vmatmul.mubr.bf16.gmra.mxu0 %v4649
    %v4786 = vpop.f32.mrf.mxu0
    %v4787 = vadd.f32 %v4702, %v4786
    %v4788 = vpop.f32.mrf.mxu0
    %v4789 = vpop.f32.mrf.mxu0
    %v4790 = vadd.f32 %v4702, %v4789
    %v4791 = vpop.f32.mrf.mxu0
    %4792 = vmatprep.mubr.bf16.mxu0 0
    %4793 = vmatmul.mubr.bf16.gmra.mxu0 %v4650
    %v4794 = vpop.f32.mrf.mxu0
    %v4795 = vadd.f32 %v4702, %v4794
    %v4796 = vpop.f32.mrf.mxu0
    %v4797 = vpop.f32.mrf.mxu0
    %v4798 = vadd.f32 %v4702, %v4797
    %v4799 = vpop.f32.mrf.mxu0
    %4800 = vmatprep.mubr.bf16.mxu0 0
    %4801 = vmatmul.mubr.bf16.gmra.mxu0 %v4651
    %v4802 = vpop.f32.mrf.mxu0
    %v4803 = vadd.f32 %v4702, %v4802
    %v4804 = vpop.f32.mrf.mxu0
    %v4805 = vpop.f32.mrf.mxu0
    %v4806 = vadd.f32 %v4702, %v4805
    %v4807 = vpop.f32.mrf.mxu0
    %4808 = vmatprep.mubr.bf16.mxu0 0
    %4809 = vmatmul.mubr.bf16.gmra.mxu0 %v4652
    %v4810 = vpop.f32.mrf.mxu0
    %v4811 = vadd.f32 %v4702, %v4810
    %v4812 = vpop.f32.mrf.mxu0
    %v4813 = vpop.f32.mrf.mxu0
    %v4814 = vadd.f32 %v4702, %v4813
    %v4815 = vpop.f32.mrf.mxu0
    %4816 = vmatprep.mubr.bf16.mxu0 0
    %4817 = vmatmul.mubr.bf16.gmra.mxu0 %v4653
    %v4818 = vpop.f32.mrf.mxu0
    %v4819 = vadd.f32 %v4702, %v4818
    %v4820 = vpop.f32.mrf.mxu0
    %v4821 = vpop.f32.mrf.mxu0
    %v4822 = vadd.f32 %v4702, %v4821
    %v4823 = vpop.f32.mrf.mxu0
    %4824 = vmatprep.mubr.bf16.mxu0 0
    %4825 = vmatmul.mubr.bf16.gmra.mxu0 %v4654
    %v4826 = vpop.f32.mrf.mxu0
    %v4827 = vadd.f32 %v4702, %v4826
    %v4828 = vpop.f32.mrf.mxu0
    %v4829 = vpop.f32.mrf.mxu0
    %v4830 = vadd.f32 %v4702, %v4829
    %v4831 = vpop.f32.mrf.mxu0
    %4832 = vmatprep.mubr.bf16.mxu0 0
    %4833 = vmatmul.mubr.bf16.gmra.mxu0 %v4655
    %v4834 = vpop.f32.mrf.mxu0
    %v4835 = vadd.f32 %v4702, %v4834
    %v4836 = vpop.f32.mrf.mxu0
    %v4837 = vpop.f32.mrf.mxu0
    %v4838 = vadd.f32 %v4702, %v4837
    %v4839 = vpop.f32.mrf.mxu0
    %4840 = vmatprep.mubr.bf16.mxu0 0
    %4841 = vmatmul.mubr.bf16.gmra.mxu0 %v4656
    %v4842 = vpop.f32.mrf.mxu0
    %v4843 = vadd.f32 %v4702, %v4842
    %v4844 = vpop.f32.mrf.mxu0
    %v4845 = vpop.f32.mrf.mxu0
    %v4846 = vadd.f32 %v4702, %v4845
    %v4847 = vpop.f32.mrf.mxu0
    %4848 = vmatprep.mubr.bf16.mxu0 0
    %4849 = vmatmul.mubr.bf16.gmra.mxu0 %v4657
    %v4850 = vpop.f32.mrf.mxu0
    %v4851 = vadd.f32 %v4702, %v4850
    %v4852 = vpop.f32.mrf.mxu0
    %v4853 = vpop.f32.mrf.mxu0
    %v4854 = vadd.f32 %v4702, %v4853
    %v4855 = vpop.f32.mrf.mxu0
    %4856 = vmatprep.mubr.bf16.mxu0 0
    %4857 = vmatmul.mubr.bf16.gmra.mxu0 %v4658
    %v4858 = vpop.f32.mrf.mxu0
    %v4859 = vadd.f32 %v4702, %v4858
    %v4860 = vpop.f32.mrf.mxu0
    %v4861 = vpop.f32.mrf.mxu0
    %v4862 = vadd.f32 %v4702, %v4861
    %v4863 = vpop.f32.mrf.mxu0
    %4864 = vmatprep.mubr.bf16.mxu0 0
    %4865 = vmatmul.mubr.bf16.gmra.mxu0 %v4659
    %v4866 = vpop.f32.mrf.mxu0
    %v4867 = vadd.f32 %v4702, %v4866
    %v4868 = vpop.f32.mrf.mxu0
    %v4869 = vpop.f32.mrf.mxu0
    %v4870 = vadd.f32 %v4702, %v4869
    %v4871 = vpop.f32.mrf.mxu0
    %4872 = vmatprep.mubr.bf16.mxu0 0
    %4873 = vmatmul.mubr.bf16.gmra.mxu0 %v4660
    %v4874 = vpop.f32.mrf.mxu0
    %v4875 = vadd.f32 %v4702, %v4874
    %v4876 = vpop.f32.mrf.mxu0
    %v4877 = vpop.f32.mrf.mxu0
    %v4878 = vadd.f32 %v4702, %v4877
    %v4879 = vpop.f32.mrf.mxu0
    %4880 = vmatprep.mubr.bf16.mxu0 0
    %4881 = vmatmul.mubr.bf16.gmra.mxu0 %v4661
    %v4882 = vpop.f32.mrf.mxu0
    %v4883 = vadd.f32 %v4702, %v4882
    %v4884 = vpop.f32.mrf.mxu0
    %v4885 = vpop.f32.mrf.mxu0
    %v4886 = vadd.f32 %v4702, %v4885
    %v4887 = vpop.f32.mrf.mxu0
    %4888 = vmatprep.mubr.bf16.mxu0 0
    %4889 = vmatmul.mubr.bf16.gmra.mxu0 %v4662
    %v4890 = vpop.f32.mrf.mxu0
    %v4891 = vadd.f32 %v4702, %v4890
    %v4892 = vpop.f32.mrf.mxu0
    %v4893 = vpop.f32.mrf.mxu0
    %v4894 = vadd.f32 %v4702, %v4893
    %v4895 = vpop.f32.mrf.mxu0
    %4896 = vmatprep.mubr.bf16.mxu0 0
    %4897 = vmatmul.mubr.bf16.gmra.mxu0 %v4663
    %v4898 = vpop.f32.mrf.mxu0
    %v4899 = vadd.f32 %v4702, %v4898
    %v4900 = vpop.f32.mrf.mxu0
    %v4901 = vpop.f32.mrf.mxu0
    %v4902 = vadd.f32 %v4702, %v4901
    %v4903 = vpop.f32.mrf.mxu0
    %4904 = vmatprep.mubr.bf16.mxu0 0
    %4905 = vmatmul.mubr.bf16.gmra.mxu0 %v4664
    %v4906 = vpop.f32.mrf.mxu0
    %v4907 = vadd.f32 %v4702, %v4906
    %v4908 = vpop.f32.mrf.mxu0
    %v4909 = vpop.f32.mrf.mxu0
    %v4910 = vadd.f32 %v4702, %v4909
    %v4911 = vpop.f32.mrf.mxu0
    %4912 = vmatprep.mubr.bf16.mxu0 0
    %4913 = vmatmul.mubr.bf16.gmra.mxu0 %v4665
    %v4914 = vpop.f32.mrf.mxu0
    %v4915 = vadd.f32 %v4702, %v4914
    %v4916 = vpop.f32.mrf.mxu0
    %v4917 = vpop.f32.mrf.mxu0
    %v4918 = vadd.f32 %v4702, %v4917
    %v4919 = vpop.f32.mrf.mxu0
    %4920 = vmatprep.mubr.bf16.mxu0 0
    %4921 = vmatmul.mubr.bf16.gmra.mxu0 %v4666
    %v4922 = vpop.f32.mrf.mxu0
    %v4923 = vadd.f32 %v4702, %v4922
    %v4924 = vpop.f32.mrf.mxu0
    %v4925 = vpop.f32.mrf.mxu0
    %v4926 = vadd.f32 %v4702, %v4925
    %v4927 = vpop.f32.mrf.mxu0
    %4928 = vmatprep.mubr.bf16.mxu0 0
    %4929 = vmatmul.mubr.bf16.gmra.mxu0 %v4667
    %v4930 = vpop.f32.mrf.mxu0
    %v4931 = vadd.f32 %v4702, %v4930
    %v4932 = vpop.f32.mrf.mxu0
    %v4933 = vpop.f32.mrf.mxu0
    %v4934 = vadd.f32 %v4702, %v4933
    %v4935 = vpop.f32.mrf.mxu0
    %4936 = vmatprep.mubr.bf16.mxu0 0
    %4937 = vmatmul.mubr.bf16.gmra.mxu0 %v4668
    %v4938 = vpop.f32.mrf.mxu0
    %v4939 = vadd.f32 %v4702, %v4938
    %v4940 = vpop.f32.mrf.mxu0
    %v4941 = vpop.f32.mrf.mxu0
    %v4942 = vadd.f32 %v4702, %v4941
    %v4943 = vpop.f32.mrf.mxu0
    %4944 = vmatprep.mubr.bf16.mxu0 0
    %4945 = vmatmul.mubr.bf16.gmra.mxu0 %v4669
    %v4946 = vpop.f32.mrf.mxu0
    %v4947 = vadd.f32 %v4702, %v4946
    %v4948 = vpop.f32.mrf.mxu0
    %v4949 = vpop.f32.mrf.mxu0
    %v4950 = vadd.f32 %v4702, %v4949
    %v4951 = vpop.f32.mrf.mxu0
    %4952 = vmatprep.mubr.bf16.mxu0 0
    %4953 = vmatmul.mubr.bf16.gmra.mxu0 %v4670
    %v4954 = vpop.f32.mrf.mxu0
    %v4955 = vadd.f32 %v4702, %v4954
    %v4956 = vpop.f32.mrf.mxu0
    %v4957 = vpop.f32.mrf.mxu0
    %v4958 = vadd.f32 %v4702, %v4957
    %v4959 = vpop.f32.mrf.mxu0
    %4960 = vmatprep.mubr.bf16.mxu0 0
    %4961 = vmatmul.mubr.bf16.gmra.mxu0 %v4671
    %v4962 = vpop.f32.mrf.mxu0
    %v4963 = vadd.f32 %v4702, %v4962
    %v4964 = vpop.f32.mrf.mxu0
    %v4965 = vpop.f32.mrf.mxu0
    %v4966 = vadd.f32 %v4702, %v4965
    %v4967 = vpop.f32.mrf.mxu0
    %4968 = vmatprep.mubr.bf16.mxu0 0
    %4969 = vmatmul.mubr.bf16.gmra.mxu0 %v4672
    %v4970 = vpop.f32.mrf.mxu0
    %v4971 = vadd.f32 %v4702, %v4970
    %v4972 = vpop.f32.mrf.mxu0
    %v4973 = vpop.f32.mrf.mxu0
    %v4974 = vadd.f32 %v4702, %v4973
    %v4975 = vpop.f32.mrf.mxu0
    %4976 = vmatprep.mubr.bf16.mxu0 0
    %4977 = vmatmul.mubr.bf16.gmra.mxu0 %v4673
    %v4978 = vpop.f32.mrf.mxu0
    %v4979 = vadd.f32 %v4702, %v4978
    %v4980 = vpop.f32.mrf.mxu0
    %v4981 = vpop.f32.mrf.mxu0
    %v4982 = vadd.f32 %v4702, %v4981
    %v4983 = vpop.f32.mrf.mxu0
    %4984 = vmatprep.mubr.bf16.mxu0 0
    %4985 = vmatmul.mubr.bf16.gmra.mxu0 %v4674
    %v4986 = vpop.f32.mrf.mxu0
    %v4987 = vadd.f32 %v4702, %v4986
    %v4988 = vpop.f32.mrf.mxu0
    %v4989 = vpop.f32.mrf.mxu0
    %v4990 = vadd.f32 %v4702, %v4989
    %v4991 = vpop.f32.mrf.mxu0
    %4992 = vmatprep.mubr.bf16.mxu0 0
    %4993 = vmatmul.mubr.bf16.gmra.mxu0 %v4675
    %v4994 = vpop.f32.mrf.mxu0
    %v4995 = vadd.f32 %v4702, %v4994
    %v4996 = vpop.f32.mrf.mxu0
    %v4997 = vpop.f32.mrf.mxu0
    %v4998 = vadd.f32 %v4702, %v4997
    %v4999 = vpop.f32.mrf.mxu0
    %5000 = vmatprep.mubr.bf16.mxu0 0
    %5001 = vmatmul.mubr.bf16.gmra.mxu0 %v4676
    %v5002 = vpop.f32.mrf.mxu0
    %v5003 = vadd.f32 %v4702, %v5002
    %v5004 = vpop.f32.mrf.mxu0
    %v5005 = vpop.f32.mrf.mxu0
    %v5006 = vadd.f32 %v4702, %v5005
    %v5007 = vpop.f32.mrf.mxu0
    %5008 = vmatprep.mubr.bf16.mxu0 0
    %5009 = vmatmul.mubr.bf16.gmra.mxu0 %v4677
    %v5010 = vpop.f32.mrf.mxu0
    %v5011 = vadd.f32 %v4702, %v5010
    %v5012 = vpop.f32.mrf.mxu0
    %v5013 = vpop.f32.mrf.mxu0
    %v5014 = vadd.f32 %v4702, %v5013
    %v5015 = vpop.f32.mrf.mxu0
    %5016 = vmatprep.mubr.bf16.mxu0 0
    %5017 = vmatmul.mubr.bf16.gmra.mxu0 %v4678
    %v5018 = vpop.f32.mrf.mxu0
    %v5019 = vadd.f32 %v4702, %v5018
    %v5020 = vpop.f32.mrf.mxu0
    %v5021 = vpop.f32.mrf.mxu0
    %v5022 = vadd.f32 %v4702, %v5021
    %v5023 = vpop.f32.mrf.mxu0
    %5024 = vmatprep.mubr.bf16.mxu0 0
    %5025 = vmatmul.mubr.bf16.gmra.mxu0 %v4679
    %v5026 = vpop.f32.mrf.mxu0
    %v5027 = vadd.f32 %v4702, %v5026
    %v5028 = vpop.f32.mrf.mxu0
    %v5029 = vpop.f32.mrf.mxu0
    %v5030 = vadd.f32 %v4702, %v5029
    %v5031 = vpop.f32.mrf.mxu0
    %5032 = vmatprep.mubr.bf16.mxu0 0
    %5033 = vmatmul.mubr.bf16.gmra.mxu0 %v4680
    %v5034 = vpop.f32.mrf.mxu0
    %v5035 = vadd.f32 %v4702, %v5034
    %v5036 = vpop.f32.mrf.mxu0
    %v5037 = vpop.f32.mrf.mxu0
    %v5038 = vadd.f32 %v4702, %v5037
    %v5039 = vpop.f32.mrf.mxu0
    %5040 = vdwg.mxu0
    %v5041 = vld [vmem:[%s11] sm:$0x1]
    %v5042 = vld [vmem:[%s12] sm:$0x1]
    %v5043 = vadd.f32 %v4787, %v4790
    %v5044 = vadd.f32 %v5043, %v4795
    %v5045 = vadd.f32 %v5044, %v4798
    %v5046 = vadd.f32 %v5045, %v4803
    %v5047 = vadd.f32 %v5046, %v4806
    %v5048 = vadd.f32 %v5047, %v4811
    %v5049 = vadd.f32 %v5048, %v4814
    %v5050 = vadd.f32 %v5049, %v4819
    %v5051 = vadd.f32 %v5050, %v4822
    %v5052 = vadd.f32 %v5051, %v4827
    %v5053 = vadd.f32 %v5052, %v4830
    %v5054 = vadd.f32 %v5053, %v4835
    %v5055 = vadd.f32 %v5054, %v4838
    %v5056 = vadd.f32 %v5055, %v4843
    %v5057 = vadd.f32 %v5056, %v4846
    %v5058 = vadd.f32 %v5057, %v4851
    %v5059 = vadd.f32 %v5058, %v4854
    %v5060 = vadd.f32 %v5059, %v4859
    %v5061 = vadd.f32 %v5060, %v4862
    %v5062 = vadd.f32 %v5061, %v4867
    %v5063 = vadd.f32 %v5062, %v4870
    %v5064 = vadd.f32 %v5063, %v4875
    %v5065 = vadd.f32 %v5064, %v4878
    %v5066 = vadd.f32 %v5065, %v4883
    %v5067 = vadd.f32 %v5066, %v4886
    %v5068 = vadd.f32 %v5067, %v4891
    %v5069 = vadd.f32 %v5068, %v4894
    %v5070 = vadd.f32 %v5069, %v4899
    %v5071 = vadd.f32 %v5070, %v4902
    %v5072 = vadd.f32 %v5071, %v4907
    %v5073 = vadd.f32 %v5072, %v4910
    %v5074 = vadd.f32 %v5073, %v4915
    %v5075 = vadd.f32 %v5074, %v4918
    %v5076 = vadd.f32 %v5075, %v4923
    %v5077 = vadd.f32 %v5076, %v4926
    %v5078 = vadd.f32 %v5077, %v4931
    %v5079 = vadd.f32 %v5078, %v4934
    %v5080 = vadd.f32 %v5079, %v4939
    %v5081 = vadd.f32 %v5080, %v4942
    %v5082 = vadd.f32 %v5081, %v4947
    %v5083 = vadd.f32 %v5082, %v4950
    %v5084 = vadd.f32 %v5083, %v4955
    %v5085 = vadd.f32 %v5084, %v4958
    %v5086 = vadd.f32 %v5085, %v4963
    %v5087 = vadd.f32 %v5086, %v4966
    %v5088 = vadd.f32 %v5087, %v4971
    %v5089 = vadd.f32 %v5088, %v4974
    %v5090 = vadd.f32 %v5089, %v4979
    %v5091 = vadd.f32 %v5090, %v4982
    %v5092 = vadd.f32 %v5091, %v4987
    %v5093 = vadd.f32 %v5092, %v4990
    %v5094 = vadd.f32 %v5093, %v4995
    %v5095 = vadd.f32 %v5094, %v4998
    %v5096 = vadd.f32 %v5095, %v5003
    %v5097 = vadd.f32 %v5096, %v5006
    %v5098 = vadd.f32 %v5097, %v5011
    %v5099 = vadd.f32 %v5098, %v5014
    %v5100 = vadd.f32 %v5099, %v5019
    %v5101 = vadd.f32 %v5100, %v5022
    %v5102 = vadd.f32 %v5101, %v5027
    %v5103 = vadd.f32 %v5102, %v5030
    %v5104 = vadd.f32 %v5103, %v5035
    %v5105 = vadd.f32 %v5104, %v5038
    %v5106 = vrot.slane %v5105, 4
    %v5107 = vadd.f32 %v5105, %v5106
    %v5108 = vrot.slane %v5107, 2
    %v5109 = vadd.f32 %v5107, %v5108
    %v5110 = vrot.slane %v5109, 1
    %v5111 = vadd.f32 %v5109, %v5110
    %v5112 = vmul.f32 %v4787, %v4787
    %v5113 = vmul.f32 %v4790, %v4790
    %v5114 = vmul.f32 %v4795, %v4795
    %v5115 = vmul.f32 %v4798, %v4798
    %v5116 = vmul.f32 %v4803, %v4803
    %v5117 = vmul.f32 %v4806, %v4806
    %v5118 = vmul.f32 %v4811, %v4811
    %v5119 = vmul.f32 %v4814, %v4814
    %v5120 = vmul.f32 %v4819, %v4819
    %v5121 = vmul.f32 %v4822, %v4822
    %v5122 = vmul.f32 %v4827, %v4827
    %v5123 = vmul.f32 %v4830, %v4830
    %v5124 = vmul.f32 %v4835, %v4835
    %v5125 = vmul.f32 %v4838, %v4838
    %v5126 = vmul.f32 %v4843, %v4843
    %v5127 = vmul.f32 %v4846, %v4846
    %v5128 = vmul.f32 %v4851, %v4851
    %v5129 = vmul.f32 %v4854, %v4854
    %v5130 = vmul.f32 %v4859, %v4859
    %v5131 = vmul.f32 %v4862, %v4862
    %v5132 = vmul.f32 %v4867, %v4867
    %v5133 = vmul.f32 %v4870, %v4870
    %v5134 = vmul.f32 %v4875, %v4875
    %v5135 = vmul.f32 %v4878, %v4878
    %v5136 = vmul.f32 %v4883, %v4883
    %v5137 = vmul.f32 %v4886, %v4886
    %v5138 = vmul.f32 %v4891, %v4891
    %v5139 = vmul.f32 %v4894, %v4894
    %v5140 = vmul.f32 %v4899, %v4899
    %v5141 = vmul.f32 %v4902, %v4902
    %v5142 = vmul.f32 %v4907, %v4907
    %v5143 = vmul.f32 %v4910, %v4910
    %v5144 = vmul.f32 %v4915, %v4915
    %v5145 = vmul.f32 %v4918, %v4918
    %v5146 = vmul.f32 %v4923, %v4923
    %v5147 = vmul.f32 %v4926, %v4926
    %v5148 = vmul.f32 %v4931, %v4931
    %v5149 = vmul.f32 %v4934, %v4934
    %v5150 = vmul.f32 %v4939, %v4939
    %v5151 = vmul.f32 %v4942, %v4942
    %v5152 = vmul.f32 %v4947, %v4947
    %v5153 = vmul.f32 %v4950, %v4950
    %v5154 = vmul.f32 %v4955, %v4955
    %v5155 = vmul.f32 %v4958, %v4958
    %v5156 = vmul.f32 %v4963, %v4963
    %v5157 = vmul.f32 %v4966, %v4966
    %v5158 = vmul.f32 %v4971, %v4971
    %v5159 = vmul.f32 %v4974, %v4974
    %v5160 = vmul.f32 %v4979, %v4979
    %v5161 = vmul.f32 %v4982, %v4982
    %v5162 = vmul.f32 %v4987, %v4987
    %v5163 = vmul.f32 %v4990, %v4990
    %v5164 = vmul.f32 %v4995, %v4995
    %v5165 = vmul.f32 %v4998, %v4998
    %v5166 = vmul.f32 %v5003, %v5003
    %v5167 = vmul.f32 %v5006, %v5006
    %v5168 = vmul.f32 %v5011, %v5011
    %v5169 = vmul.f32 %v5014, %v5014
    %v5170 = vmul.f32 %v5019, %v5019
    %v5171 = vmul.f32 %v5022, %v5022
    %v5172 = vmul.f32 %v5027, %v5027
    %v5173 = vmul.f32 %v5030, %v5030
    %v5174 = vmul.f32 %v5035, %v5035
    %v5175 = vmul.f32 %v5038, %v5038
    %v5176 = vadd.f32 %v5112, %v5113
    %v5177 = vadd.f32 %v5176, %v5114
    %v5178 = vadd.f32 %v5177, %v5115
    %v5179 = vadd.f32 %v5178, %v5116
    %v5180 = vadd.f32 %v5179, %v5117
    %v5181 = vadd.f32 %v5180, %v5118
    %v5182 = vadd.f32 %v5181, %v5119
    %v5183 = vadd.f32 %v5182, %v5120
    %v5184 = vadd.f32 %v5183, %v5121
    %v5185 = vadd.f32 %v5184, %v5122
    %v5186 = vadd.f32 %v5185, %v5123
    %v5187 = vadd.f32 %v5186, %v5124
    %v5188 = vadd.f32 %v5187, %v5125
    %v5189 = vadd.f32 %v5188, %v5126
    %v5190 = vadd.f32 %v5189, %v5127
    %v5191 = vadd.f32 %v5190, %v5128
    %v5192 = vadd.f32 %v5191, %v5129
    %v5193 = vadd.f32 %v5192, %v5130
    %v5194 = vadd.f32 %v5193, %v5131
    %v5195 = vadd.f32 %v5194, %v5132
    %v5196 = vadd.f32 %v5195, %v5133
    %v5197 = vadd.f32 %v5196, %v5134
    %v5198 = vadd.f32 %v5197, %v5135
    %v5199 = vadd.f32 %v5198, %v5136
    %v5200 = vadd.f32 %v5199, %v5137
    %v5201 = vadd.f32 %v5200, %v5138
    %v5202 = vadd.f32 %v5201, %v5139
    %v5203 = vadd.f32 %v5202, %v5140
    %v5204 = vadd.f32 %v5203, %v5141
    %v5205 = vadd.f32 %v5204, %v5142
    %v5206 = vadd.f32 %v5205, %v5143
    %v5207 = vadd.f32 %v5206, %v5144
    %v5208 = vadd.f32 %v5207, %v5145
    %v5209 = vadd.f32 %v5208, %v5146
    %v5210 = vadd.f32 %v5209, %v5147
    %v5211 = vadd.f32 %v5210, %v5148
    %v5212 = vadd.f32 %v5211, %v5149
    %v5213 = vadd.f32 %v5212, %v5150
    %v5214 = vadd.f32 %v5213, %v5151
    %v5215 = vadd.f32 %v5214, %v5152
    %v5216 = vadd.f32 %v5215, %v5153
    %v5217 = vadd.f32 %v5216, %v5154
    %v5218 = vadd.f32 %v5217, %v5155
    %v5219 = vadd.f32 %v5218, %v5156
    %v5220 = vadd.f32 %v5219, %v5157
    %v5221 = vadd.f32 %v5220, %v5158
    %v5222 = vadd.f32 %v5221, %v5159
    %v5223 = vadd.f32 %v5222, %v5160
    %v5224 = vadd.f32 %v5223, %v5161
    %v5225 = vadd.f32 %v5224, %v5162
    %v5226 = vadd.f32 %v5225, %v5163
    %v5227 = vadd.f32 %v5226, %v5164
    %v5228 = vadd.f32 %v5227, %v5165
    %v5229 = vadd.f32 %v5228, %v5166
    %v5230 = vadd.f32 %v5229, %v5167
    %v5231 = vadd.f32 %v5230, %v5168
    %v5232 = vadd.f32 %v5231, %v5169
    %v5233 = vadd.f32 %v5232, %v5170
    %v5234 = vadd.f32 %v5233, %v5171
    %v5235 = vadd.f32 %v5234, %v5172
    %v5236 = vadd.f32 %v5235, %v5173
    %v5237 = vadd.f32 %v5236, %v5174
    %v5238 = vadd.f32 %v5237, %v5175
    %v5239 = vrot.slane %v5238, 4
    %v5240 = vadd.f32 %v5238, %v5239
    %v5241 = vrot.slane %v5240, 2
    %v5242 = vadd.f32 %v5240, %v5241
    %v5243 = vrot.slane %v5242, 1
    %v5244 = vadd.f32 %v5242, %v5243
    %v5245 = vmul.f32 %v5111, 0.001953125
    %v5246 = vmul.f32 %v5244, 0.001953125
    %v5247 = vmul.f32 %v5245, %v5245
    %v5248 = vsub.f32 %v5246, %v5247
    %v5249 = vsub.f32 %v4787, %v5245
    %v5250 = vsub.f32 %v4790, %v5245
    %v5251 = vsub.f32 %v4795, %v5245
    %v5252 = vsub.f32 %v4798, %v5245
    %v5253 = vsub.f32 %v4803, %v5245
    %v5254 = vsub.f32 %v4806, %v5245
    %v5255 = vsub.f32 %v4811, %v5245
    %v5256 = vsub.f32 %v4814, %v5245
    %v5257 = vsub.f32 %v4819, %v5245
    %v5258 = vsub.f32 %v4822, %v5245
    %v5259 = vsub.f32 %v4827, %v5245
    %v5260 = vsub.f32 %v4830, %v5245
    %v5261 = vsub.f32 %v4835, %v5245
    %v5262 = vsub.f32 %v4838, %v5245
    %v5263 = vsub.f32 %v4843, %v5245
    %v5264 = vsub.f32 %v4846, %v5245
    %v5265 = vsub.f32 %v4851, %v5245
    %v5266 = vsub.f32 %v4854, %v5245
    %v5267 = vsub.f32 %v4859, %v5245
    %v5268 = vsub.f32 %v4862, %v5245
    %v5269 = vsub.f32 %v4867, %v5245
    %v5270 = vsub.f32 %v4870, %v5245
    %v5271 = vsub.f32 %v4875, %v5245
    %v5272 = vsub.f32 %v4878, %v5245
    %v5273 = vsub.f32 %v4883, %v5245
    %v5274 = vsub.f32 %v4886, %v5245
    %v5275 = vsub.f32 %v4891, %v5245
    %v5276 = vsub.f32 %v4894, %v5245
    %v5277 = vsub.f32 %v4899, %v5245
    %v5278 = vsub.f32 %v4902, %v5245
    %v5279 = vsub.f32 %v4907, %v5245
    %v5280 = vsub.f32 %v4910, %v5245
    %v5281 = vsub.f32 %v4915, %v5245
    %v5282 = vsub.f32 %v4918, %v5245
    %v5283 = vsub.f32 %v4923, %v5245
    %v5284 = vsub.f32 %v4926, %v5245
    %v5285 = vsub.f32 %v4931, %v5245
    %v5286 = vsub.f32 %v4934, %v5245
    %v5287 = vsub.f32 %v4939, %v5245
    %v5288 = vsub.f32 %v4942, %v5245
    %v5289 = vsub.f32 %v4947, %v5245
    %v5290 = vsub.f32 %v4950, %v5245
    %v5291 = vsub.f32 %v4955, %v5245
    %v5292 = vsub.f32 %v4958, %v5245
    %v5293 = vsub.f32 %v4963, %v5245
    %v5294 = vsub.f32 %v4966, %v5245
    %v5295 = vsub.f32 %v4971, %v5245
    %v5296 = vsub.f32 %v4974, %v5245
    %v5297 = vsub.f32 %v4979, %v5245
    %v5298 = vsub.f32 %v4982, %v5245
    %v5299 = vsub.f32 %v4987, %v5245
    %v5300 = vsub.f32 %v4990, %v5245
    %v5301 = vsub.f32 %v4995, %v5245
    %v5302 = vsub.f32 %v4998, %v5245
    %v5303 = vsub.f32 %v5003, %v5245
    %v5304 = vsub.f32 %v5006, %v5245
    %v5305 = vsub.f32 %v5011, %v5245
    %v5306 = vsub.f32 %v5014, %v5245
    %v5307 = vsub.f32 %v5019, %v5245
    %v5308 = vsub.f32 %v5022, %v5245
    %v5309 = vsub.f32 %v5027, %v5245
    %v5310 = vsub.f32 %v5030, %v5245
    %v5311 = vsub.f32 %v5035, %v5245
    %v5312 = vsub.f32 %v5038, %v5245
    %v5313 = vadd.f32 %v5248, 1e-05
    %v5314 = vrsqrt.pop %v5313
    %v5315 = vmul.f32 %v5249, %v5314
    %v5316 = vmul.f32 %v5250, %v5314
    %v5317 = vmul.f32 %v5251, %v5314
    %v5318 = vmul.f32 %v5252, %v5314
    %v5319 = vmul.f32 %v5253, %v5314
    %v5320 = vmul.f32 %v5254, %v5314
    %v5321 = vmul.f32 %v5255, %v5314
    %v5322 = vmul.f32 %v5256, %v5314
    %v5323 = vmul.f32 %v5257, %v5314
    %v5324 = vmul.f32 %v5258, %v5314
    %v5325 = vmul.f32 %v5259, %v5314
    %v5326 = vmul.f32 %v5260, %v5314
    %v5327 = vmul.f32 %v5261, %v5314
    %v5328 = vmul.f32 %v5262, %v5314
    %v5329 = vmul.f32 %v5263, %v5314
    %v5330 = vmul.f32 %v5264, %v5314
    %v5331 = vmul.f32 %v5265, %v5314
    %v5332 = vmul.f32 %v5266, %v5314
    %v5333 = vmul.f32 %v5267, %v5314
    %v5334 = vmul.f32 %v5268, %v5314
    %v5335 = vmul.f32 %v5269, %v5314
    %v5336 = vmul.f32 %v5270, %v5314
    %v5337 = vmul.f32 %v5271, %v5314
    %v5338 = vmul.f32 %v5272, %v5314
    %v5339 = vmul.f32 %v5273, %v5314
    %v5340 = vmul.f32 %v5274, %v5314
    %v5341 = vmul.f32 %v5275, %v5314
    %v5342 = vmul.f32 %v5276, %v5314
    %v5343 = vmul.f32 %v5277, %v5314
    %v5344 = vmul.f32 %v5278, %v5314
    %v5345 = vmul.f32 %v5279, %v5314
    %v5346 = vmul.f32 %v5280, %v5314
    %v5347 = vmul.f32 %v5281, %v5314
    %v5348 = vmul.f32 %v5282, %v5314
    %v5349 = vmul.f32 %v5283, %v5314
    %v5350 = vmul.f32 %v5284, %v5314
    %v5351 = vmul.f32 %v5285, %v5314
    %v5352 = vmul.f32 %v5286, %v5314
    %v5353 = vmul.f32 %v5287, %v5314
    %v5354 = vmul.f32 %v5288, %v5314
    %v5355 = vmul.f32 %v5289, %v5314
    %v5356 = vmul.f32 %v5290, %v5314
    %v5357 = vmul.f32 %v5291, %v5314
    %v5358 = vmul.f32 %v5292, %v5314
    %v5359 = vmul.f32 %v5293, %v5314
    %v5360 = vmul.f32 %v5294, %v5314
    %v5361 = vmul.f32 %v5295, %v5314
    %v5362 = vmul.f32 %v5296, %v5314
    %v5363 = vmul.f32 %v5297, %v5314
    %v5364 = vmul.f32 %v5298, %v5314
    %v5365 = vmul.f32 %v5299, %v5314
    %v5366 = vmul.f32 %v5300, %v5314
    %v5367 = vmul.f32 %v5301, %v5314
    %v5368 = vmul.f32 %v5302, %v5314
    %v5369 = vmul.f32 %v5303, %v5314
    %v5370 = vmul.f32 %v5304, %v5314
    %v5371 = vmul.f32 %v5305, %v5314
    %v5372 = vmul.f32 %v5306, %v5314
    %v5373 = vmul.f32 %v5307, %v5314
    %v5374 = vmul.f32 %v5308, %v5314
    %v5375 = vmul.f32 %v5309, %v5314
    %v5376 = vmul.f32 %v5310, %v5314
    %v5377 = vmul.f32 %v5311, %v5314
    %v5378 = vmul.f32 %v5312, %v5314
    %v5380 = vlaneseq
    %v5381 = vshrl.u32 %v5380, 7
    %v5382 = vsub.s32 0, %v5381
    %v5383 = vrot.slane %v5041, %v5382
    %v5385 = vmul.f32 %v5315, %v5383
    %v5386 = vmul.f32 %v5316, %v5383
    %v5387 = vmul.f32 %v5317, %v5383
    %v5388 = vmul.f32 %v5318, %v5383
    %v5389 = vmul.f32 %v5319, %v5383
    %v5390 = vmul.f32 %v5320, %v5383
    %v5391 = vmul.f32 %v5321, %v5383
    %v5392 = vmul.f32 %v5322, %v5383
    %v5393 = vmul.f32 %v5323, %v5383
    %v5394 = vmul.f32 %v5324, %v5383
    %v5395 = vmul.f32 %v5325, %v5383
    %v5396 = vmul.f32 %v5326, %v5383
    %v5397 = vmul.f32 %v5327, %v5383
    %v5398 = vmul.f32 %v5328, %v5383
    %v5399 = vmul.f32 %v5329, %v5383
    %v5400 = vmul.f32 %v5330, %v5383
    %v5401 = vmul.f32 %v5331, %v5383
    %v5402 = vmul.f32 %v5332, %v5383
    %v5403 = vmul.f32 %v5333, %v5383
    %v5404 = vmul.f32 %v5334, %v5383
    %v5405 = vmul.f32 %v5335, %v5383
    %v5406 = vmul.f32 %v5336, %v5383
    %v5407 = vmul.f32 %v5337, %v5383
    %v5408 = vmul.f32 %v5338, %v5383
    %v5409 = vmul.f32 %v5339, %v5383
    %v5410 = vmul.f32 %v5340, %v5383
    %v5411 = vmul.f32 %v5341, %v5383
    %v5412 = vmul.f32 %v5342, %v5383
    %v5413 = vmul.f32 %v5343, %v5383
    %v5414 = vmul.f32 %v5344, %v5383
    %v5415 = vmul.f32 %v5345, %v5383
    %v5416 = vmul.f32 %v5346, %v5383
    %v5417 = vmul.f32 %v5347, %v5383
    %v5418 = vmul.f32 %v5348, %v5383
    %v5419 = vmul.f32 %v5349, %v5383
    %v5420 = vmul.f32 %v5350, %v5383
    %v5421 = vmul.f32 %v5351, %v5383
    %v5422 = vmul.f32 %v5352, %v5383
    %v5423 = vmul.f32 %v5353, %v5383
    %v5424 = vmul.f32 %v5354, %v5383
    %v5425 = vmul.f32 %v5355, %v5383
    %v5426 = vmul.f32 %v5356, %v5383
    %v5427 = vmul.f32 %v5357, %v5383
    %v5428 = vmul.f32 %v5358, %v5383
    %v5429 = vmul.f32 %v5359, %v5383
    %v5430 = vmul.f32 %v5360, %v5383
    %v5431 = vmul.f32 %v5361, %v5383
    %v5432 = vmul.f32 %v5362, %v5383
    %v5433 = vmul.f32 %v5363, %v5383
    %v5434 = vmul.f32 %v5364, %v5383
    %v5435 = vmul.f32 %v5365, %v5383
    %v5436 = vmul.f32 %v5366, %v5383
    %v5437 = vmul.f32 %v5367, %v5383
    %v5438 = vmul.f32 %v5368, %v5383
    %v5439 = vmul.f32 %v5369, %v5383
    %v5440 = vmul.f32 %v5370, %v5383
    %v5441 = vmul.f32 %v5371, %v5383
    %v5442 = vmul.f32 %v5372, %v5383
    %v5443 = vmul.f32 %v5373, %v5383
    %v5444 = vmul.f32 %v5374, %v5383
    %v5445 = vmul.f32 %v5375, %v5383
    %v5446 = vmul.f32 %v5376, %v5383
    %v5447 = vmul.f32 %v5377, %v5383
    %v5448 = vmul.f32 %v5378, %v5383
    %v5450 = vlaneseq
    %v5451 = vshrl.u32 %v5450, 7
    %v5452 = vsub.s32 0, %v5451
    %v5453 = vrot.slane %v5042, %v5452
    %v5455 = vadd.f32 %v5385, %v5453
    %v5456 = vadd.f32 %v5386, %v5453
    %v5457 = vadd.f32 %v5387, %v5453
    %v5458 = vadd.f32 %v5388, %v5453
    %v5459 = vadd.f32 %v5389, %v5453
    %v5460 = vadd.f32 %v5390, %v5453
    %v5461 = vadd.f32 %v5391, %v5453
    %v5462 = vadd.f32 %v5392, %v5453
    %v5463 = vadd.f32 %v5393, %v5453
    %v5464 = vadd.f32 %v5394, %v5453
    %v5465 = vadd.f32 %v5395, %v5453
    %v5466 = vadd.f32 %v5396, %v5453
    %v5467 = vadd.f32 %v5397, %v5453
    %v5468 = vadd.f32 %v5398, %v5453
    %v5469 = vadd.f32 %v5399, %v5453
    %v5470 = vadd.f32 %v5400, %v5453
    %v5471 = vadd.f32 %v5401, %v5453
    %v5472 = vadd.f32 %v5402, %v5453
    %v5473 = vadd.f32 %v5403, %v5453
    %v5474 = vadd.f32 %v5404, %v5453
    %v5475 = vadd.f32 %v5405, %v5453
    %v5476 = vadd.f32 %v5406, %v5453
    %v5477 = vadd.f32 %v5407, %v5453
    %v5478 = vadd.f32 %v5408, %v5453
    %v5479 = vadd.f32 %v5409, %v5453
    %v5480 = vadd.f32 %v5410, %v5453
    %v5481 = vadd.f32 %v5411, %v5453
    %v5482 = vadd.f32 %v5412, %v5453
    %v5483 = vadd.f32 %v5413, %v5453
    %v5484 = vadd.f32 %v5414, %v5453
    %v5485 = vadd.f32 %v5415, %v5453
    %v5486 = vadd.f32 %v5416, %v5453
    %v5487 = vadd.f32 %v5417, %v5453
    %v5488 = vadd.f32 %v5418, %v5453
    %v5489 = vadd.f32 %v5419, %v5453
    %v5490 = vadd.f32 %v5420, %v5453
    %v5491 = vadd.f32 %v5421, %v5453
    %v5492 = vadd.f32 %v5422, %v5453
    %v5493 = vadd.f32 %v5423, %v5453
    %v5494 = vadd.f32 %v5424, %v5453
    %v5495 = vadd.f32 %v5425, %v5453
    %v5496 = vadd.f32 %v5426, %v5453
    %v5497 = vadd.f32 %v5427, %v5453
    %v5498 = vadd.f32 %v5428, %v5453
    %v5499 = vadd.f32 %v5429, %v5453
    %v5500 = vadd.f32 %v5430, %v5453
    %v5501 = vadd.f32 %v5431, %v5453
    %v5502 = vadd.f32 %v5432, %v5453
    %v5503 = vadd.f32 %v5433, %v5453
    %v5504 = vadd.f32 %v5434, %v5453
    %v5505 = vadd.f32 %v5435, %v5453
    %v5506 = vadd.f32 %v5436, %v5453
    %v5507 = vadd.f32 %v5437, %v5453
    %v5508 = vadd.f32 %v5438, %v5453
    %v5509 = vadd.f32 %v5439, %v5453
    %v5510 = vadd.f32 %v5440, %v5453
    %v5511 = vadd.f32 %v5441, %v5453
    %v5512 = vadd.f32 %v5442, %v5453
    %v5513 = vadd.f32 %v5443, %v5453
    %v5514 = vadd.f32 %v5444, %v5453
    %v5515 = vadd.f32 %v5445, %v5453
    %v5516 = vadd.f32 %v5446, %v5453
    %v5517 = vadd.f32 %v5447, %v5453
    %v5518 = vadd.f32 %v5448, %v5453
    %v5519 = vadd.f32 %v5455, %v101
    %v5520 = vadd.f32 %v5456, %v102
    %v5521 = vadd.f32 %v5457, %v103
    %v5522 = vadd.f32 %v5458, %v104
    %v5523 = vadd.f32 %v5459, %v105
    %v5524 = vadd.f32 %v5460, %v106
    %v5525 = vadd.f32 %v5461, %v107
    %v5526 = vadd.f32 %v5462, %v108
    %v5527 = vadd.f32 %v5463, %v109
    %v5528 = vadd.f32 %v5464, %v110
    %v5529 = vadd.f32 %v5465, %v111
    %v5530 = vadd.f32 %v5466, %v112
    %v5531 = vadd.f32 %v5467, %v113
    %v5532 = vadd.f32 %v5468, %v114
    %v5533 = vadd.f32 %v5469, %v115
    %v5534 = vadd.f32 %v5470, %v116
    %v5535 = vadd.f32 %v5471, %v117
    %v5536 = vadd.f32 %v5472, %v118
    %v5537 = vadd.f32 %v5473, %v119
    %v5538 = vadd.f32 %v5474, %v120
    %v5539 = vadd.f32 %v5475, %v121
    %v5540 = vadd.f32 %v5476, %v122
    %v5541 = vadd.f32 %v5477, %v123
    %v5542 = vadd.f32 %v5478, %v124
    %v5543 = vadd.f32 %v5479, %v125
    %v5544 = vadd.f32 %v5480, %v126
    %v5545 = vadd.f32 %v5481, %v127
    %v5546 = vadd.f32 %v5482, %v128
    %v5547 = vadd.f32 %v5483, %v129
    %v5548 = vadd.f32 %v5484, %v130
    %v5549 = vadd.f32 %v5485, %v131
    %v5550 = vadd.f32 %v5486, %v132
    %v5551 = vadd.f32 %v5487, %v133
    %v5552 = vadd.f32 %v5488, %v134
    %v5553 = vadd.f32 %v5489, %v135
    %v5554 = vadd.f32 %v5490, %v136
    %v5555 = vadd.f32 %v5491, %v137
    %v5556 = vadd.f32 %v5492, %v138
    %v5557 = vadd.f32 %v5493, %v139
    %v5558 = vadd.f32 %v5494, %v140
    %v5559 = vadd.f32 %v5495, %v141
    %v5560 = vadd.f32 %v5496, %v142
    %v5561 = vadd.f32 %v5497, %v143
    %v5562 = vadd.f32 %v5498, %v144
    %v5563 = vadd.f32 %v5499, %v145
    %v5564 = vadd.f32 %v5500, %v146
    %v5565 = vadd.f32 %v5501, %v147
    %v5566 = vadd.f32 %v5502, %v148
    %v5567 = vadd.f32 %v5503, %v149
    %v5568 = vadd.f32 %v5504, %v150
    %v5569 = vadd.f32 %v5505, %v151
    %v5570 = vadd.f32 %v5506, %v152
    %v5571 = vadd.f32 %v5507, %v153
    %v5572 = vadd.f32 %v5508, %v154
    %v5573 = vadd.f32 %v5509, %v155
    %v5574 = vadd.f32 %v5510, %v156
    %v5575 = vadd.f32 %v5511, %v157
    %v5576 = vadd.f32 %v5512, %v158
    %v5577 = vadd.f32 %v5513, %v159
    %v5578 = vadd.f32 %v5514, %v160
    %v5579 = vadd.f32 %v5515, %v161
    %v5580 = vadd.f32 %v5516, %v162
    %v5581 = vadd.f32 %v5517, %v163
    %v5582 = vadd.f32 %v5518, %v164
    %v5583 = vmax.f32 %v5519, 0.0
    %v5584 = vmax.f32 %v5520, 0.0
    %v5585 = vmax.f32 %v5521, 0.0
    %v5586 = vmax.f32 %v5522, 0.0
    %v5587 = vmax.f32 %v5523, 0.0
    %v5588 = vmax.f32 %v5524, 0.0
    %v5589 = vmax.f32 %v5525, 0.0
    %v5590 = vmax.f32 %v5526, 0.0
    %v5591 = vmax.f32 %v5527, 0.0
    %v5592 = vmax.f32 %v5528, 0.0
    %v5593 = vmax.f32 %v5529, 0.0
    %v5594 = vmax.f32 %v5530, 0.0
    %v5595 = vmax.f32 %v5531, 0.0
    %v5596 = vmax.f32 %v5532, 0.0
    %v5597 = vmax.f32 %v5533, 0.0
    %v5598 = vmax.f32 %v5534, 0.0
    %v5599 = vmax.f32 %v5535, 0.0
    %v5600 = vmax.f32 %v5536, 0.0
    %v5601 = vmax.f32 %v5537, 0.0
    %v5602 = vmax.f32 %v5538, 0.0
    %v5603 = vmax.f32 %v5539, 0.0
    %v5604 = vmax.f32 %v5540, 0.0
    %v5605 = vmax.f32 %v5541, 0.0
    %v5606 = vmax.f32 %v5542, 0.0
    %v5607 = vmax.f32 %v5543, 0.0
    %v5608 = vmax.f32 %v5544, 0.0
    %v5609 = vmax.f32 %v5545, 0.0
    %v5610 = vmax.f32 %v5546, 0.0
    %v5611 = vmax.f32 %v5547, 0.0
    %v5612 = vmax.f32 %v5548, 0.0
    %v5613 = vmax.f32 %v5549, 0.0
    %v5614 = vmax.f32 %v5550, 0.0
    %v5615 = vmax.f32 %v5551, 0.0
    %v5616 = vmax.f32 %v5552, 0.0
    %v5617 = vmax.f32 %v5553, 0.0
    %v5618 = vmax.f32 %v5554, 0.0
    %v5619 = vmax.f32 %v5555, 0.0
    %v5620 = vmax.f32 %v5556, 0.0
    %v5621 = vmax.f32 %v5557, 0.0
    %v5622 = vmax.f32 %v5558, 0.0
    %v5623 = vmax.f32 %v5559, 0.0
    %v5624 = vmax.f32 %v5560, 0.0
    %v5625 = vmax.f32 %v5561, 0.0
    %v5626 = vmax.f32 %v5562, 0.0
    %v5627 = vmax.f32 %v5563, 0.0
    %v5628 = vmax.f32 %v5564, 0.0
    %v5629 = vmax.f32 %v5565, 0.0
    %v5630 = vmax.f32 %v5566, 0.0
    %v5631 = vmax.f32 %v5567, 0.0
    %v5632 = vmax.f32 %v5568, 0.0
    %v5633 = vmax.f32 %v5569, 0.0
    %v5634 = vmax.f32 %v5570, 0.0
    %v5635 = vmax.f32 %v5571, 0.0
    %v5636 = vmax.f32 %v5572, 0.0
    %v5637 = vmax.f32 %v5573, 0.0
    %v5638 = vmax.f32 %v5574, 0.0
    %v5639 = vmax.f32 %v5575, 0.0
    %v5640 = vmax.f32 %v5576, 0.0
    %v5641 = vmax.f32 %v5577, 0.0
    %v5642 = vmax.f32 %v5578, 0.0
    %v5643 = vmax.f32 %v5579, 0.0
    %v5644 = vmax.f32 %v5580, 0.0
    %v5645 = vmax.f32 %v5581, 0.0
    %v5646 = vmax.f32 %v5582, 0.0
    %5647 = vst [vmem:[#allocation11] sm:$0xff] %v5583
    %5648 = vst [vmem:[#allocation11 + $0x8] sm:$0xff] %v5584
    %5649 = vst [vmem:[#allocation11 + $0x10] sm:$0xff] %v5585
    %5650 = vst [vmem:[#allocation11 + $0x18] sm:$0xff] %v5586
    %5651 = vst [vmem:[#allocation11 + $0x20] sm:$0xff] %v5587
    %5652 = vst [vmem:[#allocation11 + $0x28] sm:$0xff] %v5588
    %5653 = vst [vmem:[#allocation11 + $0x30] sm:$0xff] %v5589
    %5654 = vst [vmem:[#allocation11 + $0x38] sm:$0xff] %v5590
    %5655 = vst [vmem:[#allocation11 + $0x40] sm:$0xff] %v5591
    %5656 = vst [vmem:[#allocation11 + $0x48] sm:$0xff] %v5592
    %5657 = vst [vmem:[#allocation11 + $0x50] sm:$0xff] %v5593
    %5658 = vst [vmem:[#allocation11 + $0x58] sm:$0xff] %v5594
    %5659 = vst [vmem:[#allocation11 + $0x60] sm:$0xff] %v5595
    %5660 = vst [vmem:[#allocation11 + $0x68] sm:$0xff] %v5596
    %5661 = vst [vmem:[#allocation11 + $0x70] sm:$0xff] %v5597
    %5662 = vst [vmem:[#allocation11 + $0x78] sm:$0xff] %v5598
    %5663 = vst [vmem:[#allocation11 + $0x80] sm:$0xff] %v5599
    %5664 = vst [vmem:[#allocation11 + $0x88] sm:$0xff] %v5600
    %5665 = vst [vmem:[#allocation11 + $0x90] sm:$0xff] %v5601
    %5666 = vst [vmem:[#allocation11 + $0x98] sm:$0xff] %v5602
    %5667 = vst [vmem:[#allocation11 + $0xa0] sm:$0xff] %v5603
    %5668 = vst [vmem:[#allocation11 + $0xa8] sm:$0xff] %v5604
    %5669 = vst [vmem:[#allocation11 + $0xb0] sm:$0xff] %v5605
    %5670 = vst [vmem:[#allocation11 + $0xb8] sm:$0xff] %v5606
    %5671 = vst [vmem:[#allocation11 + $0xc0] sm:$0xff] %v5607
    %5672 = vst [vmem:[#allocation11 + $0xc8] sm:$0xff] %v5608
    %5673 = vst [vmem:[#allocation11 + $0xd0] sm:$0xff] %v5609
    %5674 = vst [vmem:[#allocation11 + $0xd8] sm:$0xff] %v5610
    %5675 = vst [vmem:[#allocation11 + $0xe0] sm:$0xff] %v5611
    %5676 = vst [vmem:[#allocation11 + $0xe8] sm:$0xff] %v5612
    %5677 = vst [vmem:[#allocation11 + $0xf0] sm:$0xff] %v5613
    %5678 = vst [vmem:[#allocation11 + $0xf8] sm:$0xff] %v5614
    %5679 = vst [vmem:[#allocation11 + $0x100] sm:$0xff] %v5615
    %5680 = vst [vmem:[#allocation11 + $0x108] sm:$0xff] %v5616
    %5681 = vst [vmem:[#allocation11 + $0x110] sm:$0xff] %v5617
    %5682 = vst [vmem:[#allocation11 + $0x118] sm:$0xff] %v5618
    %5683 = vst [vmem:[#allocation11 + $0x120] sm:$0xff] %v5619
    %5684 = vst [vmem:[#allocation11 + $0x128] sm:$0xff] %v5620
    %5685 = vst [vmem:[#allocation11 + $0x130] sm:$0xff] %v5621
    %5686 = vst [vmem:[#allocation11 + $0x138] sm:$0xff] %v5622
    %5687 = vst [vmem:[#allocation11 + $0x140] sm:$0xff] %v5623
    %5688 = vst [vmem:[#allocation11 + $0x148] sm:$0xff] %v5624
    %5689 = vst [vmem:[#allocation11 + $0x150] sm:$0xff] %v5625
    %5690 = vst [vmem:[#allocation11 + $0x158] sm:$0xff] %v5626
    %5691 = vst [vmem:[#allocation11 + $0x160] sm:$0xff] %v5627
    %5692 = vst [vmem:[#allocation11 + $0x168] sm:$0xff] %v5628
    %5693 = vst [vmem:[#allocation11 + $0x170] sm:$0xff] %v5629
    %5694 = vst [vmem:[#allocation11 + $0x178] sm:$0xff] %v5630
    %5695 = vst [vmem:[#allocation11 + $0x180] sm:$0xff] %v5631
    %5696 = vst [vmem:[#allocation11 + $0x188] sm:$0xff] %v5632
    %5697 = vst [vmem:[#allocation11 + $0x190] sm:$0xff] %v5633
    %5698 = vst [vmem:[#allocation11 + $0x198] sm:$0xff] %v5634
    %5699 = vst [vmem:[#allocation11 + $0x1a0] sm:$0xff] %v5635
    %5700 = vst [vmem:[#allocation11 + $0x1a8] sm:$0xff] %v5636
    %5701 = vst [vmem:[#allocation11 + $0x1b0] sm:$0xff] %v5637
    %5702 = vst [vmem:[#allocation11 + $0x1b8] sm:$0xff] %v5638
    %5703 = vst [vmem:[#allocation11 + $0x1c0] sm:$0xff] %v5639
    %5704 = vst [vmem:[#allocation11 + $0x1c8] sm:$0xff] %v5640
    %5705 = vst [vmem:[#allocation11 + $0x1d0] sm:$0xff] %v5641
    %5706 = vst [vmem:[#allocation11 + $0x1d8] sm:$0xff] %v5642
    %5707 = vst [vmem:[#allocation11 + $0x1e0] sm:$0xff] %v5643
    %5708 = vst [vmem:[#allocation11 + $0x1e8] sm:$0xff] %v5644
    %5709 = vst [vmem:[#allocation11 + $0x1f0] sm:$0xff] %v5645
    %5710 = vst [vmem:[#allocation11 + $0x1f8] sm:$0xff] %v5646
    // Predicated region
    $region70: #{tpu_custom_call.1} parent=1 // pred_check
      _
    $region71: #{tpu_custom_call.1} parent=1 // pred_check_branch
      %5712 = sbr.rel (0) target = $region73
    $region72: #{tpu_custom_call.1} parent=1 // pred_region
      %s5714 = ssub.s32 8192, 8192
      %5715 = vsyncadd [#allocation5], %s5714
      %s5716 = sshll.u32 [#allocation11], 4
      %s5717 = int_to_ptr.vmem [resolvable:$true] %s5716
      %5722 = dma.vmem_to_hbm [thread:$0]  %s5717, 8192, %s13, [#allocation5], 128, 128, 8
    $region73: #{tpu_custom_call.1} parent=1 // pred_fallthru
      _
    // Predicated region
    $region74: #{tpu_custom_call.1} parent=1 // pred_check
      _
    $region75: #{tpu_custom_call.1} parent=1 // pred_check_branch
      %5724 = sbr.rel (0) target = $region77
    $region76: #{tpu_custom_call.1} parent=1 // pred_region
      %5725 = dma.done [#allocation5], 8192
    $region77: #{tpu_custom_call.1} parent=1 // pred_fallthru
      _
    %5726 = vsyncpa [#allocation4], 1
    %5727 = vsyncpa [#allocation7], 1
    %5728 = vsyncpa [#allocation10], 1
    %5729 = vsyncpa [#allocation5], 1

</llo_original>
